<compile_context>
chip_gen: v7x
topology: tpu7x:2x2x1
jax: 0.10.0
libtpu: 0.0.40
codegen_flags: <defaults>
</compile_context>

<pallas_src>
import functools

import numpy as np
import jax
import jax.numpy as jnp
from jax.experimental import pallas as pl
from jax.experimental.pallas import tpu as pltpu


# ---------------------------------------------------------------------------
# Kernel
# ---------------------------------------------------------------------------
def gat_encoder_kernel(x_ref, mask_ref, wall_ref, wa_ref, g_ref, b_ref, out_ref, *,
                       num_heads, negative_slope, eps, matmul_dtype):
    """All GAT layers for one block of batch elements.

    x_ref:    (Bt, N, D) f32/bf16      mask_ref: (Bt, N, N) int8 (1 = masked edge)
    wall_ref: (L, D, D)                wa_ref:   (L, D, 2H)  (a1/a2 folded into W)
    g_ref/b_ref: (L, 1, D)             out_ref:  (Bt, N, D) f32
    """
    Bt, N, D = out_ref.shape
    H = num_heads
    hd = D // H
    L = wall_ref.shape[0]
    M = Bt * N
    md = matmul_dtype
    exact_recip = np.dtype(md) == np.dtype(np.float32)

    # Masking as arithmetic (no per-head selects, no bool re-materialization).
    bias = mask_ref[...].astype(jnp.float32) * jnp.float32(-1e30)     # (Bt,N,N)
    bias = bias[:, None, :, :]                                        # (Bt,1,N,N)
    row = jax.lax.broadcasted_iota(jnp.int32, (N, N), 0)
    col = jax.lax.broadcasted_iota(jnp.int32, (N, N), 1)
    offdiag = (row != col).astype(jnp.float32)[None, None, :, :]      # (1,1,N,N)

    h = x_ref[...].astype(jnp.float32)                                # (Bt,N,D)

    for l in range(L):   # layers fused: inter-layer activation never leaves VMEM/vregs
        xm = h.reshape(M, D).astype(md)

        # One lane-dense MXU matmul for all heads, one for all 2H attention scores.
        Wh_all = jnp.dot(xm, wall_ref[l].astype(md),
                         preferred_element_type=jnp.float32)          # (M, D)
        S = jnp.dot(xm, wa_ref[l].astype(md),
                    preferred_element_type=jnp.float32)               # (M, 2H)

        # Head-major views: ONE relayout per layer (not per head).
        Wh_heads = Wh_all.reshape(Bt, N, H, hd).transpose(0, 2, 1, 3)  # (Bt,H,N,hd)
        S_b = S.reshape(Bt, N, 2 * H)
        s1 = S_b[:, :, :H].transpose(0, 2, 1)[:, :, :, None]           # (Bt,H,N,1)
        s2 = S_b[:, :, H:].transpose(0, 2, 1)[:, :, None, :]           # (Bt,H,1,N)

        # All-heads masked softmax over neighbours j (f32 math).
        e = s1 + s2 + bias                                             # (Bt,H,N,N)
        e_max = jnp.max(e, axis=-1, keepdims=True)
        p = jnp.exp(e - e_max)
        denom = jnp.sum(p, axis=-1, keepdims=True)
        # Exact reciprocal for the f32-parity path; approx (EUP slot) is fine for bf16.
        alpha = p * pl.reciprocal(denom, approx=not exact_recip)
        alpha_nb = alpha * offdiag                                     # zero diagonal
        # Softmax rows sum to 1 (diagonal always unmasked after adj+I).
        alpha_self = 1.0 - jnp.sum(alpha_nb, axis=-1, keepdims=True)   # (Bt,H,N,1)

        # Neighbour aggregation for all heads in one batched MXU pass.
        G = Bt * H
        a_nb = alpha_nb.reshape(G, N, N).astype(md)
        Wh_g = Wh_heads.reshape(G, N, hd)
        if hd < 128 and N >= 128:
            # Transposed form: MXU output lane dim = N (not hd) -> full column util;
            # the extra transposes ride the otherwise-idle XLU slot.
            nsum_t = jnp.einsum('gdj,gij->gdi',
                                jnp.swapaxes(Wh_g, 1, 2).astype(md), a_nb,
                                preferred_element_type=jnp.float32)    # (G,hd,N)
            nsum = jnp.swapaxes(nsum_t, 1, 2)                          # (G,N,hd)
        else:
            nsum = jnp.einsum('gij,gjd->gid', a_nb, Wh_g.astype(md),
                              preferred_element_type=jnp.float32)      # (G,N,hd)
        nsum = nsum.reshape(Bt, H, N, hd)
        ncontrib = jnp.where(nsum >= 0.0, nsum, negative_slope * nsum)

        out_heads = alpha_self * Wh_heads + ncontrib                   # (Bt,H,N,hd) f32
        out = out_heads.transpose(0, 2, 1, 3).reshape(Bt, N, D)        # lane-dense (D)

        # Residual + LayerNorm over the feature dim (f32).
        h_res = h + out
        mean = jnp.mean(h_res, axis=-1, keepdims=True)
        var = jnp.mean((h_res - mean) ** 2, axis=-1, keepdims=True)
        y = (h_res - mean) * jax.lax.rsqrt(var + eps)
        h = y * g_ref[l] + b_ref[l]

    out_ref[...] = h.astype(out_ref.dtype)


# ---------------------------------------------------------------------------
# Wrapper helpers (generation-aware sizing)
# ---------------------------------------------------------------------------
def _hw_profile():
    """(vmem_budget_bytes, num_tensorcores, mxu_m_target), conservative fallback."""
    MiB = 2 ** 20
    try:
        vmem_cap = int(pltpu.get_tpu_info().vmem_capacity_bytes)
    except Exception:
        vmem_cap = 0
    if vmem_cap >= 96 * MiB:
        # v5e / v6e: 128 MiB VMEM, single TensorCore -> spend most of VMEM, no need
        # to split the grid for core parallelism.
        return min(int(vmem_cap * 0.85), 110 * MiB), 1, 256
    if vmem_cap > 0:
        # v7x: 64 MiB VMEM per TC, 2 TensorCores -> leave headroom for compiler scratch.
        return min(max(vmem_cap - 12 * MiB, 32 * MiB), 52 * MiB), 2, 256
    # Unknown backend (e.g. interpret mode): conservative v7x-like assumptions.
    return 48 * MiB, 2, 256


def _default_block_b(B, N, num_tc, m_target):
    """Batch elements per grid step: fill the MXU M-dim (block_b*N >= m_target) but
    keep >= 2 grid steps only when there are 2 TensorCores to shard across."""
    target_bb = max(1, -(-m_target // N))          # cdiv(m_target, N)
    bb = min(B, target_bb)
    if num_tc > 1 and B >= 2:
        bb = min(bb, max(1, B // 2))
    bb = max(bb, 1)
    while B % bb:
        bb -= 1
    return bb


def _vmem_limit_bytes(bb, N, D, L, H, budget):
    f32 = 4
    MiB = 2 ** 20
    x_blk = bb * N * D * f32
    m_blk = bb * N * N                         # int8 mask
    out_blk = bb * N * D * f32
    w_once = L * (D * D + D * 2 * H + 2 * D) * f32   # single-buffered constants
    attn = bb * H * N * N * f32 * 5            # e / p / alpha / alpha_nb / nsum live set
    feat = bb * N * D * f32 * 6                # h, Wh, out, residual + LayerNorm temps
    need = 2 * (x_blk + m_blk + out_blk) + w_once + attn + feat
    return int(min(budget, max(32 * MiB, 2 * need)))


def pack_params(params):
    """Fuse per-head weights into lane-dense matrices (done once in the wrapper).

    wall: (L, D, D)   columns [h*hd:(h+1)*hd] = W_h
    wa:   (L, D, 2H)  column h = W_h @ a1_h, column H+h = W_h @ a2_h
    """
    hp = jax.lax.Precision.HIGHEST
    walls, was, gs, bs = [], [], [], []
    for (w, a1, a2, gamma, beta) in params:
        H = w.shape[0]
        wall = jnp.concatenate([w[h] for h in range(H)], axis=-1)                 # (D, D)
        wa1 = jnp.concatenate([jnp.matmul(w[h], a1[h], precision=hp)
                               for h in range(H)], axis=-1)                       # (D, H)
        wa2 = jnp.concatenate([jnp.matmul(w[h], a2[h], precision=hp)
                               for h in range(H)], axis=-1)                       # (D, H)
        walls.append(wall)
        was.append(jnp.concatenate([wa1, wa2], axis=-1))                          # (D, 2H)
        gs.append(gamma.reshape(1, -1))
        bs.append(beta.reshape(1, -1))
    return jnp.stack(walls), jnp.stack(was), jnp.stack(gs), jnp.stack(bs)


def gat_encoder(x, adj, params, *, num_heads, negative_slope=0.2, eps=1e-5,
                block_b=None, matmul_dtype=jnp.bfloat16):
    """Fused GATEncoder forward: all layers in one pallas_call."""
    B, N, D = x.shape
    H = num_heads
    assert D % H == 0
    if adj is None:
        adj = jnp.ones((B, N, N), x.dtype)

    # adj only acts as a binary mask: mirror the reference's min(adj + I, 1) == 0,
    # shipped as int8 (4x less HBM->VMEM traffic than f32).
    eye = jnp.eye(N, dtype=adj.dtype)
    mask = (jnp.minimum(adj + eye[None], 1.0) == 0.0).astype(jnp.int8)

    wall, wa, gamma, beta = pack_params(params)
    L = wall.shape[0]

    budget, num_tc, m_target = _hw_profile()
    if block_b is None:
        block_b = _default_block_b(B, N, num_tc, m_target)
    assert B % block_b == 0, "block_b must divide the batch size"
    grid_b = B // block_b

    # bf16 MXU operands by default (f32 accumulation); ship x as bf16 on that path.
    x_in = x.astype(jnp.bfloat16) if np.dtype(matmul_dtype) == np.dtype(jnp.bfloat16) else x

    kernel = functools.partial(
        gat_encoder_kernel, num_heads=H, negative_slope=negative_slope,
        eps=eps, matmul_dtype=matmul_dtype)

    flops = L * (2 * B * N * D * D + 4 * B * N * D * H + 2 * B * N * N * D)
    transc = L * H * B * N * N
    bytes_acc = (x_in.size * x_in.dtype.itemsize + mask.size + B * N * D * 4
                 + 4 * (wall.size + wa.size + gamma.size + beta.size))
    cost = pl.CostEstimate(flops=int(flops), transcendentals=int(transc),
                           bytes_accessed=int(bytes_acc))

    def call(weight_mode):
        def wspec(shape):
            kw = {} if weight_mode is None else dict(pipeline_mode=weight_mode)
            return pl.BlockSpec(shape, lambda b: (0,) * len(shape), **kw)
        return pl.pallas_call(
            kernel,
            out_shape=jax.ShapeDtypeStruct((B, N, D), jnp.float32),
            grid_spec=pltpu.PrefetchScalarGridSpec(
                num_scalar_prefetch=0,
                grid=(grid_b,),
                in_specs=[
                    pl.BlockSpec((block_b, N, D), lambda b: (b, 0, 0)),
                    pl.BlockSpec((block_b, N, N), lambda b: (b, 0, 0)),
                    wspec((L, D, D)),
                    wspec((L, D, 2 * H)),
                    wspec((L, 1, D)),
                    wspec((L, 1, D)),
                ],
                out_specs=pl.BlockSpec((block_b, N, D), lambda b: (b, 0, 0)),
            ),
            compiler_params=pltpu.CompilerParams(
                dimension_semantics=("parallel",),
                vmem_limit_bytes=_vmem_limit_bytes(block_b, N, D, L, H, budget),
            ),
            cost_estimate=cost,
        )(x_in, mask, wall, wa, gamma, beta)

    try:
        # Constant weights (index_map never changes): single-buffer them to reclaim VMEM.
        return call(pl.Buffered(1))
    except Exception:
        # TODO(synk): some jax/runtime combos may reject Buffered(1) on pallas_call
        # inputs; fall back to default double-buffered weights.
        return call(None)


# ---------------------------------------------------------------------------
# Params & pure-JAX reference (mirrors the PyTorch forward exactly)
# ---------------------------------------------------------------------------
def init_params(key, embed_dim, num_heads, num_layers):
    head_dim = embed_dim // num_heads
    params = []
    for _ in range(num_layers):
        key, k1, k2 = jax.random.split(key, 3)
        # torch W: Linear(embed_dim -> head_dim, bias=False); stored transposed (D, hd)
        w = jax.random.normal(k1, (num_heads, embed_dim, head_dim), jnp.float32) * 0.1
        # torch a: Linear(2*head_dim -> 1, bias=False); split into the two halves
        a = jax.random.normal(k2, (num_heads, 2 * head_dim, 1), jnp.float32) * 0.1
        a1 = a[:, :head_dim, :]
        a2 = a[:, head_dim:, :]
        gamma = jnp.ones((1, embed_dim), jnp.float32)   # LayerNorm default init
        beta = jnp.zeros((1, embed_dim), jnp.float32)
        params.append((w, a1, a2, gamma, beta))
    return params


def gat_encoder_ref(x, adj, params, *, num_heads, negative_slope=0.2, eps=1e-5):
    B, N, D = x.shape
    if adj is None:
        adj = jnp.ones((B, N, N), x.dtype)
    eye = jnp.eye(N, dtype=x.dtype)
    hp = jax.lax.Precision.HIGHEST   # keep the reference at full f32 matmul precision
    for (w, a1, a2, gamma, beta) in params:
        adj_eff = jnp.minimum(adj + eye[None], 1.0)
        outs = []
        for h in range(num_heads):
            Wh = jnp.matmul(x, w[h], precision=hp)
            s1 = jnp.matmul(Wh, a1[h], precision=hp)
            s2 = jnp.matmul(Wh, a2[h], precision=hp)
            e = s1 + jnp.swapaxes(s2, 1, 2)
            e = jnp.where(adj_eff == 0.0, -jnp.inf, e)
            alpha = jax.nn.softmax(e, axis=2)
            alpha_self = jnp.sum(alpha * eye[None], axis=2, keepdims=True)
            self_c = alpha_self * Wh
            alpha_nb = alpha * (1.0 - eye[None])
            nsum = jnp.matmul(alpha_nb, Wh, precision=hp)
            nc = jnp.where(nsum >= 0, nsum, negative_slope * nsum)
            outs.append(self_c + nc)
        out = jnp.concatenate(outs, axis=-1)
        h_res = x + out
        mean = jnp.mean(h_res, axis=-1, keepdims=True)
        var = jnp.mean((h_res - mean) ** 2, axis=-1, keepdims=True)
        x = (h_res - mean) / jnp.sqrt(var + eps) * gamma + beta
    return x


# ---------------------------------------------------------------------------
# Demo
# ---------------------------------------------------------------------------
if __name__ == "__main__":
    key = jax.random.PRNGKey(0)

    # --- shape 1: small, matches the module defaults (embed_dim=32, 4 heads, 2 layers)
    B, N, D, H, L = 2, 8, 32, 4, 2
    kx, kadj, kp, key = jax.random.split(key, 4)
    x = jax.random.normal(kx, (B, N, D), jnp.float32)
    adj = jax.random.bernoulli(kadj, 0.5, (B, N, N)).astype(jnp.float32)
    params = init_params(kp, D, H, L)

    ref = gat_encoder_ref(x, adj, params, num_heads=H)

    # f32 MXU path (parity check vs. the PyTorch-mirroring reference)
    out = jax.block_until_ready(
        gat_encoder(x, adj, params, num_heads=H, matmul_dtype=jnp.float32))
    assert out.shape == (B, N, D)
    assert jnp.allclose(out, ref, rtol=5e-3, atol=5e-3), "f32 path mismatch"

    # default bf16 MXU path (operands bf16, f32 accumulation / softmax / LayerNorm)
    out_bf16 = jax.block_until_ready(gat_encoder(x, adj, params, num_heads=H))
    assert jnp.allclose(out_bf16, ref, rtol=5e-2, atol=1e-1), "bf16 path mismatch"

    # --- shape 2: lane-filling N (exercises the transposed MXU aggregation path)
    B2, N2, D2, H2 = 2, 128, 64, 4
    kx2, kadj2, kp2, key = jax.random.split(key, 4)
    x2 = jax.random.normal(kx2, (B2, N2, D2), jnp.float32)
    adj2 = jax.random.bernoulli(kadj2, 0.3, (B2, N2, N2)).astype(jnp.float32)
    params2 = init_params(kp2, D2, H2, 2)
    out2 = jax.block_until_ready(
        gat_encoder(x2, adj2, params2, num_heads=H2, matmul_dtype=jnp.float32))
    ref2 = gat_encoder_ref(x2, adj2, params2, num_heads=H2)
    assert jnp.allclose(out2, ref2, rtol=5e-3, atol=5e-3), "large-N f32 path mismatch"

    print("KERNEL_OK")
</pallas_src>

<mosaic_0001>
module attributes {stable_mosaic.version = 11 : i64} {
  func.func @gat_encoder_kernel(%arg0: i32, %arg1: memref<1x8x32xf32, #tpu.memory_space<vmem>>, %arg2: memref<1x8x8xi8, #tpu.memory_space<vmem>>, %arg3: memref<2x32x32xf32, #tpu.memory_space<vmem>>, %arg4: memref<2x32x8xf32, #tpu.memory_space<vmem>>, %arg5: memref<2x1x32xf32, #tpu.memory_space<vmem>>, %arg6: memref<2x1x32xf32, #tpu.memory_space<vmem>>, %arg7: memref<1x8x32xf32, #tpu.memory_space<vmem>>) attributes {dimension_semantics = [#tpu.dimension_semantics<parallel>], iteration_bounds = array<i64: 2>, scalar_prefetch = 0 : i64, scratch_operands = 0 : i64, tpu.core_type = #tpu.core_type<tc>, window_params = [{transform_indices = @transform_0, window_bounds = array<i64: 1, 8, 32>}, {transform_indices = @transform_1, window_bounds = array<i64: 1, 8, 8>}, {pipeline_mode = #tpu.pipeline_mode<synchronous>, transform_indices = @transform_2, window_bounds = array<i64: 2, 32, 32>}, {pipeline_mode = #tpu.pipeline_mode<synchronous>, transform_indices = @transform_3, window_bounds = array<i64: 2, 32, 8>}, {pipeline_mode = #tpu.pipeline_mode<synchronous>, transform_indices = @transform_4, window_bounds = array<i64: 2, 1, 32>}, {pipeline_mode = #tpu.pipeline_mode<synchronous>, transform_indices = @transform_5, window_bounds = array<i64: 2, 1, 32>}, {transform_indices = @transform_6, window_bounds = array<i64: 1, 8, 32>}]} {
    %c0 = arith.constant 0 : index
    %c0_0 = arith.constant 0 : index
    %c0_1 = arith.constant 0 : index
    %0 = vector.load %arg2[%c0, %c0_0, %c0_1] : memref<1x8x8xi8, #tpu.memory_space<vmem>>, vector<1x8x8xi8>
    %1 = arith.sitofp %0 : vector<1x8x8xi8> to vector<1x8x8xf32>
    %cst = arith.constant -1.000000e+30 : f32
    %2 = vector.broadcast %cst : f32 to vector<1x8x8xf32>
    %3 = arith.mulf %1, %2 : vector<1x8x8xf32>
    %4 = vector.shape_cast %3 : vector<1x8x8xf32> to vector<1x1x8x8xf32>
    %5 = tpu.iota {dimensions = array<i32: 0>} : vector<8x8xi32>
    %6 = tpu.iota {dimensions = array<i32: 1>} : vector<8x8xi32>
    %7 = arith.cmpi ne, %5, %6 : vector<8x8xi32>
    %8 = arith.extui %7 : vector<8x8xi1> to vector<8x8xi32>
    %9 = arith.sitofp %8 : vector<8x8xi32> to vector<8x8xf32>
    %10 = vector.shape_cast %9 : vector<8x8xf32> to vector<1x1x8x8xf32>
    %c0_2 = arith.constant 0 : index
    %c0_3 = arith.constant 0 : index
    %c0_4 = arith.constant 0 : index
    %11 = vector.load %arg1[%c0_2, %c0_3, %c0_4] : memref<1x8x32xf32, #tpu.memory_space<vmem>>, vector<1x8x32xf32>
    %12 = vector.shape_cast %11 : vector<1x8x32xf32> to vector<8x32xf32>
    %c0_5 = arith.constant 0 : index
    %c0_6 = arith.constant 0 : index
    %c0_7 = arith.constant 0 : index
    %13 = vector.load %arg3[%c0_5, %c0_6, %c0_7] : memref<2x32x32xf32, #tpu.memory_space<vmem>>, vector<1x32x32xf32>
    %14 = vector.shape_cast %13 : vector<1x32x32xf32> to vector<32x32xf32>
    %cst_8 = arith.constant dense<0.000000e+00> : vector<8x32xf32>
    %15 = tpu.matmul %12, %14, %cst_8 {dimension_numbers = #tpu.dot_dimension_numbers<[1], [0], [0], [1], [0, 0, 1, 1], [], []>} : vector<8x32xf32>, vector<32x32xf32>, vector<8x32xf32> -> vector<8x32xf32>
    %c0_9 = arith.constant 0 : index
    %c0_10 = arith.constant 0 : index
    %c0_11 = arith.constant 0 : index
    %16 = vector.load %arg4[%c0_9, %c0_10, %c0_11] : memref<2x32x8xf32, #tpu.memory_space<vmem>>, vector<1x32x8xf32>
    %17 = vector.shape_cast %16 : vector<1x32x8xf32> to vector<32x8xf32>
    %cst_12 = arith.constant dense<0.000000e+00> : vector<8x8xf32>
    %18 = tpu.matmul %12, %17, %cst_12 {dimension_numbers = #tpu.dot_dimension_numbers<[1], [0], [0], [1], [0, 0, 1, 1], [], []>} : vector<8x32xf32>, vector<32x8xf32>, vector<8x8xf32> -> vector<8x8xf32>
    %19 = vector.shape_cast %15 : vector<8x32xf32> to vector<1x8x4x8xf32>
    %20 = tpu.transpose %19, [0, 2, 1, 3] : vector<1x8x4x8xf32> -> vector<1x4x8x8xf32>
    %21 = vector.shape_cast %18 : vector<8x8xf32> to vector<1x8x8xf32>
    %22 = vector.extract_strided_slice %21 {offsets = [0, 0, 0], sizes = [1, 8, 4], strides = [1, 1, 1]} : vector<1x8x8xf32> to vector<1x8x4xf32>
    %23 = tpu.transpose %22, [0, 2, 1] : vector<1x8x4xf32> -> vector<1x4x8xf32>
    %24 = vector.shape_cast %23 : vector<1x4x8xf32> to vector<1x4x8x1xf32>
    %25 = vector.extract_strided_slice %21 {offsets = [0, 0, 4], sizes = [1, 8, 4], strides = [1, 1, 1]} : vector<1x8x8xf32> to vector<1x8x4xf32>
    %26 = tpu.transpose %25, [0, 2, 1] : vector<1x8x4xf32> -> vector<1x4x8xf32>
    %27 = vector.shape_cast %26 : vector<1x4x8xf32> to vector<1x4x1x8xf32>
    %28 = vector.broadcast %24 : vector<1x4x8x1xf32> to vector<1x4x8x8xf32>
    %29 = vector.broadcast %27 : vector<1x4x1x8xf32> to vector<1x4x8x8xf32>
    %30 = arith.addf %28, %29 : vector<1x4x8x8xf32>
    %31 = vector.broadcast %4 : vector<1x1x8x8xf32> to vector<1x4x8x8xf32>
    %32 = arith.addf %30, %31 : vector<1x4x8x8xf32>
    %cst_13 = arith.constant dense<0xFF800000> : vector<1x4x8xf32>
    %33 = vector.multi_reduction <maximumf>, %32, %cst_13 [3] : vector<1x4x8x8xf32> to vector<1x4x8xf32>
    %34 = vector.shape_cast %33 : vector<1x4x8xf32> to vector<1x4x8x1xf32>
    %35 = vector.broadcast %34 : vector<1x4x8x1xf32> to vector<1x4x8x8xf32>
    %36 = arith.subf %32, %35 : vector<1x4x8x8xf32>
    %37 = math.exp %36 : vector<1x4x8x8xf32>
    %cst_14 = arith.constant dense<0.000000e+00> : vector<1x4x8xf32>
    %38 = vector.multi_reduction <add>, %37, %cst_14 [3] : vector<1x4x8x8xf32> to vector<1x4x8xf32>
    %39 = vector.shape_cast %38 : vector<1x4x8xf32> to vector<1x4x8x1xf32>
    %40 = tpu.reciprocal %39 : vector<1x4x8x1xf32> -> vector<1x4x8x1xf32>
    %41 = vector.broadcast %40 : vector<1x4x8x1xf32> to vector<1x4x8x8xf32>
    %42 = arith.mulf %37, %41 : vector<1x4x8x8xf32>
    %43 = vector.broadcast %10 : vector<1x1x8x8xf32> to vector<1x4x8x8xf32>
    %44 = arith.mulf %42, %43 : vector<1x4x8x8xf32>
    %cst_15 = arith.constant dense<0.000000e+00> : vector<1x4x8xf32>
    %45 = vector.multi_reduction <add>, %44, %cst_15 [3] : vector<1x4x8x8xf32> to vector<1x4x8xf32>
    %46 = vector.shape_cast %45 : vector<1x4x8xf32> to vector<1x4x8x1xf32>
    %cst_16 = arith.constant 1.000000e+00 : f32
    %47 = vector.broadcast %cst_16 : f32 to vector<1x4x8x1xf32>
    %48 = arith.subf %47, %46 : vector<1x4x8x1xf32>
    %49 = vector.shape_cast %44 : vector<1x4x8x8xf32> to vector<4x8x8xf32>
    %50 = vector.shape_cast %20 : vector<1x4x8x8xf32> to vector<4x8x8xf32>
    "tpu.trace_start"() <{level = 10 : i32, message = "gij,gjd->gid"}> : () -> ()
    %cst_17 = arith.constant dense<0.000000e+00> : vector<4x8x8xf32>
    %51 = tpu.matmul %49, %50, %cst_17 {dimension_numbers = #tpu.dot_dimension_numbers<[2], [1], [1], [2], [0, 0, 0, 1, 1, 2], [0], [0]>} : vector<4x8x8xf32>, vector<4x8x8xf32>, vector<4x8x8xf32> -> vector<4x8x8xf32>
    "tpu.trace_stop"() : () -> ()
    %52 = vector.shape_cast %51 : vector<4x8x8xf32> to vector<1x4x8x8xf32>
    %cst_18 = arith.constant 0.000000e+00 : f32
    %53 = vector.broadcast %cst_18 : f32 to vector<1x4x8x8xf32>
    %54 = arith.cmpf oge, %52, %53 : vector<1x4x8x8xf32>
    %cst_19 = arith.constant 2.000000e-01 : f32
    %55 = vector.broadcast %cst_19 : f32 to vector<1x4x8x8xf32>
    %56 = arith.mulf %55, %52 : vector<1x4x8x8xf32>
    %57 = arith.select %54, %52, %56 : vector<1x4x8x8xi1>, vector<1x4x8x8xf32>
    %58 = vector.broadcast %48 : vector<1x4x8x1xf32> to vector<1x4x8x8xf32>
    %59 = arith.mulf %58, %20 : vector<1x4x8x8xf32>
    %60 = arith.addf %59, %57 : vector<1x4x8x8xf32>
    %61 = tpu.transpose %60, [0, 2, 1, 3] : vector<1x4x8x8xf32> -> vector<1x8x4x8xf32>
    %62 = vector.shape_cast %61 : vector<1x8x4x8xf32> to vector<1x8x32xf32>
    %63 = arith.addf %11, %62 : vector<1x8x32xf32>
    %cst_20 = arith.constant dense<0.000000e+00> : vector<1x8xf32>
    %64 = vector.multi_reduction <add>, %63, %cst_20 [2] : vector<1x8x32xf32> to vector<1x8xf32>
    %65 = vector.shape_cast %64 : vector<1x8xf32> to vector<1x8x1xf32>
    %cst_21 = arith.constant 3.200000e+01 : f32
    %66 = vector.broadcast %cst_21 : f32 to vector<1x8x1xf32>
    %67 = arith.divf %65, %66 : vector<1x8x1xf32>
    %68 = vector.broadcast %67 : vector<1x8x1xf32> to vector<1x8x32xf32>
    %69 = arith.subf %63, %68 : vector<1x8x32xf32>
    %70 = arith.mulf %69, %69 : vector<1x8x32xf32>
    %cst_22 = arith.constant dense<0.000000e+00> : vector<1x8xf32>
    %71 = vector.multi_reduction <add>, %70, %cst_22 [2] : vector<1x8x32xf32> to vector<1x8xf32>
    %72 = vector.shape_cast %71 : vector<1x8xf32> to vector<1x8x1xf32>
    %cst_23 = arith.constant 3.200000e+01 : f32
    %73 = vector.broadcast %cst_23 : f32 to vector<1x8x1xf32>
    %74 = arith.divf %72, %73 : vector<1x8x1xf32>
    %75 = vector.broadcast %67 : vector<1x8x1xf32> to vector<1x8x32xf32>
    %76 = arith.subf %63, %75 : vector<1x8x32xf32>
    %cst_24 = arith.constant 9.99999974E-6 : f32
    %77 = vector.broadcast %cst_24 : f32 to vector<1x8x1xf32>
    %78 = arith.addf %74, %77 : vector<1x8x1xf32>
    %79 = math.rsqrt %78 : vector<1x8x1xf32>
    %80 = vector.broadcast %79 : vector<1x8x1xf32> to vector<1x8x32xf32>
    %81 = arith.mulf %76, %80 : vector<1x8x32xf32>
    %c0_25 = arith.constant 0 : index
    %c0_26 = arith.constant 0 : index
    %c0_27 = arith.constant 0 : index
    %82 = vector.load %arg5[%c0_25, %c0_26, %c0_27] : memref<2x1x32xf32, #tpu.memory_space<vmem>>, vector<1x1x32xf32>
    %83 = vector.shape_cast %82 : vector<1x1x32xf32> to vector<1x32xf32>
    %84 = vector.shape_cast %83 : vector<1x32xf32> to vector<1x1x32xf32>
    %85 = vector.broadcast %84 : vector<1x1x32xf32> to vector<1x8x32xf32>
    %86 = arith.mulf %81, %85 : vector<1x8x32xf32>
    %c0_28 = arith.constant 0 : index
    %c0_29 = arith.constant 0 : index
    %c0_30 = arith.constant 0 : index
    %87 = vector.load %arg6[%c0_28, %c0_29, %c0_30] : memref<2x1x32xf32, #tpu.memory_space<vmem>>, vector<1x1x32xf32>
    %88 = vector.shape_cast %87 : vector<1x1x32xf32> to vector<1x32xf32>
    %89 = vector.shape_cast %88 : vector<1x32xf32> to vector<1x1x32xf32>
    %90 = vector.broadcast %89 : vector<1x1x32xf32> to vector<1x8x32xf32>
    %91 = arith.addf %86, %90 : vector<1x8x32xf32>
    %92 = vector.shape_cast %91 : vector<1x8x32xf32> to vector<8x32xf32>
    %c1 = arith.constant 1 : index
    %c0_31 = arith.constant 0 : index
    %c0_32 = arith.constant 0 : index
    %93 = vector.load %arg3[%c1, %c0_31, %c0_32] : memref<2x32x32xf32, #tpu.memory_space<vmem>>, vector<1x32x32xf32>
    %94 = vector.shape_cast %93 : vector<1x32x32xf32> to vector<32x32xf32>
    %cst_33 = arith.constant dense<0.000000e+00> : vector<8x32xf32>
    %95 = tpu.matmul %92, %94, %cst_33 {dimension_numbers = #tpu.dot_dimension_numbers<[1], [0], [0], [1], [0, 0, 1, 1], [], []>} : vector<8x32xf32>, vector<32x32xf32>, vector<8x32xf32> -> vector<8x32xf32>
    %c1_34 = arith.constant 1 : index
    %c0_35 = arith.constant 0 : index
    %c0_36 = arith.constant 0 : index
    %96 = vector.load %arg4[%c1_34, %c0_35, %c0_36] : memref<2x32x8xf32, #tpu.memory_space<vmem>>, vector<1x32x8xf32>
    %97 = vector.shape_cast %96 : vector<1x32x8xf32> to vector<32x8xf32>
    %cst_37 = arith.constant dense<0.000000e+00> : vector<8x8xf32>
    %98 = tpu.matmul %92, %97, %cst_37 {dimension_numbers = #tpu.dot_dimension_numbers<[1], [0], [0], [1], [0, 0, 1, 1], [], []>} : vector<8x32xf32>, vector<32x8xf32>, vector<8x8xf32> -> vector<8x8xf32>
    %99 = vector.shape_cast %95 : vector<8x32xf32> to vector<1x8x4x8xf32>
    %100 = tpu.transpose %99, [0, 2, 1, 3] : vector<1x8x4x8xf32> -> vector<1x4x8x8xf32>
    %101 = vector.shape_cast %98 : vector<8x8xf32> to vector<1x8x8xf32>
    %102 = vector.extract_strided_slice %101 {offsets = [0, 0, 0], sizes = [1, 8, 4], strides = [1, 1, 1]} : vector<1x8x8xf32> to vector<1x8x4xf32>
    %103 = tpu.transpose %102, [0, 2, 1] : vector<1x8x4xf32> -> vector<1x4x8xf32>
    %104 = vector.shape_cast %103 : vector<1x4x8xf32> to vector<1x4x8x1xf32>
    %105 = vector.extract_strided_slice %101 {offsets = [0, 0, 4], sizes = [1, 8, 4], strides = [1, 1, 1]} : vector<1x8x8xf32> to vector<1x8x4xf32>
    %106 = tpu.transpose %105, [0, 2, 1] : vector<1x8x4xf32> -> vector<1x4x8xf32>
    %107 = vector.shape_cast %106 : vector<1x4x8xf32> to vector<1x4x1x8xf32>
    %108 = vector.broadcast %104 : vector<1x4x8x1xf32> to vector<1x4x8x8xf32>
    %109 = vector.broadcast %107 : vector<1x4x1x8xf32> to vector<1x4x8x8xf32>
    %110 = arith.addf %108, %109 : vector<1x4x8x8xf32>
    %111 = vector.broadcast %4 : vector<1x1x8x8xf32> to vector<1x4x8x8xf32>
    %112 = arith.addf %110, %111 : vector<1x4x8x8xf32>
    %cst_38 = arith.constant dense<0xFF800000> : vector<1x4x8xf32>
    %113 = vector.multi_reduction <maximumf>, %112, %cst_38 [3] : vector<1x4x8x8xf32> to vector<1x4x8xf32>
    %114 = vector.shape_cast %113 : vector<1x4x8xf32> to vector<1x4x8x1xf32>
    %115 = vector.broadcast %114 : vector<1x4x8x1xf32> to vector<1x4x8x8xf32>
    %116 = arith.subf %112, %115 : vector<1x4x8x8xf32>
    %117 = math.exp %116 : vector<1x4x8x8xf32>
    %cst_39 = arith.constant dense<0.000000e+00> : vector<1x4x8xf32>
    %118 = vector.multi_reduction <add>, %117, %cst_39 [3] : vector<1x4x8x8xf32> to vector<1x4x8xf32>
    %119 = vector.shape_cast %118 : vector<1x4x8xf32> to vector<1x4x8x1xf32>
    %120 = tpu.reciprocal %119 : vector<1x4x8x1xf32> -> vector<1x4x8x1xf32>
    %121 = vector.broadcast %120 : vector<1x4x8x1xf32> to vector<1x4x8x8xf32>
    %122 = arith.mulf %117, %121 : vector<1x4x8x8xf32>
    %123 = vector.broadcast %10 : vector<1x1x8x8xf32> to vector<1x4x8x8xf32>
    %124 = arith.mulf %122, %123 : vector<1x4x8x8xf32>
    %cst_40 = arith.constant dense<0.000000e+00> : vector<1x4x8xf32>
    %125 = vector.multi_reduction <add>, %124, %cst_40 [3] : vector<1x4x8x8xf32> to vector<1x4x8xf32>
    %126 = vector.shape_cast %125 : vector<1x4x8xf32> to vector<1x4x8x1xf32>
    %cst_41 = arith.constant 1.000000e+00 : f32
    %127 = vector.broadcast %cst_41 : f32 to vector<1x4x8x1xf32>
    %128 = arith.subf %127, %126 : vector<1x4x8x1xf32>
    %129 = vector.shape_cast %124 : vector<1x4x8x8xf32> to vector<4x8x8xf32>
    %130 = vector.shape_cast %100 : vector<1x4x8x8xf32> to vector<4x8x8xf32>
    "tpu.trace_start"() <{level = 10 : i32, message = "gij,gjd->gid"}> : () -> ()
    %cst_42 = arith.constant dense<0.000000e+00> : vector<4x8x8xf32>
    %131 = tpu.matmul %129, %130, %cst_42 {dimension_numbers = #tpu.dot_dimension_numbers<[2], [1], [1], [2], [0, 0, 0, 1, 1, 2], [0], [0]>} : vector<4x8x8xf32>, vector<4x8x8xf32>, vector<4x8x8xf32> -> vector<4x8x8xf32>
    "tpu.trace_stop"() : () -> ()
    %132 = vector.shape_cast %131 : vector<4x8x8xf32> to vector<1x4x8x8xf32>
    %cst_43 = arith.constant 0.000000e+00 : f32
    %133 = vector.broadcast %cst_43 : f32 to vector<1x4x8x8xf32>
    %134 = arith.cmpf oge, %132, %133 : vector<1x4x8x8xf32>
    %cst_44 = arith.constant 2.000000e-01 : f32
    %135 = vector.broadcast %cst_44 : f32 to vector<1x4x8x8xf32>
    %136 = arith.mulf %135, %132 : vector<1x4x8x8xf32>
    %137 = arith.select %134, %132, %136 : vector<1x4x8x8xi1>, vector<1x4x8x8xf32>
    %138 = vector.broadcast %128 : vector<1x4x8x1xf32> to vector<1x4x8x8xf32>
    %139 = arith.mulf %138, %100 : vector<1x4x8x8xf32>
    %140 = arith.addf %139, %137 : vector<1x4x8x8xf32>
    %141 = tpu.transpose %140, [0, 2, 1, 3] : vector<1x4x8x8xf32> -> vector<1x8x4x8xf32>
    %142 = vector.shape_cast %141 : vector<1x8x4x8xf32> to vector<1x8x32xf32>
    %143 = arith.addf %91, %142 : vector<1x8x32xf32>
    %cst_45 = arith.constant dense<0.000000e+00> : vector<1x8xf32>
    %144 = vector.multi_reduction <add>, %143, %cst_45 [2] : vector<1x8x32xf32> to vector<1x8xf32>
    %145 = vector.shape_cast %144 : vector<1x8xf32> to vector<1x8x1xf32>
    %cst_46 = arith.constant 3.200000e+01 : f32
    %146 = vector.broadcast %cst_46 : f32 to vector<1x8x1xf32>
    %147 = arith.divf %145, %146 : vector<1x8x1xf32>
    %148 = vector.broadcast %147 : vector<1x8x1xf32> to vector<1x8x32xf32>
    %149 = arith.subf %143, %148 : vector<1x8x32xf32>
    %150 = arith.mulf %149, %149 : vector<1x8x32xf32>
    %cst_47 = arith.constant dense<0.000000e+00> : vector<1x8xf32>
    %151 = vector.multi_reduction <add>, %150, %cst_47 [2] : vector<1x8x32xf32> to vector<1x8xf32>
    %152 = vector.shape_cast %151 : vector<1x8xf32> to vector<1x8x1xf32>
    %cst_48 = arith.constant 3.200000e+01 : f32
    %153 = vector.broadcast %cst_48 : f32 to vector<1x8x1xf32>
    %154 = arith.divf %152, %153 : vector<1x8x1xf32>
    %155 = vector.broadcast %147 : vector<1x8x1xf32> to vector<1x8x32xf32>
    %156 = arith.subf %143, %155 : vector<1x8x32xf32>
    %cst_49 = arith.constant 9.99999974E-6 : f32
    %157 = vector.broadcast %cst_49 : f32 to vector<1x8x1xf32>
    %158 = arith.addf %154, %157 : vector<1x8x1xf32>
    %159 = math.rsqrt %158 : vector<1x8x1xf32>
    %160 = vector.broadcast %159 : vector<1x8x1xf32> to vector<1x8x32xf32>
    %161 = arith.mulf %156, %160 : vector<1x8x32xf32>
    %c1_50 = arith.constant 1 : index
    %c0_51 = arith.constant 0 : index
    %c0_52 = arith.constant 0 : index
    %162 = vector.load %arg5[%c1_50, %c0_51, %c0_52] : memref<2x1x32xf32, #tpu.memory_space<vmem>>, vector<1x1x32xf32>
    %163 = vector.shape_cast %162 : vector<1x1x32xf32> to vector<1x32xf32>
    %164 = vector.shape_cast %163 : vector<1x32xf32> to vector<1x1x32xf32>
    %165 = vector.broadcast %164 : vector<1x1x32xf32> to vector<1x8x32xf32>
    %166 = arith.mulf %161, %165 : vector<1x8x32xf32>
    %c1_53 = arith.constant 1 : index
    %c0_54 = arith.constant 0 : index
    %c0_55 = arith.constant 0 : index
    %167 = vector.load %arg6[%c1_53, %c0_54, %c0_55] : memref<2x1x32xf32, #tpu.memory_space<vmem>>, vector<1x1x32xf32>
    %168 = vector.shape_cast %167 : vector<1x1x32xf32> to vector<1x32xf32>
    %169 = vector.shape_cast %168 : vector<1x32xf32> to vector<1x1x32xf32>
    %170 = vector.broadcast %169 : vector<1x1x32xf32> to vector<1x8x32xf32>
    %171 = arith.addf %166, %170 : vector<1x8x32xf32>
    %c0_56 = arith.constant 0 : index
    %c0_57 = arith.constant 0 : index
    %c0_58 = arith.constant 0 : index
    %172 = vector.load %arg7[%c0_56, %c0_57, %c0_58] : memref<1x8x32xf32, #tpu.memory_space<vmem>>, vector<1x8x32xf32>
    tpu.vector_store %arg7[%c0_56, %c0_57, %c0_58], %171 {strides = array<i32>} : memref<1x8x32xf32, #tpu.memory_space<vmem>>, vector<1x8x32xf32>,
    return
  }
  func.func @transform_0(%arg0: i32) -> (i32, i32, i32) {
    %c0_i32 = arith.constant 0 : i32
    %c0_i32_0 = arith.constant 0 : i32
    %c0_i32_1 = arith.constant 0 : i32
    return %arg0, %c0_i32, %c0_i32_0 : i32, i32, i32
  }
  func.func @transform_1(%arg0: i32) -> (i32, i32, i32) {
    %c0_i32 = arith.constant 0 : i32
    %c0_i32_0 = arith.constant 0 : i32
    %c0_i32_1 = arith.constant 0 : i32
    return %arg0, %c0_i32, %c0_i32_0 : i32, i32, i32
  }
  func.func @transform_2(%arg0: i32) -> (i32, i32, i32) {
    %c0_i32 = arith.constant 0 : i32
    %c0_i32_0 = arith.constant 0 : i32
    %c0_i32_1 = arith.constant 0 : i32
    %c0_i32_2 = arith.constant 0 : i32
    return %c0_i32, %c0_i32_0, %c0_i32_1 : i32, i32, i32
  }
  func.func @transform_3(%arg0: i32) -> (i32, i32, i32) {
    %c0_i32 = arith.constant 0 : i32
    %c0_i32_0 = arith.constant 0 : i32
    %c0_i32_1 = arith.constant 0 : i32
    %c0_i32_2 = arith.constant 0 : i32
    return %c0_i32, %c0_i32_0, %c0_i32_1 : i32, i32, i32
  }
  func.func @transform_4(%arg0: i32) -> (i32, i32, i32) {
    %c0_i32 = arith.constant 0 : i32
    %c0_i32_0 = arith.constant 0 : i32
    %c0_i32_1 = arith.constant 0 : i32
    %c0_i32_2 = arith.constant 0 : i32
    return %c0_i32, %c0_i32_0, %c0_i32_1 : i32, i32, i32
  }
  func.func @transform_5(%arg0: i32) -> (i32, i32, i32) {
    %c0_i32 = arith.constant 0 : i32
    %c0_i32_0 = arith.constant 0 : i32
    %c0_i32_1 = arith.constant 0 : i32
    %c0_i32_2 = arith.constant 0 : i32
    return %c0_i32, %c0_i32_0, %c0_i32_1 : i32, i32, i32
  }
  func.func @transform_6(%arg0: i32) -> (i32, i32, i32) {
    %c0_i32 = arith.constant 0 : i32
    %c0_i32_0 = arith.constant 0 : i32
    %c0_i32_1 = arith.constant 0 : i32
    return %arg0, %c0_i32, %c0_i32_0 : i32, i32, i32
  }
}

module attributes {stable_mosaic.version = 11 : i64} {
  func.func @gat_encoder_kernel(%arg0: i32, %arg1: memref<1x8x32xf32, #tpu.memory_space<vmem>>, %arg2: memref<1x8x8xi8, #tpu.memory_space<vmem>>, %arg3: memref<2x32x32xf32, #tpu.memory_space<vmem>>, %arg4: memref<2x32x8xf32, #tpu.memory_space<vmem>>, %arg5: memref<2x1x32xf32, #tpu.memory_space<vmem>>, %arg6: memref<2x1x32xf32, #tpu.memory_space<vmem>>, %arg7: memref<1x8x32xf32, #tpu.memory_space<vmem>>) attributes {dimension_semantics = [#tpu.dimension_semantics<parallel>], iteration_bounds = array<i64: 2>, scalar_prefetch = 0 : i64, scratch_operands = 0 : i64, tpu.core_type = #tpu.core_type<tc>, window_params = [{transform_indices = @transform_0, window_bounds = array<i64: 1, 8, 32>}, {transform_indices = @transform_1, window_bounds = array<i64: 1, 8, 8>}, {pipeline_mode = #tpu.pipeline_mode<synchronous>, transform_indices = @transform_2, window_bounds = array<i64: 2, 32, 32>}, {pipeline_mode = #tpu.pipeline_mode<synchronous>, transform_indices = @transform_3, window_bounds = array<i64: 2, 32, 8>}, {pipeline_mode = #tpu.pipeline_mode<synchronous>, transform_indices = @transform_4, window_bounds = array<i64: 2, 1, 32>}, {pipeline_mode = #tpu.pipeline_mode<synchronous>, transform_indices = @transform_5, window_bounds = array<i64: 2, 1, 32>}, {transform_indices = @transform_6, window_bounds = array<i64: 1, 8, 32>}]} {
    %c0 = arith.constant 0 : index
    %c0_0 = arith.constant 0 : index
    %c0_1 = arith.constant 0 : index
    %0 = vector.load %arg2[%c0, %c0_0, %c0_1] : memref<1x8x8xi8, #tpu.memory_space<vmem>>, vector<1x8x8xi8>
    %1 = arith.sitofp %0 : vector<1x8x8xi8> to vector<1x8x8xf32>
    %cst = arith.constant -1.000000e+30 : f32
    %2 = vector.broadcast %cst : f32 to vector<1x8x8xf32>
    %3 = arith.mulf %1, %2 : vector<1x8x8xf32>
    %4 = vector.shape_cast %3 : vector<1x8x8xf32> to vector<1x1x8x8xf32>
    %5 = tpu.iota {dimensions = array<i32: 0>} : vector<8x8xi32>
    %6 = tpu.iota {dimensions = array<i32: 1>} : vector<8x8xi32>
    %7 = arith.cmpi ne, %5, %6 : vector<8x8xi32>
    %8 = arith.extui %7 : vector<8x8xi1> to vector<8x8xi32>
    %9 = arith.sitofp %8 : vector<8x8xi32> to vector<8x8xf32>
    %10 = vector.shape_cast %9 : vector<8x8xf32> to vector<1x1x8x8xf32>
    %c0_2 = arith.constant 0 : index
    %c0_3 = arith.constant 0 : index
    %c0_4 = arith.constant 0 : index
    %11 = vector.load %arg1[%c0_2, %c0_3, %c0_4] : memref<1x8x32xf32, #tpu.memory_space<vmem>>, vector<1x8x32xf32>
    %12 = vector.shape_cast %11 : vector<1x8x32xf32> to vector<8x32xf32>
    %c0_5 = arith.constant 0 : index
    %c0_6 = arith.constant 0 : index
    %c0_7 = arith.constant 0 : index
    %13 = vector.load %arg3[%c0_5, %c0_6, %c0_7] : memref<2x32x32xf32, #tpu.memory_space<vmem>>, vector<1x32x32xf32>
    %14 = vector.shape_cast %13 : vector<1x32x32xf32> to vector<32x32xf32>
    %cst_8 = arith.constant dense<0.000000e+00> : vector<8x32xf32>
    %15 = tpu.matmul %12, %14, %cst_8 {dimension_numbers = #tpu.dot_dimension_numbers<[1], [0], [0], [1], [0, 0, 1, 1], [], []>} : vector<8x32xf32>, vector<32x32xf32>, vector<8x32xf32> -> vector<8x32xf32>
    %c0_9 = arith.constant 0 : index
    %c0_10 = arith.constant 0 : index
    %c0_11 = arith.constant 0 : index
    %16 = vector.load %arg4[%c0_9, %c0_10, %c0_11] : memref<2x32x8xf32, #tpu.memory_space<vmem>>, vector<1x32x8xf32>
    %17 = vector.shape_cast %16 : vector<1x32x8xf32> to vector<32x8xf32>
    %cst_12 = arith.constant dense<0.000000e+00> : vector<8x8xf32>
    %18 = tpu.matmul %12, %17, %cst_12 {dimension_numbers = #tpu.dot_dimension_numbers<[1], [0], [0], [1], [0, 0, 1, 1], [], []>} : vector<8x32xf32>, vector<32x8xf32>, vector<8x8xf32> -> vector<8x8xf32>
    %19 = vector.shape_cast %15 : vector<8x32xf32> to vector<1x8x4x8xf32>
    %20 = tpu.transpose %19, [0, 2, 1, 3] : vector<1x8x4x8xf32> -> vector<1x4x8x8xf32>
    %21 = vector.shape_cast %18 : vector<8x8xf32> to vector<1x8x8xf32>
    %22 = vector.extract_strided_slice %21 {offsets = [0, 0, 0], sizes = [1, 8, 4], strides = [1, 1, 1]} : vector<1x8x8xf32> to vector<1x8x4xf32>
    %23 = tpu.transpose %22, [0, 2, 1] : vector<1x8x4xf32> -> vector<1x4x8xf32>
    %24 = vector.shape_cast %23 : vector<1x4x8xf32> to vector<1x4x8x1xf32>
    %25 = vector.extract_strided_slice %21 {offsets = [0, 0, 4], sizes = [1, 8, 4], strides = [1, 1, 1]} : vector<1x8x8xf32> to vector<1x8x4xf32>
    %26 = tpu.transpose %25, [0, 2, 1] : vector<1x8x4xf32> -> vector<1x4x8xf32>
    %27 = vector.shape_cast %26 : vector<1x4x8xf32> to vector<1x4x1x8xf32>
    %28 = vector.broadcast %24 : vector<1x4x8x1xf32> to vector<1x4x8x8xf32>
    %29 = vector.broadcast %27 : vector<1x4x1x8xf32> to vector<1x4x8x8xf32>
    %30 = arith.addf %28, %29 : vector<1x4x8x8xf32>
    %31 = vector.broadcast %4 : vector<1x1x8x8xf32> to vector<1x4x8x8xf32>
    %32 = arith.addf %30, %31 : vector<1x4x8x8xf32>
    %cst_13 = arith.constant dense<0xFF800000> : vector<1x4x8xf32>
    %33 = vector.multi_reduction <maximumf>, %32, %cst_13 [3] : vector<1x4x8x8xf32> to vector<1x4x8xf32>
    %34 = vector.shape_cast %33 : vector<1x4x8xf32> to vector<1x4x8x1xf32>
    %35 = vector.broadcast %34 : vector<1x4x8x1xf32> to vector<1x4x8x8xf32>
    %36 = arith.subf %32, %35 : vector<1x4x8x8xf32>
    %37 = math.exp %36 : vector<1x4x8x8xf32>
    %cst_14 = arith.constant dense<0.000000e+00> : vector<1x4x8xf32>
    %38 = vector.multi_reduction <add>, %37, %cst_14 [3] : vector<1x4x8x8xf32> to vector<1x4x8xf32>
    %39 = vector.shape_cast %38 : vector<1x4x8xf32> to vector<1x4x8x1xf32>
    %40 = tpu.reciprocal %39 : vector<1x4x8x1xf32> -> vector<1x4x8x1xf32>
    %41 = vector.broadcast %40 : vector<1x4x8x1xf32> to vector<1x4x8x8xf32>
    %42 = arith.mulf %37, %41 : vector<1x4x8x8xf32>
    %43 = vector.broadcast %10 : vector<1x1x8x8xf32> to vector<1x4x8x8xf32>
    %44 = arith.mulf %42, %43 : vector<1x4x8x8xf32>
    %cst_15 = arith.constant dense<0.000000e+00> : vector<1x4x8xf32>
    %45 = vector.multi_reduction <add>, %44, %cst_15 [3] : vector<1x4x8x8xf32> to vector<1x4x8xf32>
    %46 = vector.shape_cast %45 : vector<1x4x8xf32> to vector<1x4x8x1xf32>
    %cst_16 = arith.constant 1.000000e+00 : f32
    %47 = vector.broadcast %cst_16 : f32 to vector<1x4x8x1xf32>
    %48 = arith.subf %47, %46 : vector<1x4x8x1xf32>
    %49 = vector.shape_cast %44 : vector<1x4x8x8xf32> to vector<4x8x8xf32>
    %50 = vector.shape_cast %20 : vector<1x4x8x8xf32> to vector<4x8x8xf32>
    "tpu.trace_start"() <{level = 10 : i32, message = "gij,gjd->gid"}> : () -> ()
    %cst_17 = arith.constant dense<0.000000e+00> : vector<4x8x8xf32>
    %51 = tpu.matmul %49, %50, %cst_17 {dimension_numbers = #tpu.dot_dimension_numbers<[2], [1], [1], [2], [0, 0, 0, 1, 1, 2], [0], [0]>} : vector<4x8x8xf32>, vector<4x8x8xf32>, vector<4x8x8xf32> -> vector<4x8x8xf32>
    "tpu.trace_stop"() : () -> ()
    %52 = vector.shape_cast %51 : vector<4x8x8xf32> to vector<1x4x8x8xf32>
    %cst_18 = arith.constant 0.000000e+00 : f32
    %53 = vector.broadcast %cst_18 : f32 to vector<1x4x8x8xf32>
    %54 = arith.cmpf oge, %52, %53 : vector<1x4x8x8xf32>
    %cst_19 = arith.constant 2.000000e-01 : f32
    %55 = vector.broadcast %cst_19 : f32 to vector<1x4x8x8xf32>
    %56 = arith.mulf %55, %52 : vector<1x4x8x8xf32>
    %57 = arith.select %54, %52, %56 : vector<1x4x8x8xi1>, vector<1x4x8x8xf32>
    %58 = vector.broadcast %48 : vector<1x4x8x1xf32> to vector<1x4x8x8xf32>
    %59 = arith.mulf %58, %20 : vector<1x4x8x8xf32>
    %60 = arith.addf %59, %57 : vector<1x4x8x8xf32>
    %61 = tpu.transpose %60, [0, 2, 1, 3] : vector<1x4x8x8xf32> -> vector<1x8x4x8xf32>
    %62 = vector.shape_cast %61 : vector<1x8x4x8xf32> to vector<1x8x32xf32>
    %63 = arith.addf %11, %62 : vector<1x8x32xf32>
    %cst_20 = arith.constant dense<0.000000e+00> : vector<1x8xf32>
    %64 = vector.multi_reduction <add>, %63, %cst_20 [2] : vector<1x8x32xf32> to vector<1x8xf32>
    %65 = vector.shape_cast %64 : vector<1x8xf32> to vector<1x8x1xf32>
    %cst_21 = arith.constant 3.200000e+01 : f32
    %66 = vector.broadcast %cst_21 : f32 to vector<1x8x1xf32>
    %67 = arith.divf %65, %66 : vector<1x8x1xf32>
    %68 = vector.broadcast %67 : vector<1x8x1xf32> to vector<1x8x32xf32>
    %69 = arith.subf %63, %68 : vector<1x8x32xf32>
    %70 = arith.mulf %69, %69 : vector<1x8x32xf32>
    %cst_22 = arith.constant dense<0.000000e+00> : vector<1x8xf32>
    %71 = vector.multi_reduction <add>, %70, %cst_22 [2] : vector<1x8x32xf32> to vector<1x8xf32>
    %72 = vector.shape_cast %71 : vector<1x8xf32> to vector<1x8x1xf32>
    %cst_23 = arith.constant 3.200000e+01 : f32
    %73 = vector.broadcast %cst_23 : f32 to vector<1x8x1xf32>
    %74 = arith.divf %72, %73 : vector<1x8x1xf32>
    %75 = vector.broadcast %67 : vector<1x8x1xf32> to vector<1x8x32xf32>
    %76 = arith.subf %63, %75 : vector<1x8x32xf32>
    %cst_24 = arith.constant 9.99999974E-6 : f32
    %77 = vector.broadcast %cst_24 : f32 to vector<1x8x1xf32>
    %78 = arith.addf %74, %77 : vector<1x8x1xf32>
    %79 = math.rsqrt %78 : vector<1x8x1xf32>
    %80 = vector.broadcast %79 : vector<1x8x1xf32> to vector<1x8x32xf32>
    %81 = arith.mulf %76, %80 : vector<1x8x32xf32>
    %c0_25 = arith.constant 0 : index
    %c0_26 = arith.constant 0 : index
    %c0_27 = arith.constant 0 : index
    %82 = vector.load %arg5[%c0_25, %c0_26, %c0_27] : memref<2x1x32xf32, #tpu.memory_space<vmem>>, vector<1x1x32xf32>
    %83 = vector.shape_cast %82 : vector<1x1x32xf32> to vector<1x32xf32>
    %84 = vector.shape_cast %83 : vector<1x32xf32> to vector<1x1x32xf32>
    %85 = vector.broadcast %84 : vector<1x1x32xf32> to vector<1x8x32xf32>
    %86 = arith.mulf %81, %85 : vector<1x8x32xf32>
    %c0_28 = arith.constant 0 : index
    %c0_29 = arith.constant 0 : index
    %c0_30 = arith.constant 0 : index
    %87 = vector.load %arg6[%c0_28, %c0_29, %c0_30] : memref<2x1x32xf32, #tpu.memory_space<vmem>>, vector<1x1x32xf32>
    %88 = vector.shape_cast %87 : vector<1x1x32xf32> to vector<1x32xf32>
    %89 = vector.shape_cast %88 : vector<1x32xf32> to vector<1x1x32xf32>
    %90 = vector.broadcast %89 : vector<1x1x32xf32> to vector<1x8x32xf32>
    %91 = arith.addf %86, %90 : vector<1x8x32xf32>
    %92 = vector.shape_cast %91 : vector<1x8x32xf32> to vector<8x32xf32>
    %c1 = arith.constant 1 : index
    %c0_31 = arith.constant 0 : index
    %c0_32 = arith.constant 0 : index
    %93 = vector.load %arg3[%c1, %c0_31, %c0_32] : memref<2x32x32xf32, #tpu.memory_space<vmem>>, vector<1x32x32xf32>
    %94 = vector.shape_cast %93 : vector<1x32x32xf32> to vector<32x32xf32>
    %cst_33 = arith.constant dense<0.000000e+00> : vector<8x32xf32>
    %95 = tpu.matmul %92, %94, %cst_33 {dimension_numbers = #tpu.dot_dimension_numbers<[1], [0], [0], [1], [0, 0, 1, 1], [], []>} : vector<8x32xf32>, vector<32x32xf32>, vector<8x32xf32> -> vector<8x32xf32>
    %c1_34 = arith.constant 1 : index
    %c0_35 = arith.constant 0 : index
    %c0_36 = arith.constant 0 : index
    %96 = vector.load %arg4[%c1_34, %c0_35, %c0_36] : memref<2x32x8xf32, #tpu.memory_space<vmem>>, vector<1x32x8xf32>
    %97 = vector.shape_cast %96 : vector<1x32x8xf32> to vector<32x8xf32>
    %cst_37 = arith.constant dense<0.000000e+00> : vector<8x8xf32>
    %98 = tpu.matmul %92, %97, %cst_37 {dimension_numbers = #tpu.dot_dimension_numbers<[1], [0], [0], [1], [0, 0, 1, 1], [], []>} : vector<8x32xf32>, vector<32x8xf32>, vector<8x8xf32> -> vector<8x8xf32>
    %99 = vector.shape_cast %95 : vector<8x32xf32> to vector<1x8x4x8xf32>
    %100 = tpu.transpose %99, [0, 2, 1, 3] : vector<1x8x4x8xf32> -> vector<1x4x8x8xf32>
    %101 = vector.shape_cast %98 : vector<8x8xf32> to vector<1x8x8xf32>
    %102 = vector.extract_strided_slice %101 {offsets = [0, 0, 0], sizes = [1, 8, 4], strides = [1, 1, 1]} : vector<1x8x8xf32> to vector<1x8x4xf32>
    %103 = tpu.transpose %102, [0, 2, 1] : vector<1x8x4xf32> -> vector<1x4x8xf32>
    %104 = vector.shape_cast %103 : vector<1x4x8xf32> to vector<1x4x8x1xf32>
    %105 = vector.extract_strided_slice %101 {offsets = [0, 0, 4], sizes = [1, 8, 4], strides = [1, 1, 1]} : vector<1x8x8xf32> to vector<1x8x4xf32>
    %106 = tpu.transpose %105, [0, 2, 1] : vector<1x8x4xf32> -> vector<1x4x8xf32>
    %107 = vector.shape_cast %106 : vector<1x4x8xf32> to vector<1x4x1x8xf32>
    %108 = vector.broadcast %104 : vector<1x4x8x1xf32> to vector<1x4x8x8xf32>
    %109 = vector.broadcast %107 : vector<1x4x1x8xf32> to vector<1x4x8x8xf32>
    %110 = arith.addf %108, %109 : vector<1x4x8x8xf32>
    %111 = vector.broadcast %4 : vector<1x1x8x8xf32> to vector<1x4x8x8xf32>
    %112 = arith.addf %110, %111 : vector<1x4x8x8xf32>
    %cst_38 = arith.constant dense<0xFF800000> : vector<1x4x8xf32>
    %113 = vector.multi_reduction <maximumf>, %112, %cst_38 [3] : vector<1x4x8x8xf32> to vector<1x4x8xf32>
    %114 = vector.shape_cast %113 : vector<1x4x8xf32> to vector<1x4x8x1xf32>
    %115 = vector.broadcast %114 : vector<1x4x8x1xf32> to vector<1x4x8x8xf32>
    %116 = arith.subf %112, %115 : vector<1x4x8x8xf32>
    %117 = math.exp %116 : vector<1x4x8x8xf32>
    %cst_39 = arith.constant dense<0.000000e+00> : vector<1x4x8xf32>
    %118 = vector.multi_reduction <add>, %117, %cst_39 [3] : vector<1x4x8x8xf32> to vector<1x4x8xf32>
    %119 = vector.shape_cast %118 : vector<1x4x8xf32> to vector<1x4x8x1xf32>
    %120 = tpu.reciprocal %119 : vector<1x4x8x1xf32> -> vector<1x4x8x1xf32>
    %121 = vector.broadcast %120 : vector<1x4x8x1xf32> to vector<1x4x8x8xf32>
    %122 = arith.mulf %117, %121 : vector<1x4x8x8xf32>
    %123 = vector.broadcast %10 : vector<1x1x8x8xf32> to vector<1x4x8x8xf32>
    %124 = arith.mulf %122, %123 : vector<1x4x8x8xf32>
    %cst_40 = arith.constant dense<0.000000e+00> : vector<1x4x8xf32>
    %125 = vector.multi_reduction <add>, %124, %cst_40 [3] : vector<1x4x8x8xf32> to vector<1x4x8xf32>
    %126 = vector.shape_cast %125 : vector<1x4x8xf32> to vector<1x4x8x1xf32>
    %cst_41 = arith.constant 1.000000e+00 : f32
    %127 = vector.broadcast %cst_41 : f32 to vector<1x4x8x1xf32>
    %128 = arith.subf %127, %126 : vector<1x4x8x1xf32>
    %129 = vector.shape_cast %124 : vector<1x4x8x8xf32> to vector<4x8x8xf32>
    %130 = vector.shape_cast %100 : vector<1x4x8x8xf32> to vector<4x8x8xf32>
    "tpu.trace_start"() <{level = 10 : i32, message = "gij,gjd->gid"}> : () -> ()
    %cst_42 = arith.constant dense<0.000000e+00> : vector<4x8x8xf32>
    %131 = tpu.matmul %129, %130, %cst_42 {dimension_numbers = #tpu.dot_dimension_numbers<[2], [1], [1], [2], [0, 0, 0, 1, 1, 2], [0], [0]>} : vector<4x8x8xf32>, vector<4x8x8xf32>, vector<4x8x8xf32> -> vector<4x8x8xf32>
    "tpu.trace_stop"() : () -> ()
    %132 = vector.shape_cast %131 : vector<4x8x8xf32> to vector<1x4x8x8xf32>
    %cst_43 = arith.constant 0.000000e+00 : f32
    %133 = vector.broadcast %cst_43 : f32 to vector<1x4x8x8xf32>
    %134 = arith.cmpf oge, %132, %133 : vector<1x4x8x8xf32>
    %cst_44 = arith.constant 2.000000e-01 : f32
    %135 = vector.broadcast %cst_44 : f32 to vector<1x4x8x8xf32>
    %136 = arith.mulf %135, %132 : vector<1x4x8x8xf32>
    %137 = arith.select %134, %132, %136 : vector<1x4x8x8xi1>, vector<1x4x8x8xf32>
    %138 = vector.broadcast %128 : vector<1x4x8x1xf32> to vector<1x4x8x8xf32>
    %139 = arith.mulf %138, %100 : vector<1x4x8x8xf32>
    %140 = arith.addf %139, %137 : vector<1x4x8x8xf32>
    %141 = tpu.transpose %140, [0, 2, 1, 3] : vector<1x4x8x8xf32> -> vector<1x8x4x8xf32>
    %142 = vector.shape_cast %141 : vector<1x8x4x8xf32> to vector<1x8x32xf32>
    %143 = arith.addf %91, %142 : vector<1x8x32xf32>
    %cst_45 = arith.constant dense<0.000000e+00> : vector<1x8xf32>
    %144 = vector.multi_reduction <add>, %143, %cst_45 [2] : vector<1x8x32xf32> to vector<1x8xf32>
    %145 = vector.shape_cast %144 : vector<1x8xf32> to vector<1x8x1xf32>
    %cst_46 = arith.constant 3.200000e+01 : f32
    %146 = vector.broadcast %cst_46 : f32 to vector<1x8x1xf32>
    %147 = arith.divf %145, %146 : vector<1x8x1xf32>
    %148 = vector.broadcast %147 : vector<1x8x1xf32> to vector<1x8x32xf32>
    %149 = arith.subf %143, %148 : vector<1x8x32xf32>
    %150 = arith.mulf %149, %149 : vector<1x8x32xf32>
    %cst_47 = arith.constant dense<0.000000e+00> : vector<1x8xf32>
    %151 = vector.multi_reduction <add>, %150, %cst_47 [2] : vector<1x8x32xf32> to vector<1x8xf32>
    %152 = vector.shape_cast %151 : vector<1x8xf32> to vector<1x8x1xf32>
    %cst_48 = arith.constant 3.200000e+01 : f32
    %153 = vector.broadcast %cst_48 : f32 to vector<1x8x1xf32>
    %154 = arith.divf %152, %153 : vector<1x8x1xf32>
    %155 = vector.broadcast %147 : vector<1x8x1xf32> to vector<1x8x32xf32>
    %156 = arith.subf %143, %155 : vector<1x8x32xf32>
    %cst_49 = arith.constant 9.99999974E-6 : f32
    %157 = vector.broadcast %cst_49 : f32 to vector<1x8x1xf32>
    %158 = arith.addf %154, %157 : vector<1x8x1xf32>
    %159 = math.rsqrt %158 : vector<1x8x1xf32>
    %160 = vector.broadcast %159 : vector<1x8x1xf32> to vector<1x8x32xf32>
    %161 = arith.mulf %156, %160 : vector<1x8x32xf32>
    %c1_50 = arith.constant 1 : index
    %c0_51 = arith.constant 0 : index
    %c0_52 = arith.constant 0 : index
    %162 = vector.load %arg5[%c1_50, %c0_51, %c0_52] : memref<2x1x32xf32, #tpu.memory_space<vmem>>, vector<1x1x32xf32>
    %163 = vector.shape_cast %162 : vector<1x1x32xf32> to vector<1x32xf32>
    %164 = vector.shape_cast %163 : vector<1x32xf32> to vector<1x1x32xf32>
    %165 = vector.broadcast %164 : vector<1x1x32xf32> to vector<1x8x32xf32>
    %166 = arith.mulf %161, %165 : vector<1x8x32xf32>
    %c1_53 = arith.constant 1 : index
    %c0_54 = arith.constant 0 : index
    %c0_55 = arith.constant 0 : index
    %167 = vector.load %arg6[%c1_53, %c0_54, %c0_55] : memref<2x1x32xf32, #tpu.memory_space<vmem>>, vector<1x1x32xf32>
    %168 = vector.shape_cast %167 : vector<1x1x32xf32> to vector<1x32xf32>
    %169 = vector.shape_cast %168 : vector<1x32xf32> to vector<1x1x32xf32>
    %170 = vector.broadcast %169 : vector<1x1x32xf32> to vector<1x8x32xf32>
    %171 = arith.addf %166, %170 : vector<1x8x32xf32>
    %c0_56 = arith.constant 0 : index
    %c0_57 = arith.constant 0 : index
    %c0_58 = arith.constant 0 : index
    %172 = vector.load %arg7[%c0_56, %c0_57, %c0_58] : memref<1x8x32xf32, #tpu.memory_space<vmem>>, vector<1x8x32xf32>
    tpu.vector_store %arg7[%c0_56, %c0_57, %c0_58], %171 {strides = array<i32>} : memref<1x8x32xf32, #tpu.memory_space<vmem>>, vector<1x8x32xf32>,
    return
  }
  func.func @transform_0(%arg0: i32) -> (i32, i32, i32) {
    %c0_i32 = arith.constant 0 : i32
    %c0_i32_0 = arith.constant 0 : i32
    %c0_i32_1 = arith.constant 0 : i32
    return %arg0, %c0_i32, %c0_i32_0 : i32, i32, i32
  }
  func.func @transform_1(%arg0: i32) -> (i32, i32, i32) {
    %c0_i32 = arith.constant 0 : i32
    %c0_i32_0 = arith.constant 0 : i32
    %c0_i32_1 = arith.constant 0 : i32
    return %arg0, %c0_i32, %c0_i32_0 : i32, i32, i32
  }
  func.func @transform_2(%arg0: i32) -> (i32, i32, i32) {
    %c0_i32 = arith.constant 0 : i32
    %c0_i32_0 = arith.constant 0 : i32
    %c0_i32_1 = arith.constant 0 : i32
    %c0_i32_2 = arith.constant 0 : i32
    return %c0_i32, %c0_i32_0, %c0_i32_1 : i32, i32, i32
  }
  func.func @transform_3(%arg0: i32) -> (i32, i32, i32) {
    %c0_i32 = arith.constant 0 : i32
    %c0_i32_0 = arith.constant 0 : i32
    %c0_i32_1 = arith.constant 0 : i32
    %c0_i32_2 = arith.constant 0 : i32
    return %c0_i32, %c0_i32_0, %c0_i32_1 : i32, i32, i32
  }
  func.func @transform_4(%arg0: i32) -> (i32, i32, i32) {
    %c0_i32 = arith.constant 0 : i32
    %c0_i32_0 = arith.constant 0 : i32
    %c0_i32_1 = arith.constant 0 : i32
    %c0_i32_2 = arith.constant 0 : i32
    return %c0_i32, %c0_i32_0, %c0_i32_1 : i32, i32, i32
  }
  func.func @transform_5(%arg0: i32) -> (i32, i32, i32) {
    %c0_i32 = arith.constant 0 : i32
    %c0_i32_0 = arith.constant 0 : i32
    %c0_i32_1 = arith.constant 0 : i32
    %c0_i32_2 = arith.constant 0 : i32
    return %c0_i32, %c0_i32_0, %c0_i32_1 : i32, i32, i32
  }
  func.func @transform_6(%arg0: i32) -> (i32, i32, i32) {
    %c0_i32 = arith.constant 0 : i32
    %c0_i32_0 = arith.constant 0 : i32
    %c0_i32_1 = arith.constant 0 : i32
    return %arg0, %c0_i32, %c0_i32_0 : i32, i32, i32
  }
}

</mosaic_0001>

<llo_original>
// kernel: tpu_custom_call.1
$region0: #{tpu_custom_call.1}
  #allocation0 [shape = 'u32[]', space=smem, size = 0x4, offset = 0x4, fixed_abs, tag = 'smem constant byte address 0x4 - core index']
  #allocation1 [shape = 'u32[144,128]{1,0:T(1,128)}', space=vmem, size = 0x12000, scoped, tag = 'internal scratch']
  %s0 = inlined_call_operand.vmem [shape: f32[2,8,32], index: 0, kind: input, shape index: {}]
  %s1 = inlined_call_operand.vmem [shape: s8[2,8,8], index: 1, kind: input, shape index: {}]
  %s2 = inlined_call_operand.vmem [shape: f32[2,32,32], index: 2, kind: input, shape index: {}]
  %s3 = inlined_call_operand.vmem [shape: f32[2,32,8], index: 3, kind: input, shape index: {}]
  %s4 = inlined_call_operand.vmem [shape: f32[2,1,32], index: 4, kind: input, shape index: {}]
  %s5 = inlined_call_operand.vmem [shape: f32[2,1,32], index: 5, kind: input, shape index: {}]
  %s6 = inlined_call_operand.hbm [shape: f32[2,8,32], index: 6, kind: output, shape index: {}]
  %s7 = sld [smem:[#allocation0]]
  $region57: #{tpu_custom_call.1} parent=0
    _
  %s9 = ssub.s32 1, %s7
  %s10 = scalar_select 0, %s9, %s7
  $region1: #{tpu_custom_call.1} parent=0
    #allocation2 [shape = 'u8[8192]{0}', space=vmem, size = 0x2000, scoped, tag = 'output window, operand 0']
    #allocation3 [shape = 's32[2]{0}', space=sflag, size = 0x8, scoped, tag = 'scoped memory for tpu_custom_call.1']
    %11 = vsyncpa [#allocation3], 0
    %s12 = scalar_lea.sflag [#allocation3], 1
    %13 = vsyncpa %s12, 0
    loop: start=0, step=1, limit=4
    $region2: #{tpu_custom_call.1} parent=1 // loop_pre_header
      _
    $region3: #{tpu_custom_call.1} parent=1 // loop_header
      %s15 = sphi 0, %s19
      %p16 = scmp.ge.s32.totalorder %s15, 4
      %s25 = sphi 0, %s27
      %s28 = sphi 0, %s25
      %s29 = sphi 0, %s28
      %s45 = sphi 0, %s29
      %s51 = sphi 0, %s53
      %s54 = sphi 0, %s51
      %s55 = sphi 0, %s54
      %s71 = sphi 0, %s55
      %s75 = sphi 0, %s75
      %s77 = sphi 0, %s75
      %s78 = sphi 0, %s77
      %s92 = sphi 0, %s78
      %s96 = sphi 0, %s96
      %s98 = sphi 0, %s96
      %s99 = sphi 0, %s98
      %s113 = sphi 0, %s99
      %s117 = sphi 0, %s117
      %s119 = sphi 0, %s117
      %s120 = sphi 0, %s119
      %s134 = sphi 0, %s120
      %s138 = sphi 0, %s138
      %s140 = sphi 0, %s138
      %s141 = sphi 0, %s140
      %s155 = sphi 0, %s141
      %s161 = sphi 0, %s163
      %s164 = sphi 0, %s161
      %s165 = sphi 0, %s164
      %s181 = sphi 0, %s165
    $region4: #{tpu_custom_call.1} parent=1 // loop_header_branch
      %18 = sbr.rel (%p16) target = $region8
    $region5: #{tpu_custom_call.1} parent=1 // loop_body
      %s20 = ssub.s32 %s15, 1
      %s21 = ssub.s32 %s15, 2
      %s22 = sadd.s32 %s15, 1
      %s23 = ssub.s32 %s15, %s22
      %p24 = scmp.eq.s32.totalorder %s23, 0
      %s26 = sadd.s32 %s25, 1
      %s27 = scalar_select %p24, %s25, %s26
      %p30 = pneg %p24
      %p31 = scmp.eq.s32.totalorder %s15, 1
      %p32 = por %p30, %p31
      %p33 = scmp.ne.s32.totalorder %s25, %s28
      %p34 = scmp.eq.s32.totalorder %s15, 0
      %p35 = por %p33, %p34
      %p36 = scmp.ne.s32.totalorder %s25, %s28
      %p37 = scmp.eq.s32.totalorder %s20, 1
      %p38 = por %p36, %p37
      %p39 = scmp.ne.s32.totalorder %s28, %s29
      %p40 = scmp.eq.s32.totalorder %s20, 0
      %p41 = por %p39, %p40
      %p42 = scmp.ne.s32.totalorder %s28, %s29
      %p43 = scmp.eq.s32.totalorder %s21, 1
      %p44 = por %p42, %p43
      %p46 = scmp.ne.s32.totalorder %s29, %s45
      %p47 = scmp.eq.s32.totalorder %s21, 0
      %p48 = por %p46, %p47
      %s49 = ssub.s32 %s15, %s22
      %p50 = scmp.eq.s32.totalorder %s49, 0
      %s52 = sadd.s32 %s51, 1
      %s53 = scalar_select %p50, %s51, %s52
      %p56 = pneg %p50
      %p57 = scmp.eq.s32.totalorder %s15, 1
      %p58 = por %p56, %p57
      %p59 = scmp.ne.s32.totalorder %s51, %s54
      %p60 = scmp.eq.s32.totalorder %s15, 0
      %p61 = por %p59, %p60
      %p62 = scmp.ne.s32.totalorder %s51, %s54
      %p63 = scmp.eq.s32.totalorder %s20, 1
      %p64 = por %p62, %p63
      %p65 = scmp.ne.s32.totalorder %s54, %s55
      %p66 = scmp.eq.s32.totalorder %s20, 0
      %p67 = por %p65, %p66
      %p68 = scmp.ne.s32.totalorder %s54, %s55
      %p69 = scmp.eq.s32.totalorder %s21, 1
      %p70 = por %p68, %p69
      %p72 = scmp.ne.s32.totalorder %s55, %s71
      %p73 = scmp.eq.s32.totalorder %s21, 0
      %p74 = por %p72, %p73
      %s76 = sadd.s32 %s75, 1
      %p79 = scmp.eq.s32.totalorder %s15, 1
      %p80 = scmp.ne.s32.totalorder %s75, %s77
      %p81 = scmp.eq.s32.totalorder %s15, 0
      %p82 = por %p80, %p81
      %p83 = scmp.ne.s32.totalorder %s75, %s77
      %p84 = scmp.eq.s32.totalorder %s20, 1
      %p85 = por %p83, %p84
      %p86 = scmp.ne.s32.totalorder %s77, %s78
      %p87 = scmp.eq.s32.totalorder %s20, 0
      %p88 = por %p86, %p87
      %p89 = scmp.ne.s32.totalorder %s77, %s78
      %p90 = scmp.eq.s32.totalorder %s21, 1
      %p91 = por %p89, %p90
      %p93 = scmp.ne.s32.totalorder %s78, %s92
      %p94 = scmp.eq.s32.totalorder %s21, 0
      %p95 = por %p93, %p94
      %s97 = sadd.s32 %s96, 1
      %p100 = scmp.eq.s32.totalorder %s15, 1
      %p101 = scmp.ne.s32.totalorder %s96, %s98
      %p102 = scmp.eq.s32.totalorder %s15, 0
      %p103 = por %p101, %p102
      %p104 = scmp.ne.s32.totalorder %s96, %s98
      %p105 = scmp.eq.s32.totalorder %s20, 1
      %p106 = por %p104, %p105
      %p107 = scmp.ne.s32.totalorder %s98, %s99
      %p108 = scmp.eq.s32.totalorder %s20, 0
      %p109 = por %p107, %p108
      %p110 = scmp.ne.s32.totalorder %s98, %s99
      %p111 = scmp.eq.s32.totalorder %s21, 1
      %p112 = por %p110, %p111
      %p114 = scmp.ne.s32.totalorder %s99, %s113
      %p115 = scmp.eq.s32.totalorder %s21, 0
      %p116 = por %p114, %p115
      %s118 = sadd.s32 %s117, 1
      %p121 = scmp.eq.s32.totalorder %s15, 1
      %p122 = scmp.ne.s32.totalorder %s117, %s119
      %p123 = scmp.eq.s32.totalorder %s15, 0
      %p124 = por %p122, %p123
      %p125 = scmp.ne.s32.totalorder %s117, %s119
      %p126 = scmp.eq.s32.totalorder %s20, 1
      %p127 = por %p125, %p126
      %p128 = scmp.ne.s32.totalorder %s119, %s120
      %p129 = scmp.eq.s32.totalorder %s20, 0
      %p130 = por %p128, %p129
      %p131 = scmp.ne.s32.totalorder %s119, %s120
      %p132 = scmp.eq.s32.totalorder %s21, 1
      %p133 = por %p131, %p132
      %p135 = scmp.ne.s32.totalorder %s120, %s134
      %p136 = scmp.eq.s32.totalorder %s21, 0
      %p137 = por %p135, %p136
      %s139 = sadd.s32 %s138, 1
      %p142 = scmp.eq.s32.totalorder %s15, 1
      %p143 = scmp.ne.s32.totalorder %s138, %s140
      %p144 = scmp.eq.s32.totalorder %s15, 0
      %p145 = por %p143, %p144
      %p146 = scmp.ne.s32.totalorder %s138, %s140
      %p147 = scmp.eq.s32.totalorder %s20, 1
      %p148 = por %p146, %p147
      %p149 = scmp.ne.s32.totalorder %s140, %s141
      %p150 = scmp.eq.s32.totalorder %s20, 0
      %p151 = por %p149, %p150
      %p152 = scmp.ne.s32.totalorder %s140, %s141
      %p153 = scmp.eq.s32.totalorder %s21, 1
      %p154 = por %p152, %p153
      %p156 = scmp.ne.s32.totalorder %s141, %s155
      %p157 = scmp.eq.s32.totalorder %s21, 0
      %p158 = por %p156, %p157
      %s159 = ssub.s32 %s15, %s22
      %p160 = scmp.eq.s32.totalorder %s159, 0
      %s162 = sadd.s32 %s161, 1
      %s163 = scalar_select %p160, %s161, %s162
      %p166 = pneg %p160
      %p167 = scmp.eq.s32.totalorder %s15, 1
      %p168 = por %p166, %p167
      %p169 = scmp.ne.s32.totalorder %s161, %s164
      %p170 = scmp.eq.s32.totalorder %s15, 0
      %p171 = por %p169, %p170
      %p172 = scmp.ne.s32.totalorder %s161, %s164
      %p173 = scmp.eq.s32.totalorder %s20, 1
      %p174 = por %p172, %p173
      %p175 = scmp.ne.s32.totalorder %s164, %s165
      %p176 = scmp.eq.s32.totalorder %s20, 0
      %p177 = por %p175, %p176
      %p178 = scmp.ne.s32.totalorder %s164, %s165
      %p179 = scmp.eq.s32.totalorder %s21, 1
      %p180 = por %p178, %p179
      %p182 = scmp.ne.s32.totalorder %s165, %s181
      %p183 = scmp.eq.s32.totalorder %s21, 0
      %p184 = por %p182, %p183
      %p185 = scmp.le.s32.totalorder 1, %s15
      %p186 = scmp.lt.s32.totalorder %s15, 3
      %p187 = pnand %p185, %p186
      %p188 = pneg %p187
      // Predicated region
      $region9: #{tpu_custom_call.1} parent=5 // pred_check
        _
      $region10: #{tpu_custom_call.1} parent=5 // pred_check_branch
        %190 = sbr.rel (%p187) target = $region12
      $region11: #{tpu_custom_call.1} parent=5 // pred_region
        %s191 = ssub.s32 %s15, 1
        // Predicated region
        $region13: #{tpu_custom_call.1} parent=11 // pred_check
          %p192 = pneg %p88
        $region14: #{tpu_custom_call.1} parent=11 // pred_check_branch
          %194 = sbr.rel (%p192) target = $region16
        $region15: #{tpu_custom_call.1} parent=11 // pred_region
          _
        $region16: #{tpu_custom_call.1} parent=11 // pred_fallthru
          _
        // Predicated region
        $region17: #{tpu_custom_call.1} parent=11 // pred_check
          %p195 = pneg %p109
        $region18: #{tpu_custom_call.1} parent=11 // pred_check_branch
          %197 = sbr.rel (%p195) target = $region20
        $region19: #{tpu_custom_call.1} parent=11 // pred_region
          _
        $region20: #{tpu_custom_call.1} parent=11 // pred_fallthru
          _
        // Predicated region
        $region21: #{tpu_custom_call.1} parent=11 // pred_check
          %p198 = pneg %p130
        $region22: #{tpu_custom_call.1} parent=11 // pred_check_branch
          %200 = sbr.rel (%p198) target = $region24
        $region23: #{tpu_custom_call.1} parent=11 // pred_region
          _
        $region24: #{tpu_custom_call.1} parent=11 // pred_fallthru
          _
        // Predicated region
        $region25: #{tpu_custom_call.1} parent=11 // pred_check
          %p201 = pneg %p151
        $region26: #{tpu_custom_call.1} parent=11 // pred_check_branch
          %203 = sbr.rel (%p201) target = $region28
        $region27: #{tpu_custom_call.1} parent=11 // pred_region
          _
        $region28: #{tpu_custom_call.1} parent=11 // pred_fallthru
          _
      $region12: #{tpu_custom_call.1} parent=5 // pred_fallthru
        _
      %p204 = scmp.lt.s32.totalorder %s15, 2
      // Predicated region
      $region29: #{tpu_custom_call.1} parent=5 // pred_check
        %p205 = pneg %p204
      $region30: #{tpu_custom_call.1} parent=5 // pred_check_branch
        %207 = sbr.rel (%p205) target = $region32
      $region31: #{tpu_custom_call.1} parent=5 // pred_region
        // Predicated region
        $region33: #{tpu_custom_call.1} parent=31 // pred_check
          %p208 = pneg %p35
        $region34: #{tpu_custom_call.1} parent=31 // pred_check_branch
          %210 = sbr.rel (%p208) target = $region36
        $region35: #{tpu_custom_call.1} parent=31 // pred_region
          %p211 = scmp.lt.s32.totalorder %s15, 1
          %s212 = scalar_select %p211, %s15, 1
          %s213 = smul.addr %s212, 8
          %s214 = scalar_lea.vmem %s0, %s213
        $region36: #{tpu_custom_call.1} parent=31 // pred_fallthru
          _
        // Predicated region
        $region37: #{tpu_custom_call.1} parent=31 // pred_check
          %p215 = pneg %p61
        $region38: #{tpu_custom_call.1} parent=31 // pred_check_branch
          %217 = sbr.rel (%p215) target = $region40
        $region39: #{tpu_custom_call.1} parent=31 // pred_region
          %p218 = scmp.lt.s32.totalorder %s15, 1
          %s219 = scalar_select %p218, %s15, 1
          %s220 = smul.addr %s219, 2
          %s221 = scalar_lea.vmem %s1, %s220
        $region40: #{tpu_custom_call.1} parent=31 // pred_fallthru
          _
      $region32: #{tpu_custom_call.1} parent=5 // pred_fallthru
        _
      %p222 = scmp.le.s32.totalorder 1, %s15
      %p223 = scmp.lt.s32.totalorder %s15, 3
      %p224 = pnand %p222, %p223
      %p225 = pneg %p224
      // Predicated region
      $region41: #{tpu_custom_call.1} parent=5 // pred_check
        _
      $region42: #{tpu_custom_call.1} parent=5 // pred_check_branch
        %227 = sbr.rel (%p224) target = $region44
      $region43: #{tpu_custom_call.1} parent=5 // pred_region
        %s228 = ssub.s32 %s15, 1
        %p229 = scmp.lt.s32.totalorder %s20, 1
        %s230 = scalar_select %p229, %s20, 1
        %s231 = smul.addr %s230, 8
        %s232 = scalar_lea.vmem %s0, %s231
        %p233 = pneg %p41
        %p234 = pneg %p38
        %p235 = scmp.lt.s32.totalorder %s20, 1
        %s236 = scalar_select %p235, %s20, 1
        %s237 = smul.addr %s236, 2
        %s238 = scalar_lea.vmem %s1, %s237
        %p239 = pneg %p67
        %p240 = pneg %p64
        %p241 = pneg %p88
        %p242 = pneg %p85
        %p243 = pneg %p109
        %p244 = pneg %p106
        %p245 = pneg %p130
        %p246 = pneg %p127
        %p247 = pneg %p151
        %p248 = pneg %p148
        %p249 = pneg %p177
        %p250 = pneg %p174
        %s251 = sand.u32 %s164, 1
        %s252 = scalar_lea.sflag [#allocation3], %s251
        %s253 = sand.u32 %s164, 1
        %s254 = smul.addr %s253, 8
        %s255 = scalar_lea.vmem [#allocation2], %s254
        %p256 = scmp.lt.s32.totalorder %s20, 1
        %s257 = scalar_select %p256, %s20, 1
        %s258 = smul.addr %s257, 8
        %s259 = scalar_lea.vmem %s0, %s258
        %p260 = scmp.lt.s32.totalorder %s20, 1
        %s261 = scalar_select %p260, %s20, 1
        %s262 = smul.addr %s261, 2
        %s263 = scalar_lea.vmem %s1, %s262
        %v264 = vld [vmem:[%s263] sm:$0x3]
        %v265 = vunpack.c.0.s8 %v264
        %v266 = vcvt.s32.f32 %v265
        %v267 = vmul.f32 %v266, -1e+30
        %v268 = vlaneseq
        %v269 = vshrl.u32 %v268, 7
        %v270 = vlaneseq
        %v271 = vand.u32 %v270, 127
        %vm272 = vcmp.ne.s32.totalorder %v269, %v271
        %v273 = vsel %vm272, 1, 0
        %v274 = vcvt.s32.f32 %v273
        %v275 = vld [vmem:[%s259] sm:$0xff]
        %v276 = vld [vmem:[%s2] sm:$0xff]
        %v277 = vld [vmem:[%s2 + $0x8] sm:$0xff]
        %v278 = vld [vmem:[%s2 + $0x10] sm:$0xff]
        %v279 = vld [vmem:[%s2 + $0x18] sm:$0xff]
        %vm280 = vcmask 261120
        %v282 = vsel %vm280, %v275, 0
        %284 = vmatprep.subr.mxu0 0.0
        %285 = vmatpush1.msra.mxu0 %v276
        %286 = vmatprep.subr.mxu0 0.0
        %287 = vmatpush1.msra.mxu0 %v277
        %288 = vmatprep.subr.mxu0 0.0
        %289 = vmatpush1.msra.mxu0 %v278
        %290 = vmatprep.subr.mxu0 0.0
        %291 = vmatpush1.msra.mxu0 %v279
        %292 = vmatprep.subr.mxu0 0.0
        %293 = vmatpush1.msra.mxu0 0.0
        %294 = vmatprep.subr.mxu0 0.0
        %295 = vmatpush1.msra.mxu0 0.0
        %296 = vmatprep.subr.mxu0 0.0
        %297 = vmatpush1.msra.mxu0 0.0
        %298 = vmatprep.subr.mxu0 0.0
        %299 = vmatpush1.msra.mxu0 0.0
        %300 = vmatprep.subr.mxu0 0.0
        %301 = vmatpush1.msra.mxu0 0.0
        %302 = vmatprep.subr.mxu0 0.0
        %303 = vmatpush1.msra.mxu0 0.0
        %304 = vmatprep.subr.mxu0 0.0
        %305 = vmatpush1.msra.mxu0 0.0
        %306 = vmatprep.subr.mxu0 0.0
        %307 = vmatpush1.msra.mxu0 0.0
        %308 = vmatprep.subr.mxu0 0.0
        %309 = vmatpush1.msra.mxu0 0.0
        %310 = vmatprep.subr.mxu0 0.0
        %311 = vmatpush1.msra.mxu0 0.0
        %312 = vmatprep.subr.mxu0 0.0
        %313 = vmatpush1.msra.mxu0 0.0
        %314 = vmatprep.subr.mxu0 0.0
        %315 = vmatpush1.msra.mxu0 0.0
        %316 = vmatprep.subr.mxu0 0.0
        %317 = vmatpush1.msra.mxu0 0.0
        %318 = vmatprep.subr.mxu0 0.0
        %319 = vmatpush1.msra.mxu0 0.0
        %320 = vmatprep.subr.mxu0 0.0
        %321 = vmatpush1.msra.mxu0 0.0
        %322 = vmatprep.subr.mxu0 0.0
        %323 = vmatpush1.msra.mxu0 0.0
        %324 = vmatprep.subr.mxu0 0.0
        %325 = vmatpush1.msra.mxu0 0.0
        %326 = vmatprep.subr.mxu0 0.0
        %327 = vmatpush1.msra.mxu0 0.0
        %328 = vmatprep.subr.mxu0 0.0
        %329 = vmatpush1.msra.mxu0 0.0
        %330 = vmatprep.subr.mxu0 0.0
        %331 = vmatpush1.msra.mxu0 0.0
        %332 = vmatprep.subr.mxu0 0.0
        %333 = vmatpush1.msra.mxu0 0.0
        %334 = vmatprep.subr.mxu0 0.0
        %335 = vmatpush1.msra.mxu0 0.0
        %336 = vmatprep.subr.mxu0 0.0
        %337 = vmatpush1.msra.mxu0 0.0
        %338 = vmatprep.subr.mxu0 0.0
        %339 = vmatpush1.msra.mxu0 0.0
        %340 = vmatprep.subr.mxu0 0.0
        %341 = vmatpush1.msra.mxu0 0.0
        %342 = vmatprep.subr.mxu0 0.0
        %343 = vmatpush1.msra.mxu0 0.0
        %344 = vmatprep.subr.mxu0 0.0
        %345 = vmatpush1.msra.mxu0 0.0
        %346 = vmatprep.subr.mxu0 0.0
        %347 = vmatpush1.msra.mxu0 0.0
        %348 = vmatprep.mubr.f32.mxu0 0.0
        %349 = vmatmul.mubr.f32.gmra.mrb[0].mxu0 %v282
        %v350 = vpop.f32.mrb[0].mxu0
        %v351 = vadd.f32 0.0, %v350
        %v352 = vpop.f32.mrb[0].mxu0
        %353 = vdwg.mxu0
        %v354 = vld [vmem:[%s3] sm:$0xff]
        %v355 = vld [vmem:[%s3 + $0x8] sm:$0xff]
        %v356 = vld [vmem:[%s3 + $0x10] sm:$0xff]
        %v357 = vld [vmem:[%s3 + $0x18] sm:$0xff]
        %358 = vmatprep.subr.mxu0 0.0
        %359 = vmatpush1.msra.mxu0 %v354
        %360 = vmatprep.subr.mxu0 0.0
        %361 = vmatpush1.msra.mxu0 %v355
        %362 = vmatprep.subr.mxu0 0.0
        %363 = vmatpush1.msra.mxu0 %v356
        %364 = vmatprep.subr.mxu0 0.0
        %365 = vmatpush1.msra.mxu0 %v357
        %366 = vmatprep.subr.mxu0 0.0
        %367 = vmatpush1.msra.mxu0 0.0
        %368 = vmatprep.subr.mxu0 0.0
        %369 = vmatpush1.msra.mxu0 0.0
        %370 = vmatprep.subr.mxu0 0.0
        %371 = vmatpush1.msra.mxu0 0.0
        %372 = vmatprep.subr.mxu0 0.0
        %373 = vmatpush1.msra.mxu0 0.0
        %374 = vmatprep.subr.mxu0 0.0
        %375 = vmatpush1.msra.mxu0 0.0
        %376 = vmatprep.subr.mxu0 0.0
        %377 = vmatpush1.msra.mxu0 0.0
        %378 = vmatprep.subr.mxu0 0.0
        %379 = vmatpush1.msra.mxu0 0.0
        %380 = vmatprep.subr.mxu0 0.0
        %381 = vmatpush1.msra.mxu0 0.0
        %382 = vmatprep.subr.mxu0 0.0
        %383 = vmatpush1.msra.mxu0 0.0
        %384 = vmatprep.subr.mxu0 0.0
        %385 = vmatpush1.msra.mxu0 0.0
        %386 = vmatprep.subr.mxu0 0.0
        %387 = vmatpush1.msra.mxu0 0.0
        %388 = vmatprep.subr.mxu0 0.0
        %389 = vmatpush1.msra.mxu0 0.0
        %390 = vmatprep.subr.mxu0 0.0
        %391 = vmatpush1.msra.mxu0 0.0
        %392 = vmatprep.subr.mxu0 0.0
        %393 = vmatpush1.msra.mxu0 0.0
        %394 = vmatprep.subr.mxu0 0.0
        %395 = vmatpush1.msra.mxu0 0.0
        %396 = vmatprep.subr.mxu0 0.0
        %397 = vmatpush1.msra.mxu0 0.0
        %398 = vmatprep.subr.mxu0 0.0
        %399 = vmatpush1.msra.mxu0 0.0
        %400 = vmatprep.subr.mxu0 0.0
        %401 = vmatpush1.msra.mxu0 0.0
        %402 = vmatprep.subr.mxu0 0.0
        %403 = vmatpush1.msra.mxu0 0.0
        %404 = vmatprep.subr.mxu0 0.0
        %405 = vmatpush1.msra.mxu0 0.0
        %406 = vmatprep.subr.mxu0 0.0
        %407 = vmatpush1.msra.mxu0 0.0
        %408 = vmatprep.subr.mxu0 0.0
        %409 = vmatpush1.msra.mxu0 0.0
        %410 = vmatprep.subr.mxu0 0.0
        %411 = vmatpush1.msra.mxu0 0.0
        %412 = vmatprep.subr.mxu0 0.0
        %413 = vmatpush1.msra.mxu0 0.0
        %414 = vmatprep.subr.mxu0 0.0
        %415 = vmatpush1.msra.mxu0 0.0
        %416 = vmatprep.subr.mxu0 0.0
        %417 = vmatpush1.msra.mxu0 0.0
        %418 = vmatprep.subr.mxu0 0.0
        %419 = vmatpush1.msra.mxu0 0.0
        %420 = vmatprep.subr.mxu0 0.0
        %421 = vmatpush1.msra.mxu0 0.0
        %422 = vmatprep.mubr.f32.mxu0 0.0
        %423 = vmatmul.mubr.f32.gmra.mrb[0].mxu0 %v282
        %v424 = vpop.f32.mrb[0].mxu0
        %v425 = vadd.f32 0.0, %v424
        %v426 = vpop.f32.mrb[0].mxu0
        %427 = vdwg.mxu0
        %429 = vrot.lane.b32.xlu0 %v351, 120
        %v430 = vpop.permute.xlu0 %429
        %432 = vrot.lane.b32.xlu0 %v351, 112
        %v433 = vpop.permute.xlu0 %432
        %435 = vrot.lane.b32.xlu0 %v351, 104
        %v436 = vpop.permute.xlu0 %435
        %v438 = vcombine.low %v351, %v433
        %v439 = vcombine.high %v351, %v433
        %v441 = vunpack.c.l.s4 1983009808
        %v442 = vunpack.c.0.s8 %v441
        %v443 = vlaneseq
        %v444 = vshrl.u32 %v443, 7
        %v445 = vsub.s32 %v442, %v444
        %v446 = vrot.slane %v438, %v445
        %v448 = vunpack.c.l.s4 1983009808
        %v449 = vunpack.c.0.s8 %v448
        %v450 = vlaneseq
        %v451 = vshrl.u32 %v450, 7
        %v452 = vsub.s32 %v449, %v451
        %v453 = vrot.slane %v439, %v452
        %v454 = vcombine.low %v430, %v436
        %v455 = vcombine.high %v430, %v436
        %v457 = vunpack.c.l.s4 1983009808
        %v458 = vunpack.c.0.s8 %v457
        %v459 = vlaneseq
        %v460 = vshrl.u32 %v459, 7
        %v461 = vsub.s32 %v458, %v460
        %v462 = vrot.slane %v454, %v461
        %v464 = vunpack.c.l.s4 1983009808
        %v465 = vunpack.c.0.s8 %v464
        %v466 = vlaneseq
        %v467 = vshrl.u32 %v466, 7
        %v468 = vsub.s32 %v465, %v467
        %v469 = vrot.slane %v455, %v468
        %v470 = vcombine.low %v446, %v462
        %v471 = vcombine.high %v446, %v462
        %v473 = vunpack.c.l.s4 1934713408
        %v474 = vunpack.c.0.s8 %v473
        %v475 = vlaneseq
        %v476 = vshrl.u32 %v475, 7
        %v477 = vsub.s32 %v474, %v476
        %v478 = vrot.slane %v470, %v477
        %v480 = vunpack.c.l.s4 1934713408
        %v481 = vunpack.c.0.s8 %v480
        %v482 = vlaneseq
        %v483 = vshrl.u32 %v482, 7
        %v484 = vsub.s32 %v481, %v483
        %v485 = vrot.slane %v471, %v484
        %v486 = vcombine.low %v453, %v469
        %v487 = vcombine.high %v453, %v469
        %v489 = vunpack.c.l.s4 1934713408
        %v490 = vunpack.c.0.s8 %v489
        %v491 = vlaneseq
        %v492 = vshrl.u32 %v491, 7
        %v493 = vsub.s32 %v490, %v492
        %v494 = vrot.slane %v486, %v493
        %v496 = vunpack.c.l.s4 1934713408
        %v497 = vunpack.c.0.s8 %v496
        %v498 = vlaneseq
        %v499 = vshrl.u32 %v498, 7
        %v500 = vsub.s32 %v497, %v499
        %v501 = vrot.slane %v487, %v500
        %v502 = vcombine.high %v478, 0.0
        %v503 = vcombine.high %v485, 0.0
        %v504 = vcombine.high %v494, 0.0
        %v505 = vcombine.high %v501, 0.0
        %v506 = vcombine.low %v478, %v485
        %v508 = vunpack.c.l.s4 1983009808
        %v509 = vunpack.c.0.s8 %v508
        %v510 = vlaneseq
        %v511 = vshrl.u32 %v510, 7
        %v512 = vsub.s32 %v509, %v511
        %v513 = vrot.slane %v506, %v512
        %v514 = vcombine.low %v502, %v503
        %v516 = vunpack.c.l.s4 1983009808
        %v517 = vunpack.c.0.s8 %v516
        %v518 = vlaneseq
        %v519 = vshrl.u32 %v518, 7
        %v520 = vsub.s32 %v517, %v519
        %v521 = vrot.slane %v514, %v520
        %v522 = vcombine.low %v494, %v501
        %v524 = vunpack.c.l.s4 1983009808
        %v525 = vunpack.c.0.s8 %v524
        %v526 = vlaneseq
        %v527 = vshrl.u32 %v526, 7
        %v528 = vsub.s32 %v525, %v527
        %v529 = vrot.slane %v522, %v528
        %v530 = vcombine.low %v504, %v505
        %v532 = vunpack.c.l.s4 1983009808
        %v533 = vunpack.c.0.s8 %v532
        %v534 = vlaneseq
        %v535 = vshrl.u32 %v534, 7
        %v536 = vsub.s32 %v533, %v535
        %v537 = vrot.slane %v530, %v536
        %v538 = vcombine.low %v513, %v521
        %v539 = vcombine.high %v513, %v521
        %v541 = vunpack.c.l.s4 1934713408
        %v542 = vunpack.c.0.s8 %v541
        %v543 = vlaneseq
        %v544 = vshrl.u32 %v543, 7
        %v545 = vsub.s32 %v542, %v544
        %v546 = vrot.slane %v538, %v545
        %v548 = vunpack.c.l.s4 1934713408
        %v549 = vunpack.c.0.s8 %v548
        %v550 = vlaneseq
        %v551 = vshrl.u32 %v550, 7
        %v552 = vsub.s32 %v549, %v551
        %v553 = vrot.slane %v539, %v552
        %v554 = vcombine.low %v529, %v537
        %v555 = vcombine.high %v529, %v537
        %v557 = vunpack.c.l.s4 1934713408
        %v558 = vunpack.c.0.s8 %v557
        %v559 = vlaneseq
        %v560 = vshrl.u32 %v559, 7
        %v561 = vsub.s32 %v558, %v560
        %v562 = vrot.slane %v554, %v561
        %v564 = vunpack.c.l.s4 1934713408
        %v565 = vunpack.c.0.s8 %v564
        %v566 = vlaneseq
        %v567 = vshrl.u32 %v566, 7
        %v568 = vsub.s32 %v565, %v567
        %v569 = vrot.slane %v555, %v568
        %v570 = vcombine.low %v546, %v562
        %v571 = vcombine.high %v546, %v562
        %v572 = vcombine.low %v553, %v569
        %v573 = vcombine.high %v553, %v569
        %574 = vxpose.xlu0.b32.start [1/16] %v425, 128
        %575 = vxpose.xlu0.b32.cont [2/16] 0.0, 128
        %576 = vxpose.xlu0.b32.cont [3/16] 0.0, 128
        %577 = vxpose.xlu0.b32.cont [4/16] 0.0, 128
        %578 = vxpose.xlu0.b32.cont [5/16] 0.0, 128
        %579 = vxpose.xlu0.b32.cont [6/16] 0.0, 128
        %580 = vxpose.xlu0.b32.cont [7/16] 0.0, 128
        %581 = vxpose.xlu0.b32.cont [8/16] 0.0, 128
        %582 = vxpose.xlu0.b32.cont [9/16] 0.0, 128
        %583 = vxpose.xlu0.b32.cont [10/16] 0.0, 128
        %584 = vxpose.xlu0.b32.cont [11/16] 0.0, 128
        %585 = vxpose.xlu0.b32.cont [12/16] 0.0, 128
        %586 = vxpose.xlu0.b32.cont [13/16] 0.0, 128
        %587 = vxpose.xlu0.b32.cont [14/16] 0.0, 128
        %588 = vxpose.xlu0.b32.cont [15/16] 0.0, 128
        %589 = vxpose.xlu0.b32.end [16/16] 0.0, 128
        %v590 = vpop.trf.xlu0
        %v591 = vpop.trf.xlu0
        %v592 = vpop.trf.xlu0
        %v593 = vpop.trf.xlu0
        %v594 = vpop.trf.xlu0
        %v595 = vpop.trf.xlu0
        %v596 = vpop.trf.xlu0
        %v597 = vpop.trf.xlu0
        %v598 = vpop.trf.xlu0
        %v599 = vpop.trf.xlu0
        %v600 = vpop.trf.xlu0
        %v601 = vpop.trf.xlu0
        %v602 = vpop.trf.xlu0
        %v603 = vpop.trf.xlu0
        %v604 = vpop.trf.xlu0
        %v605 = vpop.trf.xlu0
        %v606 = vlaneseq
        %v607 = vshrl.u32 %v606, 7
        %v608 = vsub.s32 0, %v607
        %v609 = vrot.slane %v590, %v608
        %611 = vbcast.lane.b32.xlu0 %v609, 256
        %v612 = vpop.permute.xlu0 %611
        %v613 = vlaneseq
        %v614 = vshrl.u32 %v613, 7
        %v615 = vsub.s32 1, %v614
        %v616 = vrot.slane %v590, %v615
        %618 = vbcast.lane.b32.xlu0 %v616, 256
        %v619 = vpop.permute.xlu0 %618
        %v620 = vlaneseq
        %v621 = vshrl.u32 %v620, 7
        %v622 = vsub.s32 2, %v621
        %v623 = vrot.slane %v590, %v622
        %625 = vbcast.lane.b32.xlu0 %v623, 256
        %v626 = vpop.permute.xlu0 %625
        %v627 = vlaneseq
        %v628 = vshrl.u32 %v627, 7
        %v629 = vsub.s32 3, %v628
        %v630 = vrot.slane %v590, %v629
        %632 = vbcast.lane.b32.xlu0 %v630, 256
        %v633 = vpop.permute.xlu0 %632
        %635 = vrot.lane.b32.xlu0 %v425, 124
        %v636 = vpop.permute.xlu0 %635
        %638 = vxpose.xlu0.b32.start [1/16] %v636, 128
        %639 = vxpose.xlu0.b32.cont [2/16] 0.0, 128
        %640 = vxpose.xlu0.b32.cont [3/16] 0.0, 128
        %641 = vxpose.xlu0.b32.cont [4/16] 0.0, 128
        %642 = vxpose.xlu0.b32.cont [5/16] 0.0, 128
        %643 = vxpose.xlu0.b32.cont [6/16] 0.0, 128
        %644 = vxpose.xlu0.b32.cont [7/16] 0.0, 128
        %645 = vxpose.xlu0.b32.cont [8/16] 0.0, 128
        %646 = vxpose.xlu0.b32.cont [9/16] 0.0, 128
        %647 = vxpose.xlu0.b32.cont [10/16] 0.0, 128
        %648 = vxpose.xlu0.b32.cont [11/16] 0.0, 128
        %649 = vxpose.xlu0.b32.cont [12/16] 0.0, 128
        %650 = vxpose.xlu0.b32.cont [13/16] 0.0, 128
        %651 = vxpose.xlu0.b32.cont [14/16] 0.0, 128
        %652 = vxpose.xlu0.b32.cont [15/16] 0.0, 128
        %653 = vxpose.xlu0.b32.end [16/16] 0.0, 128
        %v654 = vpop.trf.xlu0
        %v655 = vpop.trf.xlu0
        %v656 = vpop.trf.xlu0
        %v657 = vpop.trf.xlu0
        %v658 = vpop.trf.xlu0
        %v659 = vpop.trf.xlu0
        %v660 = vpop.trf.xlu0
        %v661 = vpop.trf.xlu0
        %v662 = vpop.trf.xlu0
        %v663 = vpop.trf.xlu0
        %v664 = vpop.trf.xlu0
        %v665 = vpop.trf.xlu0
        %v666 = vpop.trf.xlu0
        %v667 = vpop.trf.xlu0
        %v668 = vpop.trf.xlu0
        %v669 = vpop.trf.xlu0
        %v672 = vunpack.c.l.s4 1966171168
        %v673 = vunpack.c.0.s8 %v672
        %v674 = vlaneseq
        %v675 = vshrl.u32 %v674, 7
        %v676 = vsub.s32 %v673, %v675
        %v677 = vrot.slane %v654, %v676
        %v678 = vcombine.high %v677, %v677
        %v680 = vunpack.c.l.s4 1966171168
        %v681 = vunpack.c.0.s8 %v680
        %v682 = vlaneseq
        %v683 = vshrl.u32 %v682, 7
        %v684 = vsub.s32 %v681, %v683
        %v685 = vrot.slane %v677, %v684
        %v687 = vunpack.c.l.s4 1966171168
        %v688 = vunpack.c.0.s8 %v687
        %v689 = vlaneseq
        %v690 = vshrl.u32 %v689, 7
        %v691 = vsub.s32 %v688, %v690
        %v692 = vrot.slane %v678, %v691
        %v693 = vcombine.high %v685, %v685
        %v694 = vcombine.high %v692, %v692
        %v695 = vlaneseq
        %v696 = vshrl.u32 %v695, 7
        %v697 = vsub.s32 0, %v696
        %v698 = vrot.slane %v685, %v697
        %v699 = vlaneseq
        %v700 = vshrl.u32 %v699, 7
        %v701 = vsub.s32 0, %v700
        %v702 = vrot.slane %v692, %v701
        %v703 = vlaneseq
        %v704 = vshrl.u32 %v703, 7
        %v705 = vsub.s32 0, %v704
        %v706 = vrot.slane %v693, %v705
        %v707 = vlaneseq
        %v708 = vshrl.u32 %v707, 7
        %v709 = vsub.s32 0, %v708
        %v710 = vrot.slane %v694, %v709
        %v715 = vadd.f32 %v612, %v698
        %v716 = vadd.f32 %v619, %v702
        %v717 = vadd.f32 %v626, %v706
        %v718 = vadd.f32 %v633, %v710
        %v719 = vadd.f32 %v715, %v267
        %v720 = vadd.f32 %v716, %v267
        %v721 = vadd.f32 %v717, %v267
        %v722 = vadd.f32 %v718, %v267
        %vm723 = vcmask 64512
        %v724 = vsel %vm723, %v719, -inf
        %725 = vmax.xlane.f32.xlu0 %v724
        %v726 = vpop.xlane.xlu0 %725
        %v727 = vsel %vm723, %v720, -inf
        %728 = vmax.xlane.f32.xlu0 %v727
        %v729 = vpop.xlane.xlu0 %728
        %v730 = vsel %vm723, %v721, -inf
        %731 = vmax.xlane.f32.xlu0 %v730
        %v732 = vpop.xlane.xlu0 %731
        %v733 = vsel %vm723, %v722, -inf
        %734 = vmax.xlane.f32.xlu0 %v733
        %v735 = vpop.xlane.xlu0 %734
        %v736 = vsub.f32 %v719, %v726
        %v737 = vsub.f32 %v720, %v729
        %v738 = vsub.f32 %v721, %v732
        %v739 = vsub.f32 %v722, %v735
        %v740 = vmul.f32 %v736, 1.442695
        %v741 = vpow.pop %v740
        %v742 = vmul.f32 %v737, 1.442695
        %v743 = vpow.pop %v742
        %v744 = vmul.f32 %v738, 1.442695
        %v745 = vpow.pop %v744
        %v746 = vmul.f32 %v739, 1.442695
        %v747 = vpow.pop %v746
        %v748 = vsel %vm723, %v741, 0.0
        %749 = vadd.xlane.f32.xlu0 %v748
        %v750 = vpop.xlane.xlu0 %749
        %v751 = vsel %vm723, %v743, 0.0
        %752 = vadd.xlane.f32.xlu0 %v751
        %v753 = vpop.xlane.xlu0 %752
        %v754 = vsel %vm723, %v745, 0.0
        %755 = vadd.xlane.f32.xlu0 %v754
        %v756 = vpop.xlane.xlu0 %755
        %v757 = vsel %vm723, %v747, 0.0
        %758 = vadd.xlane.f32.xlu0 %v757
        %v759 = vpop.xlane.xlu0 %758
        %v760 = vrcp.pop %v750
        %v761 = vrcp.pop %v753
        %v762 = vrcp.pop %v756
        %v763 = vrcp.pop %v759
        %v764 = vmul.f32 %v741, %v760
        %v765 = vmul.f32 %v743, %v761
        %v766 = vmul.f32 %v745, %v762
        %v767 = vmul.f32 %v747, %v763
        %v768 = vmul.f32 %v764, %v274
        %v769 = vmul.f32 %v765, %v274
        %v770 = vmul.f32 %v766, %v274
        %v771 = vmul.f32 %v767, %v274
        %v772 = vsel %vm723, %v768, 0.0
        %773 = vadd.xlane.f32.xlu0 %v772
        %v774 = vpop.xlane.xlu0 %773
        %v775 = vsel %vm723, %v769, 0.0
        %776 = vadd.xlane.f32.xlu0 %v775
        %v777 = vpop.xlane.xlu0 %776
        %v778 = vsel %vm723, %v770, 0.0
        %779 = vadd.xlane.f32.xlu0 %v778
        %v780 = vpop.xlane.xlu0 %779
        %v781 = vsel %vm723, %v771, 0.0
        %782 = vadd.xlane.f32.xlu0 %v781
        %v783 = vpop.xlane.xlu0 %782
        %v784 = vsub.f32 1.0, %v774
        %v785 = vsub.f32 1.0, %v777
        %v786 = vsub.f32 1.0, %v780
        %v787 = vsub.f32 1.0, %v783
        %v789 = vsel %vm723, %v768, 0
        %791 = vmatprep.subr.mxu0 0.0
        %792 = vmatpush1.msra.mxu0 %v570
        %793 = vmatprep.subr.mxu0 0.0
        %794 = vmatpush1.msra.mxu0 0.0
        %795 = vmatprep.subr.mxu0 0.0
        %796 = vmatpush1.msra.mxu0 0.0
        %797 = vmatprep.subr.mxu0 0.0
        %798 = vmatpush1.msra.mxu0 0.0
        %799 = vmatprep.subr.mxu0 0.0
        %800 = vmatpush1.msra.mxu0 0.0
        %801 = vmatprep.subr.mxu0 0.0
        %802 = vmatpush1.msra.mxu0 0.0
        %803 = vmatprep.subr.mxu0 0.0
        %804 = vmatpush1.msra.mxu0 0.0
        %805 = vmatprep.subr.mxu0 0.0
        %806 = vmatpush1.msra.mxu0 0.0
        %807 = vmatprep.subr.mxu0 0.0
        %808 = vmatpush1.msra.mxu0 0.0
        %809 = vmatprep.subr.mxu0 0.0
        %810 = vmatpush1.msra.mxu0 0.0
        %811 = vmatprep.subr.mxu0 0.0
        %812 = vmatpush1.msra.mxu0 0.0
        %813 = vmatprep.subr.mxu0 0.0
        %814 = vmatpush1.msra.mxu0 0.0
        %815 = vmatprep.subr.mxu0 0.0
        %816 = vmatpush1.msra.mxu0 0.0
        %817 = vmatprep.subr.mxu0 0.0
        %818 = vmatpush1.msra.mxu0 0.0
        %819 = vmatprep.subr.mxu0 0.0
        %820 = vmatpush1.msra.mxu0 0.0
        %821 = vmatprep.subr.mxu0 0.0
        %822 = vmatpush1.msra.mxu0 0.0
        %823 = vmatprep.subr.mxu0 0.0
        %824 = vmatpush1.msra.mxu0 0.0
        %825 = vmatprep.subr.mxu0 0.0
        %826 = vmatpush1.msra.mxu0 0.0
        %827 = vmatprep.subr.mxu0 0.0
        %828 = vmatpush1.msra.mxu0 0.0
        %829 = vmatprep.subr.mxu0 0.0
        %830 = vmatpush1.msra.mxu0 0.0
        %831 = vmatprep.subr.mxu0 0.0
        %832 = vmatpush1.msra.mxu0 0.0
        %833 = vmatprep.subr.mxu0 0.0
        %834 = vmatpush1.msra.mxu0 0.0
        %835 = vmatprep.subr.mxu0 0.0
        %836 = vmatpush1.msra.mxu0 0.0
        %837 = vmatprep.subr.mxu0 0.0
        %838 = vmatpush1.msra.mxu0 0.0
        %839 = vmatprep.subr.mxu0 0.0
        %840 = vmatpush1.msra.mxu0 0.0
        %841 = vmatprep.subr.mxu0 0.0
        %842 = vmatpush1.msra.mxu0 0.0
        %843 = vmatprep.subr.mxu0 0.0
        %844 = vmatpush1.msra.mxu0 0.0
        %845 = vmatprep.subr.mxu0 0.0
        %846 = vmatpush1.msra.mxu0 0.0
        %847 = vmatprep.subr.mxu0 0.0
        %848 = vmatpush1.msra.mxu0 0.0
        %849 = vmatprep.subr.mxu0 0.0
        %850 = vmatpush1.msra.mxu0 0.0
        %851 = vmatprep.subr.mxu0 0.0
        %852 = vmatpush1.msra.mxu0 0.0
        %853 = vmatprep.subr.mxu0 0.0
        %854 = vmatpush1.msra.mxu0 0.0
        %855 = vmatprep.mubr.f32.mxu0 0.0
        %856 = vmatmul.mubr.f32.gmra.mrb[0].mxu0 %v789
        %v857 = vpop.f32.mrb[0].mxu0
        %v858 = vadd.f32 0.0, %v857
        %v859 = vpop.f32.mrb[0].mxu0
        %860 = vdwg.mxu0
        %v862 = vsel %vm723, %v769, 0
        %864 = vmatprep.subr.mxu0 0.0
        %865 = vmatpush1.msra.mxu0 %v571
        %866 = vmatprep.subr.mxu0 0.0
        %867 = vmatpush1.msra.mxu0 0.0
        %868 = vmatprep.subr.mxu0 0.0
        %869 = vmatpush1.msra.mxu0 0.0
        %870 = vmatprep.subr.mxu0 0.0
        %871 = vmatpush1.msra.mxu0 0.0
        %872 = vmatprep.subr.mxu0 0.0
        %873 = vmatpush1.msra.mxu0 0.0
        %874 = vmatprep.subr.mxu0 0.0
        %875 = vmatpush1.msra.mxu0 0.0
        %876 = vmatprep.subr.mxu0 0.0
        %877 = vmatpush1.msra.mxu0 0.0
        %878 = vmatprep.subr.mxu0 0.0
        %879 = vmatpush1.msra.mxu0 0.0
        %880 = vmatprep.subr.mxu0 0.0
        %881 = vmatpush1.msra.mxu0 0.0
        %882 = vmatprep.subr.mxu0 0.0
        %883 = vmatpush1.msra.mxu0 0.0
        %884 = vmatprep.subr.mxu0 0.0
        %885 = vmatpush1.msra.mxu0 0.0
        %886 = vmatprep.subr.mxu0 0.0
        %887 = vmatpush1.msra.mxu0 0.0
        %888 = vmatprep.subr.mxu0 0.0
        %889 = vmatpush1.msra.mxu0 0.0
        %890 = vmatprep.subr.mxu0 0.0
        %891 = vmatpush1.msra.mxu0 0.0
        %892 = vmatprep.subr.mxu0 0.0
        %893 = vmatpush1.msra.mxu0 0.0
        %894 = vmatprep.subr.mxu0 0.0
        %895 = vmatpush1.msra.mxu0 0.0
        %896 = vmatprep.subr.mxu0 0.0
        %897 = vmatpush1.msra.mxu0 0.0
        %898 = vmatprep.subr.mxu0 0.0
        %899 = vmatpush1.msra.mxu0 0.0
        %900 = vmatprep.subr.mxu0 0.0
        %901 = vmatpush1.msra.mxu0 0.0
        %902 = vmatprep.subr.mxu0 0.0
        %903 = vmatpush1.msra.mxu0 0.0
        %904 = vmatprep.subr.mxu0 0.0
        %905 = vmatpush1.msra.mxu0 0.0
        %906 = vmatprep.subr.mxu0 0.0
        %907 = vmatpush1.msra.mxu0 0.0
        %908 = vmatprep.subr.mxu0 0.0
        %909 = vmatpush1.msra.mxu0 0.0
        %910 = vmatprep.subr.mxu0 0.0
        %911 = vmatpush1.msra.mxu0 0.0
        %912 = vmatprep.subr.mxu0 0.0
        %913 = vmatpush1.msra.mxu0 0.0
        %914 = vmatprep.subr.mxu0 0.0
        %915 = vmatpush1.msra.mxu0 0.0
        %916 = vmatprep.subr.mxu0 0.0
        %917 = vmatpush1.msra.mxu0 0.0
        %918 = vmatprep.subr.mxu0 0.0
        %919 = vmatpush1.msra.mxu0 0.0
        %920 = vmatprep.subr.mxu0 0.0
        %921 = vmatpush1.msra.mxu0 0.0
        %922 = vmatprep.subr.mxu0 0.0
        %923 = vmatpush1.msra.mxu0 0.0
        %924 = vmatprep.subr.mxu0 0.0
        %925 = vmatpush1.msra.mxu0 0.0
        %926 = vmatprep.subr.mxu0 0.0
        %927 = vmatpush1.msra.mxu0 0.0
        %928 = vmatprep.mubr.f32.mxu0 0.0
        %929 = vmatmul.mubr.f32.gmra.mrb[0].mxu0 %v862
        %v930 = vpop.f32.mrb[0].mxu0
        %v931 = vadd.f32 0.0, %v930
        %v932 = vpop.f32.mrb[0].mxu0
        %933 = vdwg.mxu0
        %v935 = vsel %vm723, %v770, 0
        %937 = vmatprep.subr.mxu0 0.0
        %938 = vmatpush1.msra.mxu0 %v572
        %939 = vmatprep.subr.mxu0 0.0
        %940 = vmatpush1.msra.mxu0 0.0
        %941 = vmatprep.subr.mxu0 0.0
        %942 = vmatpush1.msra.mxu0 0.0
        %943 = vmatprep.subr.mxu0 0.0
        %944 = vmatpush1.msra.mxu0 0.0
        %945 = vmatprep.subr.mxu0 0.0
        %946 = vmatpush1.msra.mxu0 0.0
        %947 = vmatprep.subr.mxu0 0.0
        %948 = vmatpush1.msra.mxu0 0.0
        %949 = vmatprep.subr.mxu0 0.0
        %950 = vmatpush1.msra.mxu0 0.0
        %951 = vmatprep.subr.mxu0 0.0
        %952 = vmatpush1.msra.mxu0 0.0
        %953 = vmatprep.subr.mxu0 0.0
        %954 = vmatpush1.msra.mxu0 0.0
        %955 = vmatprep.subr.mxu0 0.0
        %956 = vmatpush1.msra.mxu0 0.0
        %957 = vmatprep.subr.mxu0 0.0
        %958 = vmatpush1.msra.mxu0 0.0
        %959 = vmatprep.subr.mxu0 0.0
        %960 = vmatpush1.msra.mxu0 0.0
        %961 = vmatprep.subr.mxu0 0.0
        %962 = vmatpush1.msra.mxu0 0.0
        %963 = vmatprep.subr.mxu0 0.0
        %964 = vmatpush1.msra.mxu0 0.0
        %965 = vmatprep.subr.mxu0 0.0
        %966 = vmatpush1.msra.mxu0 0.0
        %967 = vmatprep.subr.mxu0 0.0
        %968 = vmatpush1.msra.mxu0 0.0
        %969 = vmatprep.subr.mxu0 0.0
        %970 = vmatpush1.msra.mxu0 0.0
        %971 = vmatprep.subr.mxu0 0.0
        %972 = vmatpush1.msra.mxu0 0.0
        %973 = vmatprep.subr.mxu0 0.0
        %974 = vmatpush1.msra.mxu0 0.0
        %975 = vmatprep.subr.mxu0 0.0
        %976 = vmatpush1.msra.mxu0 0.0
        %977 = vmatprep.subr.mxu0 0.0
        %978 = vmatpush1.msra.mxu0 0.0
        %979 = vmatprep.subr.mxu0 0.0
        %980 = vmatpush1.msra.mxu0 0.0
        %981 = vmatprep.subr.mxu0 0.0
        %982 = vmatpush1.msra.mxu0 0.0
        %983 = vmatprep.subr.mxu0 0.0
        %984 = vmatpush1.msra.mxu0 0.0
        %985 = vmatprep.subr.mxu0 0.0
        %986 = vmatpush1.msra.mxu0 0.0
        %987 = vmatprep.subr.mxu0 0.0
        %988 = vmatpush1.msra.mxu0 0.0
        %989 = vmatprep.subr.mxu0 0.0
        %990 = vmatpush1.msra.mxu0 0.0
        %991 = vmatprep.subr.mxu0 0.0
        %992 = vmatpush1.msra.mxu0 0.0
        %993 = vmatprep.subr.mxu0 0.0
        %994 = vmatpush1.msra.mxu0 0.0
        %995 = vmatprep.subr.mxu0 0.0
        %996 = vmatpush1.msra.mxu0 0.0
        %997 = vmatprep.subr.mxu0 0.0
        %998 = vmatpush1.msra.mxu0 0.0
        %999 = vmatprep.subr.mxu0 0.0
        %1000 = vmatpush1.msra.mxu0 0.0
        %1001 = vmatprep.mubr.f32.mxu0 0.0
        %1002 = vmatmul.mubr.f32.gmra.mrb[0].mxu0 %v935
        %v1003 = vpop.f32.mrb[0].mxu0
        %v1004 = vadd.f32 0.0, %v1003
        %v1005 = vpop.f32.mrb[0].mxu0
        %1006 = vdwg.mxu0
        %v1008 = vsel %vm723, %v771, 0
        %1010 = vmatprep.subr.mxu0 0.0
        %1011 = vmatpush1.msra.mxu0 %v573
        %1012 = vmatprep.subr.mxu0 0.0
        %1013 = vmatpush1.msra.mxu0 0.0
        %1014 = vmatprep.subr.mxu0 0.0
        %1015 = vmatpush1.msra.mxu0 0.0
        %1016 = vmatprep.subr.mxu0 0.0
        %1017 = vmatpush1.msra.mxu0 0.0
        %1018 = vmatprep.subr.mxu0 0.0
        %1019 = vmatpush1.msra.mxu0 0.0
        %1020 = vmatprep.subr.mxu0 0.0
        %1021 = vmatpush1.msra.mxu0 0.0
        %1022 = vmatprep.subr.mxu0 0.0
        %1023 = vmatpush1.msra.mxu0 0.0
        %1024 = vmatprep.subr.mxu0 0.0
        %1025 = vmatpush1.msra.mxu0 0.0
        %1026 = vmatprep.subr.mxu0 0.0
        %1027 = vmatpush1.msra.mxu0 0.0
        %1028 = vmatprep.subr.mxu0 0.0
        %1029 = vmatpush1.msra.mxu0 0.0
        %1030 = vmatprep.subr.mxu0 0.0
        %1031 = vmatpush1.msra.mxu0 0.0
        %1032 = vmatprep.subr.mxu0 0.0
        %1033 = vmatpush1.msra.mxu0 0.0
        %1034 = vmatprep.subr.mxu0 0.0
        %1035 = vmatpush1.msra.mxu0 0.0
        %1036 = vmatprep.subr.mxu0 0.0
        %1037 = vmatpush1.msra.mxu0 0.0
        %1038 = vmatprep.subr.mxu0 0.0
        %1039 = vmatpush1.msra.mxu0 0.0
        %1040 = vmatprep.subr.mxu0 0.0
        %1041 = vmatpush1.msra.mxu0 0.0
        %1042 = vmatprep.subr.mxu0 0.0
        %1043 = vmatpush1.msra.mxu0 0.0
        %1044 = vmatprep.subr.mxu0 0.0
        %1045 = vmatpush1.msra.mxu0 0.0
        %1046 = vmatprep.subr.mxu0 0.0
        %1047 = vmatpush1.msra.mxu0 0.0
        %1048 = vmatprep.subr.mxu0 0.0
        %1049 = vmatpush1.msra.mxu0 0.0
        %1050 = vmatprep.subr.mxu0 0.0
        %1051 = vmatpush1.msra.mxu0 0.0
        %1052 = vmatprep.subr.mxu0 0.0
        %1053 = vmatpush1.msra.mxu0 0.0
        %1054 = vmatprep.subr.mxu0 0.0
        %1055 = vmatpush1.msra.mxu0 0.0
        %1056 = vmatprep.subr.mxu0 0.0
        %1057 = vmatpush1.msra.mxu0 0.0
        %1058 = vmatprep.subr.mxu0 0.0
        %1059 = vmatpush1.msra.mxu0 0.0
        %1060 = vmatprep.subr.mxu0 0.0
        %1061 = vmatpush1.msra.mxu0 0.0
        %1062 = vmatprep.subr.mxu0 0.0
        %1063 = vmatpush1.msra.mxu0 0.0
        %1064 = vmatprep.subr.mxu0 0.0
        %1065 = vmatpush1.msra.mxu0 0.0
        %1066 = vmatprep.subr.mxu0 0.0
        %1067 = vmatpush1.msra.mxu0 0.0
        %1068 = vmatprep.subr.mxu0 0.0
        %1069 = vmatpush1.msra.mxu0 0.0
        %1070 = vmatprep.subr.mxu0 0.0
        %1071 = vmatpush1.msra.mxu0 0.0
        %1072 = vmatprep.subr.mxu0 0.0
        %1073 = vmatpush1.msra.mxu0 0.0
        %1074 = vmatprep.mubr.f32.mxu0 0.0
        %1075 = vmatmul.mubr.f32.gmra.mrb[0].mxu0 %v1008
        %v1076 = vpop.f32.mrb[0].mxu0
        %v1077 = vadd.f32 0.0, %v1076
        %v1078 = vpop.f32.mrb[0].mxu0
        %1079 = vdwg.mxu0
        %vm1080 = vcmp.ge.f32.partialorder %v858, 0.0
        %vm1081 = vcmp.ge.f32.partialorder %v931, 0.0
        %vm1082 = vcmp.ge.f32.partialorder %v1004, 0.0
        %vm1083 = vcmp.ge.f32.partialorder %v1077, 0.0
        %v1084 = vmul.f32 %v858, 0.2
        %v1085 = vmul.f32 %v931, 0.2
        %v1086 = vmul.f32 %v1004, 0.2
        %v1087 = vmul.f32 %v1077, 0.2
        %v1088 = vsel %vm1080, %v858, %v1084
        %v1089 = vsel %vm1081, %v931, %v1085
        %v1090 = vsel %vm1082, %v1004, %v1086
        %v1091 = vsel %vm1083, %v1077, %v1087
        %v1092 = vmul.f32 %v784, %v570
        %v1093 = vmul.f32 %v785, %v571
        %v1094 = vmul.f32 %v786, %v572
        %v1095 = vmul.f32 %v787, %v573
        %v1096 = vadd.f32 %v1092, %v1088
        %v1097 = vadd.f32 %v1093, %v1089
        %v1098 = vadd.f32 %v1094, %v1090
        %v1099 = vadd.f32 %v1095, %v1091
        %v1100 = vcombine.low %v1096, %v1098
        %v1101 = vcombine.high %v1096, %v1098
        %v1103 = vunpack.c.l.s4 1983009808
        %v1104 = vunpack.c.0.s8 %v1103
        %v1105 = vlaneseq
        %v1106 = vshrl.u32 %v1105, 7
        %v1107 = vsub.s32 %v1104, %v1106
        %v1108 = vrot.slane %v1100, %v1107
        %v1110 = vunpack.c.l.s4 1983009808
        %v1111 = vunpack.c.0.s8 %v1110
        %v1112 = vlaneseq
        %v1113 = vshrl.u32 %v1112, 7
        %v1114 = vsub.s32 %v1111, %v1113
        %v1115 = vrot.slane %v1101, %v1114
        %v1116 = vcombine.low %v1097, %v1099
        %v1117 = vcombine.high %v1097, %v1099
        %v1119 = vunpack.c.l.s4 1983009808
        %v1120 = vunpack.c.0.s8 %v1119
        %v1121 = vlaneseq
        %v1122 = vshrl.u32 %v1121, 7
        %v1123 = vsub.s32 %v1120, %v1122
        %v1124 = vrot.slane %v1116, %v1123
        %v1126 = vunpack.c.l.s4 1983009808
        %v1127 = vunpack.c.0.s8 %v1126
        %v1128 = vlaneseq
        %v1129 = vshrl.u32 %v1128, 7
        %v1130 = vsub.s32 %v1127, %v1129
        %v1131 = vrot.slane %v1117, %v1130
        %v1132 = vcombine.low %v1108, %v1124
        %v1133 = vcombine.high %v1108, %v1124
        %v1135 = vunpack.c.l.s4 1934713408
        %v1136 = vunpack.c.0.s8 %v1135
        %v1137 = vlaneseq
        %v1138 = vshrl.u32 %v1137, 7
        %v1139 = vsub.s32 %v1136, %v1138
        %v1140 = vrot.slane %v1132, %v1139
        %v1142 = vunpack.c.l.s4 1934713408
        %v1143 = vunpack.c.0.s8 %v1142
        %v1144 = vlaneseq
        %v1145 = vshrl.u32 %v1144, 7
        %v1146 = vsub.s32 %v1143, %v1145
        %v1147 = vrot.slane %v1133, %v1146
        %v1148 = vcombine.low %v1115, %v1131
        %v1149 = vcombine.high %v1115, %v1131
        %v1151 = vunpack.c.l.s4 1934713408
        %v1152 = vunpack.c.0.s8 %v1151
        %v1153 = vlaneseq
        %v1154 = vshrl.u32 %v1153, 7
        %v1155 = vsub.s32 %v1152, %v1154
        %v1156 = vrot.slane %v1148, %v1155
        %v1158 = vunpack.c.l.s4 1934713408
        %v1159 = vunpack.c.0.s8 %v1158
        %v1160 = vlaneseq
        %v1161 = vshrl.u32 %v1160, 7
        %v1162 = vsub.s32 %v1159, %v1161
        %v1163 = vrot.slane %v1149, %v1162
        %v1164 = vcombine.high %v1140, 0.0
        %v1165 = vcombine.high %v1147, 0.0
        %v1166 = vcombine.high %v1156, 0.0
        %v1167 = vcombine.high %v1163, 0.0
        %v1168 = vcombine.low %v1140, %v1147
        %v1170 = vunpack.c.l.s4 1983009808
        %v1171 = vunpack.c.0.s8 %v1170
        %v1172 = vlaneseq
        %v1173 = vshrl.u32 %v1172, 7
        %v1174 = vsub.s32 %v1171, %v1173
        %v1175 = vrot.slane %v1168, %v1174
        %v1176 = vcombine.low %v1164, %v1165
        %v1178 = vunpack.c.l.s4 1983009808
        %v1179 = vunpack.c.0.s8 %v1178
        %v1180 = vlaneseq
        %v1181 = vshrl.u32 %v1180, 7
        %v1182 = vsub.s32 %v1179, %v1181
        %v1183 = vrot.slane %v1176, %v1182
        %v1184 = vcombine.low %v1156, %v1163
        %v1186 = vunpack.c.l.s4 1983009808
        %v1187 = vunpack.c.0.s8 %v1186
        %v1188 = vlaneseq
        %v1189 = vshrl.u32 %v1188, 7
        %v1190 = vsub.s32 %v1187, %v1189
        %v1191 = vrot.slane %v1184, %v1190
        %v1192 = vcombine.low %v1166, %v1167
        %v1194 = vunpack.c.l.s4 1983009808
        %v1195 = vunpack.c.0.s8 %v1194
        %v1196 = vlaneseq
        %v1197 = vshrl.u32 %v1196, 7
        %v1198 = vsub.s32 %v1195, %v1197
        %v1199 = vrot.slane %v1192, %v1198
        %v1200 = vcombine.low %v1175, %v1183
        %v1201 = vcombine.high %v1175, %v1183
        %v1203 = vunpack.c.l.s4 1934713408
        %v1204 = vunpack.c.0.s8 %v1203
        %v1205 = vlaneseq
        %v1206 = vshrl.u32 %v1205, 7
        %v1207 = vsub.s32 %v1204, %v1206
        %v1208 = vrot.slane %v1200, %v1207
        %v1210 = vunpack.c.l.s4 1934713408
        %v1211 = vunpack.c.0.s8 %v1210
        %v1212 = vlaneseq
        %v1213 = vshrl.u32 %v1212, 7
        %v1214 = vsub.s32 %v1211, %v1213
        %v1215 = vrot.slane %v1201, %v1214
        %v1216 = vcombine.low %v1191, %v1199
        %v1217 = vcombine.high %v1191, %v1199
        %v1219 = vunpack.c.l.s4 1934713408
        %v1220 = vunpack.c.0.s8 %v1219
        %v1221 = vlaneseq
        %v1222 = vshrl.u32 %v1221, 7
        %v1223 = vsub.s32 %v1220, %v1222
        %v1224 = vrot.slane %v1216, %v1223
        %v1226 = vunpack.c.l.s4 1934713408
        %v1227 = vunpack.c.0.s8 %v1226
        %v1228 = vlaneseq
        %v1229 = vshrl.u32 %v1228, 7
        %v1230 = vsub.s32 %v1227, %v1229
        %v1231 = vrot.slane %v1217, %v1230
        %v1232 = vcombine.low %v1208, %v1224
        %v1233 = vcombine.high %v1208, %v1224
        %v1234 = vcombine.low %v1215, %v1231
        %v1235 = vcombine.high %v1215, %v1231
        %1237 = vrot.lane.b32.xlu0 %v1233, 8
        %v1238 = vpop.permute.xlu0 %1237
        %1241 = vrot.lane.b32.xlu0 %v1234, 16
        %v1242 = vpop.permute.xlu0 %1241
        %1245 = vrot.lane.b32.xlu0 %v1235, 24
        %v1246 = vpop.permute.xlu0 %1245
        %v1248 = vsel %vm723, %v1232, %v1238
        %vm1249 = vcmask 130048
        %v1250 = vsel %vm1249, %v1248, %v1242
        %vm1251 = vcmask 195584
        %v1252 = vsel %vm1251, %v1250, %v1246
        %v1253 = vadd.f32 %v275, %v1252
        %v1254 = vsel %vm280, %v1253, 0.0
        %1255 = vadd.xlane.f32.xlu0 %v1254
        %v1256 = vpop.xlane.xlu0 %1255
        %v1257 = vrcp.pop 32.0
        %v1258 = vmul.f32 %v1256, %v1257
        %v1259 = vsub.f32 %v1253, %v1258
        %v1260 = vmul.f32 %v1259, %v1259
        %v1261 = vsel %vm280, %v1260, 0.0
        %1262 = vadd.xlane.f32.xlu0 %v1261
        %v1263 = vpop.xlane.xlu0 %1262
        %v1264 = vmul.f32 %v1263, %v1257
        %v1265 = vadd.f32 %v1264, 1e-05
        %v1266 = vrsqrt.pop %v1265
        %v1267 = vmul.f32 %v1259, %v1266
        %v1268 = vld [vmem:[%s4] sm:$0x1]
        %v1270 = vlaneseq
        %v1271 = vshrl.u32 %v1270, 7
        %v1272 = vsub.s32 0, %v1271
        %v1273 = vrot.slane %v1268, %v1272
        %v1275 = vmul.f32 %v1267, %v1273
        %v1276 = vld [vmem:[%s5] sm:$0x1]
        %v1278 = vlaneseq
        %v1279 = vshrl.u32 %v1278, 7
        %v1280 = vsub.s32 0, %v1279
        %v1281 = vrot.slane %v1276, %v1280
        %v1283 = vadd.f32 %v1275, %v1281
        %s1284 = scalar_lea.vmem %s2, 32
        %v1285 = vld [vmem:[%s1284] sm:$0xff]
        %v1286 = vld [vmem:[%s1284 + $0x8] sm:$0xff]
        %v1287 = vld [vmem:[%s1284 + $0x10] sm:$0xff]
        %v1288 = vld [vmem:[%s1284 + $0x18] sm:$0xff]
        %v1290 = vsel %vm280, %v1283, 0
        %1292 = vmatprep.subr.mxu0 0.0
        %1293 = vmatpush1.msra.mxu0 %v1285
        %1294 = vmatprep.subr.mxu0 0.0
        %1295 = vmatpush1.msra.mxu0 %v1286
        %1296 = vmatprep.subr.mxu0 0.0
        %1297 = vmatpush1.msra.mxu0 %v1287
        %1298 = vmatprep.subr.mxu0 0.0
        %1299 = vmatpush1.msra.mxu0 %v1288
        %1300 = vmatprep.subr.mxu0 0.0
        %1301 = vmatpush1.msra.mxu0 0.0
        %1302 = vmatprep.subr.mxu0 0.0
        %1303 = vmatpush1.msra.mxu0 0.0
        %1304 = vmatprep.subr.mxu0 0.0
        %1305 = vmatpush1.msra.mxu0 0.0
        %1306 = vmatprep.subr.mxu0 0.0
        %1307 = vmatpush1.msra.mxu0 0.0
        %1308 = vmatprep.subr.mxu0 0.0
        %1309 = vmatpush1.msra.mxu0 0.0
        %1310 = vmatprep.subr.mxu0 0.0
        %1311 = vmatpush1.msra.mxu0 0.0
        %1312 = vmatprep.subr.mxu0 0.0
        %1313 = vmatpush1.msra.mxu0 0.0
        %1314 = vmatprep.subr.mxu0 0.0
        %1315 = vmatpush1.msra.mxu0 0.0
        %1316 = vmatprep.subr.mxu0 0.0
        %1317 = vmatpush1.msra.mxu0 0.0
        %1318 = vmatprep.subr.mxu0 0.0
        %1319 = vmatpush1.msra.mxu0 0.0
        %1320 = vmatprep.subr.mxu0 0.0
        %1321 = vmatpush1.msra.mxu0 0.0
        %1322 = vmatprep.subr.mxu0 0.0
        %1323 = vmatpush1.msra.mxu0 0.0
        %1324 = vmatprep.subr.mxu0 0.0
        %1325 = vmatpush1.msra.mxu0 0.0
        %1326 = vmatprep.subr.mxu0 0.0
        %1327 = vmatpush1.msra.mxu0 0.0
        %1328 = vmatprep.subr.mxu0 0.0
        %1329 = vmatpush1.msra.mxu0 0.0
        %1330 = vmatprep.subr.mxu0 0.0
        %1331 = vmatpush1.msra.mxu0 0.0
        %1332 = vmatprep.subr.mxu0 0.0
        %1333 = vmatpush1.msra.mxu0 0.0
        %1334 = vmatprep.subr.mxu0 0.0
        %1335 = vmatpush1.msra.mxu0 0.0
        %1336 = vmatprep.subr.mxu0 0.0
        %1337 = vmatpush1.msra.mxu0 0.0
        %1338 = vmatprep.subr.mxu0 0.0
        %1339 = vmatpush1.msra.mxu0 0.0
        %1340 = vmatprep.subr.mxu0 0.0
        %1341 = vmatpush1.msra.mxu0 0.0
        %1342 = vmatprep.subr.mxu0 0.0
        %1343 = vmatpush1.msra.mxu0 0.0
        %1344 = vmatprep.subr.mxu0 0.0
        %1345 = vmatpush1.msra.mxu0 0.0
        %1346 = vmatprep.subr.mxu0 0.0
        %1347 = vmatpush1.msra.mxu0 0.0
        %1348 = vmatprep.subr.mxu0 0.0
        %1349 = vmatpush1.msra.mxu0 0.0
        %1350 = vmatprep.subr.mxu0 0.0
        %1351 = vmatpush1.msra.mxu0 0.0
        %1352 = vmatprep.subr.mxu0 0.0
        %1353 = vmatpush1.msra.mxu0 0.0
        %1354 = vmatprep.subr.mxu0 0.0
        %1355 = vmatpush1.msra.mxu0 0.0
        %1356 = vmatprep.mubr.f32.mxu0 0.0
        %1357 = vmatmul.mubr.f32.gmra.mrb[0].mxu0 %v1290
        %v1358 = vpop.f32.mrb[0].mxu0
        %v1359 = vadd.f32 0.0, %v1358
        %v1360 = vpop.f32.mrb[0].mxu0
        %1361 = vdwg.mxu0
        %s1362 = scalar_lea.vmem %s3, 32
        %v1363 = vld [vmem:[%s1362] sm:$0xff]
        %v1364 = vld [vmem:[%s1362 + $0x8] sm:$0xff]
        %v1365 = vld [vmem:[%s1362 + $0x10] sm:$0xff]
        %v1366 = vld [vmem:[%s1362 + $0x18] sm:$0xff]
        %1367 = vmatprep.subr.mxu0 0.0
        %1368 = vmatpush1.msra.mxu0 %v1363
        %1369 = vmatprep.subr.mxu0 0.0
        %1370 = vmatpush1.msra.mxu0 %v1364
        %1371 = vmatprep.subr.mxu0 0.0
        %1372 = vmatpush1.msra.mxu0 %v1365
        %1373 = vmatprep.subr.mxu0 0.0
        %1374 = vmatpush1.msra.mxu0 %v1366
        %1375 = vmatprep.subr.mxu0 0.0
        %1376 = vmatpush1.msra.mxu0 0.0
        %1377 = vmatprep.subr.mxu0 0.0
        %1378 = vmatpush1.msra.mxu0 0.0
        %1379 = vmatprep.subr.mxu0 0.0
        %1380 = vmatpush1.msra.mxu0 0.0
        %1381 = vmatprep.subr.mxu0 0.0
        %1382 = vmatpush1.msra.mxu0 0.0
        %1383 = vmatprep.subr.mxu0 0.0
        %1384 = vmatpush1.msra.mxu0 0.0
        %1385 = vmatprep.subr.mxu0 0.0
        %1386 = vmatpush1.msra.mxu0 0.0
        %1387 = vmatprep.subr.mxu0 0.0
        %1388 = vmatpush1.msra.mxu0 0.0
        %1389 = vmatprep.subr.mxu0 0.0
        %1390 = vmatpush1.msra.mxu0 0.0
        %1391 = vmatprep.subr.mxu0 0.0
        %1392 = vmatpush1.msra.mxu0 0.0
        %1393 = vmatprep.subr.mxu0 0.0
        %1394 = vmatpush1.msra.mxu0 0.0
        %1395 = vmatprep.subr.mxu0 0.0
        %1396 = vmatpush1.msra.mxu0 0.0
        %1397 = vmatprep.subr.mxu0 0.0
        %1398 = vmatpush1.msra.mxu0 0.0
        %1399 = vmatprep.subr.mxu0 0.0
        %1400 = vmatpush1.msra.mxu0 0.0
        %1401 = vmatprep.subr.mxu0 0.0
        %1402 = vmatpush1.msra.mxu0 0.0
        %1403 = vmatprep.subr.mxu0 0.0
        %1404 = vmatpush1.msra.mxu0 0.0
        %1405 = vmatprep.subr.mxu0 0.0
        %1406 = vmatpush1.msra.mxu0 0.0
        %1407 = vmatprep.subr.mxu0 0.0
        %1408 = vmatpush1.msra.mxu0 0.0
        %1409 = vmatprep.subr.mxu0 0.0
        %1410 = vmatpush1.msra.mxu0 0.0
        %1411 = vmatprep.subr.mxu0 0.0
        %1412 = vmatpush1.msra.mxu0 0.0
        %1413 = vmatprep.subr.mxu0 0.0
        %1414 = vmatpush1.msra.mxu0 0.0
        %1415 = vmatprep.subr.mxu0 0.0
        %1416 = vmatpush1.msra.mxu0 0.0
        %1417 = vmatprep.subr.mxu0 0.0
        %1418 = vmatpush1.msra.mxu0 0.0
        %1419 = vmatprep.subr.mxu0 0.0
        %1420 = vmatpush1.msra.mxu0 0.0
        %1421 = vmatprep.subr.mxu0 0.0
        %1422 = vmatpush1.msra.mxu0 0.0
        %1423 = vmatprep.subr.mxu0 0.0
        %1424 = vmatpush1.msra.mxu0 0.0
        %1425 = vmatprep.subr.mxu0 0.0
        %1426 = vmatpush1.msra.mxu0 0.0
        %1427 = vmatprep.subr.mxu0 0.0
        %1428 = vmatpush1.msra.mxu0 0.0
        %1429 = vmatprep.subr.mxu0 0.0
        %1430 = vmatpush1.msra.mxu0 0.0
        %1431 = vmatprep.mubr.f32.mxu0 0.0
        %1432 = vmatmul.mubr.f32.gmra.mrb[0].mxu0 %v1290
        %v1433 = vpop.f32.mrb[0].mxu0
        %v1434 = vadd.f32 0.0, %v1433
        %v1435 = vpop.f32.mrb[0].mxu0
        %1436 = vdwg.mxu0
        %1438 = vrot.lane.b32.xlu0 %v1359, 120
        %v1439 = vpop.permute.xlu0 %1438
        %1441 = vrot.lane.b32.xlu0 %v1359, 112
        %v1442 = vpop.permute.xlu0 %1441
        %1444 = vrot.lane.b32.xlu0 %v1359, 104
        %v1445 = vpop.permute.xlu0 %1444
        %v1447 = vcombine.low %v1359, %v1442
        %v1448 = vcombine.high %v1359, %v1442
        %v1450 = vunpack.c.l.s4 1983009808
        %v1451 = vunpack.c.0.s8 %v1450
        %v1452 = vlaneseq
        %v1453 = vshrl.u32 %v1452, 7
        %v1454 = vsub.s32 %v1451, %v1453
        %v1455 = vrot.slane %v1447, %v1454
        %v1457 = vunpack.c.l.s4 1983009808
        %v1458 = vunpack.c.0.s8 %v1457
        %v1459 = vlaneseq
        %v1460 = vshrl.u32 %v1459, 7
        %v1461 = vsub.s32 %v1458, %v1460
        %v1462 = vrot.slane %v1448, %v1461
        %v1463 = vcombine.low %v1439, %v1445
        %v1464 = vcombine.high %v1439, %v1445
        %v1466 = vunpack.c.l.s4 1983009808
        %v1467 = vunpack.c.0.s8 %v1466
        %v1468 = vlaneseq
        %v1469 = vshrl.u32 %v1468, 7
        %v1470 = vsub.s32 %v1467, %v1469
        %v1471 = vrot.slane %v1463, %v1470
        %v1473 = vunpack.c.l.s4 1983009808
        %v1474 = vunpack.c.0.s8 %v1473
        %v1475 = vlaneseq
        %v1476 = vshrl.u32 %v1475, 7
        %v1477 = vsub.s32 %v1474, %v1476
        %v1478 = vrot.slane %v1464, %v1477
        %v1479 = vcombine.low %v1455, %v1471
        %v1480 = vcombine.high %v1455, %v1471
        %v1482 = vunpack.c.l.s4 1934713408
        %v1483 = vunpack.c.0.s8 %v1482
        %v1484 = vlaneseq
        %v1485 = vshrl.u32 %v1484, 7
        %v1486 = vsub.s32 %v1483, %v1485
        %v1487 = vrot.slane %v1479, %v1486
        %v1489 = vunpack.c.l.s4 1934713408
        %v1490 = vunpack.c.0.s8 %v1489
        %v1491 = vlaneseq
        %v1492 = vshrl.u32 %v1491, 7
        %v1493 = vsub.s32 %v1490, %v1492
        %v1494 = vrot.slane %v1480, %v1493
        %v1495 = vcombine.low %v1462, %v1478
        %v1496 = vcombine.high %v1462, %v1478
        %v1498 = vunpack.c.l.s4 1934713408
        %v1499 = vunpack.c.0.s8 %v1498
        %v1500 = vlaneseq
        %v1501 = vshrl.u32 %v1500, 7
        %v1502 = vsub.s32 %v1499, %v1501
        %v1503 = vrot.slane %v1495, %v1502
        %v1505 = vunpack.c.l.s4 1934713408
        %v1506 = vunpack.c.0.s8 %v1505
        %v1507 = vlaneseq
        %v1508 = vshrl.u32 %v1507, 7
        %v1509 = vsub.s32 %v1506, %v1508
        %v1510 = vrot.slane %v1496, %v1509
        %v1511 = vcombine.high %v1487, 0.0
        %v1512 = vcombine.high %v1494, 0.0
        %v1513 = vcombine.high %v1503, 0.0
        %v1514 = vcombine.high %v1510, 0.0
        %v1515 = vcombine.low %v1487, %v1494
        %v1517 = vunpack.c.l.s4 1983009808
        %v1518 = vunpack.c.0.s8 %v1517
        %v1519 = vlaneseq
        %v1520 = vshrl.u32 %v1519, 7
        %v1521 = vsub.s32 %v1518, %v1520
        %v1522 = vrot.slane %v1515, %v1521
        %v1523 = vcombine.low %v1511, %v1512
        %v1525 = vunpack.c.l.s4 1983009808
        %v1526 = vunpack.c.0.s8 %v1525
        %v1527 = vlaneseq
        %v1528 = vshrl.u32 %v1527, 7
        %v1529 = vsub.s32 %v1526, %v1528
        %v1530 = vrot.slane %v1523, %v1529
        %v1531 = vcombine.low %v1503, %v1510
        %v1533 = vunpack.c.l.s4 1983009808
        %v1534 = vunpack.c.0.s8 %v1533
        %v1535 = vlaneseq
        %v1536 = vshrl.u32 %v1535, 7
        %v1537 = vsub.s32 %v1534, %v1536
        %v1538 = vrot.slane %v1531, %v1537
        %v1539 = vcombine.low %v1513, %v1514
        %v1541 = vunpack.c.l.s4 1983009808
        %v1542 = vunpack.c.0.s8 %v1541
        %v1543 = vlaneseq
        %v1544 = vshrl.u32 %v1543, 7
        %v1545 = vsub.s32 %v1542, %v1544
        %v1546 = vrot.slane %v1539, %v1545
        %v1547 = vcombine.low %v1522, %v1530
        %v1548 = vcombine.high %v1522, %v1530
        %v1550 = vunpack.c.l.s4 1934713408
        %v1551 = vunpack.c.0.s8 %v1550
        %v1552 = vlaneseq
        %v1553 = vshrl.u32 %v1552, 7
        %v1554 = vsub.s32 %v1551, %v1553
        %v1555 = vrot.slane %v1547, %v1554
        %v1557 = vunpack.c.l.s4 1934713408
        %v1558 = vunpack.c.0.s8 %v1557
        %v1559 = vlaneseq
        %v1560 = vshrl.u32 %v1559, 7
        %v1561 = vsub.s32 %v1558, %v1560
        %v1562 = vrot.slane %v1548, %v1561
        %v1563 = vcombine.low %v1538, %v1546
        %v1564 = vcombine.high %v1538, %v1546
        %v1566 = vunpack.c.l.s4 1934713408
        %v1567 = vunpack.c.0.s8 %v1566
        %v1568 = vlaneseq
        %v1569 = vshrl.u32 %v1568, 7
        %v1570 = vsub.s32 %v1567, %v1569
        %v1571 = vrot.slane %v1563, %v1570
        %v1573 = vunpack.c.l.s4 1934713408
        %v1574 = vunpack.c.0.s8 %v1573
        %v1575 = vlaneseq
        %v1576 = vshrl.u32 %v1575, 7
        %v1577 = vsub.s32 %v1574, %v1576
        %v1578 = vrot.slane %v1564, %v1577
        %v1579 = vcombine.low %v1555, %v1571
        %v1580 = vcombine.high %v1555, %v1571
        %v1581 = vcombine.low %v1562, %v1578
        %v1582 = vcombine.high %v1562, %v1578
        %1583 = vxpose.xlu0.b32.start [1/16] %v1434, 128
        %1584 = vxpose.xlu0.b32.cont [2/16] 0.0, 128
        %1585 = vxpose.xlu0.b32.cont [3/16] 0.0, 128
        %1586 = vxpose.xlu0.b32.cont [4/16] 0.0, 128
        %1587 = vxpose.xlu0.b32.cont [5/16] 0.0, 128
        %1588 = vxpose.xlu0.b32.cont [6/16] 0.0, 128
        %1589 = vxpose.xlu0.b32.cont [7/16] 0.0, 128
        %1590 = vxpose.xlu0.b32.cont [8/16] 0.0, 128
        %1591 = vxpose.xlu0.b32.cont [9/16] 0.0, 128
        %1592 = vxpose.xlu0.b32.cont [10/16] 0.0, 128
        %1593 = vxpose.xlu0.b32.cont [11/16] 0.0, 128
        %1594 = vxpose.xlu0.b32.cont [12/16] 0.0, 128
        %1595 = vxpose.xlu0.b32.cont [13/16] 0.0, 128
        %1596 = vxpose.xlu0.b32.cont [14/16] 0.0, 128
        %1597 = vxpose.xlu0.b32.cont [15/16] 0.0, 128
        %1598 = vxpose.xlu0.b32.end [16/16] 0.0, 128
        %v1599 = vpop.trf.xlu0
        %v1600 = vpop.trf.xlu0
        %v1601 = vpop.trf.xlu0
        %v1602 = vpop.trf.xlu0
        %v1603 = vpop.trf.xlu0
        %v1604 = vpop.trf.xlu0
        %v1605 = vpop.trf.xlu0
        %v1606 = vpop.trf.xlu0
        %v1607 = vpop.trf.xlu0
        %v1608 = vpop.trf.xlu0
        %v1609 = vpop.trf.xlu0
        %v1610 = vpop.trf.xlu0
        %v1611 = vpop.trf.xlu0
        %v1612 = vpop.trf.xlu0
        %v1613 = vpop.trf.xlu0
        %v1614 = vpop.trf.xlu0
        %v1615 = vlaneseq
        %v1616 = vshrl.u32 %v1615, 7
        %v1617 = vsub.s32 0, %v1616
        %v1618 = vrot.slane %v1599, %v1617
        %1620 = vbcast.lane.b32.xlu0 %v1618, 256
        %v1621 = vpop.permute.xlu0 %1620
        %v1622 = vlaneseq
        %v1623 = vshrl.u32 %v1622, 7
        %v1624 = vsub.s32 1, %v1623
        %v1625 = vrot.slane %v1599, %v1624
        %1627 = vbcast.lane.b32.xlu0 %v1625, 256
        %v1628 = vpop.permute.xlu0 %1627
        %v1629 = vlaneseq
        %v1630 = vshrl.u32 %v1629, 7
        %v1631 = vsub.s32 2, %v1630
        %v1632 = vrot.slane %v1599, %v1631
        %1634 = vbcast.lane.b32.xlu0 %v1632, 256
        %v1635 = vpop.permute.xlu0 %1634
        %v1636 = vlaneseq
        %v1637 = vshrl.u32 %v1636, 7
        %v1638 = vsub.s32 3, %v1637
        %v1639 = vrot.slane %v1599, %v1638
        %1641 = vbcast.lane.b32.xlu0 %v1639, 256
        %v1642 = vpop.permute.xlu0 %1641
        %1644 = vrot.lane.b32.xlu0 %v1434, 124
        %v1645 = vpop.permute.xlu0 %1644
        %1647 = vxpose.xlu0.b32.start [1/16] %v1645, 128
        %1648 = vxpose.xlu0.b32.cont [2/16] 0.0, 128
        %1649 = vxpose.xlu0.b32.cont [3/16] 0.0, 128
        %1650 = vxpose.xlu0.b32.cont [4/16] 0.0, 128
        %1651 = vxpose.xlu0.b32.cont [5/16] 0.0, 128
        %1652 = vxpose.xlu0.b32.cont [6/16] 0.0, 128
        %1653 = vxpose.xlu0.b32.cont [7/16] 0.0, 128
        %1654 = vxpose.xlu0.b32.cont [8/16] 0.0, 128
        %1655 = vxpose.xlu0.b32.cont [9/16] 0.0, 128
        %1656 = vxpose.xlu0.b32.cont [10/16] 0.0, 128
        %1657 = vxpose.xlu0.b32.cont [11/16] 0.0, 128
        %1658 = vxpose.xlu0.b32.cont [12/16] 0.0, 128
        %1659 = vxpose.xlu0.b32.cont [13/16] 0.0, 128
        %1660 = vxpose.xlu0.b32.cont [14/16] 0.0, 128
        %1661 = vxpose.xlu0.b32.cont [15/16] 0.0, 128
        %1662 = vxpose.xlu0.b32.end [16/16] 0.0, 128
        %v1663 = vpop.trf.xlu0
        %v1664 = vpop.trf.xlu0
        %v1665 = vpop.trf.xlu0
        %v1666 = vpop.trf.xlu0
        %v1667 = vpop.trf.xlu0
        %v1668 = vpop.trf.xlu0
        %v1669 = vpop.trf.xlu0
        %v1670 = vpop.trf.xlu0
        %v1671 = vpop.trf.xlu0
        %v1672 = vpop.trf.xlu0
        %v1673 = vpop.trf.xlu0
        %v1674 = vpop.trf.xlu0
        %v1675 = vpop.trf.xlu0
        %v1676 = vpop.trf.xlu0
        %v1677 = vpop.trf.xlu0
        %v1678 = vpop.trf.xlu0
        %v1681 = vunpack.c.l.s4 1966171168
        %v1682 = vunpack.c.0.s8 %v1681
        %v1683 = vlaneseq
        %v1684 = vshrl.u32 %v1683, 7
        %v1685 = vsub.s32 %v1682, %v1684
        %v1686 = vrot.slane %v1663, %v1685
        %v1687 = vcombine.high %v1686, %v1686
        %v1689 = vunpack.c.l.s4 1966171168
        %v1690 = vunpack.c.0.s8 %v1689
        %v1691 = vlaneseq
        %v1692 = vshrl.u32 %v1691, 7
        %v1693 = vsub.s32 %v1690, %v1692
        %v1694 = vrot.slane %v1686, %v1693
        %v1696 = vunpack.c.l.s4 1966171168
        %v1697 = vunpack.c.0.s8 %v1696
        %v1698 = vlaneseq
        %v1699 = vshrl.u32 %v1698, 7
        %v1700 = vsub.s32 %v1697, %v1699
        %v1701 = vrot.slane %v1687, %v1700
        %v1702 = vcombine.high %v1694, %v1694
        %v1703 = vcombine.high %v1701, %v1701
        %v1704 = vlaneseq
        %v1705 = vshrl.u32 %v1704, 7
        %v1706 = vsub.s32 0, %v1705
        %v1707 = vrot.slane %v1694, %v1706
        %v1708 = vlaneseq
        %v1709 = vshrl.u32 %v1708, 7
        %v1710 = vsub.s32 0, %v1709
        %v1711 = vrot.slane %v1701, %v1710
        %v1712 = vlaneseq
        %v1713 = vshrl.u32 %v1712, 7
        %v1714 = vsub.s32 0, %v1713
        %v1715 = vrot.slane %v1702, %v1714
        %v1716 = vlaneseq
        %v1717 = vshrl.u32 %v1716, 7
        %v1718 = vsub.s32 0, %v1717
        %v1719 = vrot.slane %v1703, %v1718
        %v1724 = vadd.f32 %v1621, %v1707
        %v1725 = vadd.f32 %v1628, %v1711
        %v1726 = vadd.f32 %v1635, %v1715
        %v1727 = vadd.f32 %v1642, %v1719
        %v1728 = vadd.f32 %v1724, %v267
        %v1729 = vadd.f32 %v1725, %v267
        %v1730 = vadd.f32 %v1726, %v267
        %v1731 = vadd.f32 %v1727, %v267
        %v1732 = vsel %vm723, %v1728, -inf
        %1733 = vmax.xlane.f32.xlu0 %v1732
        %v1734 = vpop.xlane.xlu0 %1733
        %v1735 = vsel %vm723, %v1729, -inf
        %1736 = vmax.xlane.f32.xlu0 %v1735
        %v1737 = vpop.xlane.xlu0 %1736
        %v1738 = vsel %vm723, %v1730, -inf
        %1739 = vmax.xlane.f32.xlu0 %v1738
        %v1740 = vpop.xlane.xlu0 %1739
        %v1741 = vsel %vm723, %v1731, -inf
        %1742 = vmax.xlane.f32.xlu0 %v1741
        %v1743 = vpop.xlane.xlu0 %1742
        %v1744 = vsub.f32 %v1728, %v1734
        %v1745 = vsub.f32 %v1729, %v1737
        %v1746 = vsub.f32 %v1730, %v1740
        %v1747 = vsub.f32 %v1731, %v1743
        %v1748 = vmul.f32 %v1744, 1.442695
        %v1749 = vpow.pop %v1748
        %v1750 = vmul.f32 %v1745, 1.442695
        %v1751 = vpow.pop %v1750
        %v1752 = vmul.f32 %v1746, 1.442695
        %v1753 = vpow.pop %v1752
        %v1754 = vmul.f32 %v1747, 1.442695
        %v1755 = vpow.pop %v1754
        %v1756 = vsel %vm723, %v1749, 0.0
        %1757 = vadd.xlane.f32.xlu0 %v1756
        %v1758 = vpop.xlane.xlu0 %1757
        %v1759 = vsel %vm723, %v1751, 0.0
        %1760 = vadd.xlane.f32.xlu0 %v1759
        %v1761 = vpop.xlane.xlu0 %1760
        %v1762 = vsel %vm723, %v1753, 0.0
        %1763 = vadd.xlane.f32.xlu0 %v1762
        %v1764 = vpop.xlane.xlu0 %1763
        %v1765 = vsel %vm723, %v1755, 0.0
        %1766 = vadd.xlane.f32.xlu0 %v1765
        %v1767 = vpop.xlane.xlu0 %1766
        %v1768 = vrcp.pop %v1758
        %v1769 = vrcp.pop %v1761
        %v1770 = vrcp.pop %v1764
        %v1771 = vrcp.pop %v1767
        %v1772 = vmul.f32 %v1749, %v1768
        %v1773 = vmul.f32 %v1751, %v1769
        %v1774 = vmul.f32 %v1753, %v1770
        %v1775 = vmul.f32 %v1755, %v1771
        %v1776 = vmul.f32 %v1772, %v274
        %v1777 = vmul.f32 %v1773, %v274
        %v1778 = vmul.f32 %v1774, %v274
        %v1779 = vmul.f32 %v1775, %v274
        %v1780 = vsel %vm723, %v1776, 0.0
        %1781 = vadd.xlane.f32.xlu0 %v1780
        %v1782 = vpop.xlane.xlu0 %1781
        %v1783 = vsel %vm723, %v1777, 0.0
        %1784 = vadd.xlane.f32.xlu0 %v1783
        %v1785 = vpop.xlane.xlu0 %1784
        %v1786 = vsel %vm723, %v1778, 0.0
        %1787 = vadd.xlane.f32.xlu0 %v1786
        %v1788 = vpop.xlane.xlu0 %1787
        %v1789 = vsel %vm723, %v1779, 0.0
        %1790 = vadd.xlane.f32.xlu0 %v1789
        %v1791 = vpop.xlane.xlu0 %1790
        %v1792 = vsub.f32 1.0, %v1782
        %v1793 = vsub.f32 1.0, %v1785
        %v1794 = vsub.f32 1.0, %v1788
        %v1795 = vsub.f32 1.0, %v1791
        %v1797 = vsel %vm723, %v1776, 0
        %1799 = vmatprep.subr.mxu0 0.0
        %1800 = vmatpush1.msra.mxu0 %v1579
        %1801 = vmatprep.subr.mxu0 0.0
        %1802 = vmatpush1.msra.mxu0 0.0
        %1803 = vmatprep.subr.mxu0 0.0
        %1804 = vmatpush1.msra.mxu0 0.0
        %1805 = vmatprep.subr.mxu0 0.0
        %1806 = vmatpush1.msra.mxu0 0.0
        %1807 = vmatprep.subr.mxu0 0.0
        %1808 = vmatpush1.msra.mxu0 0.0
        %1809 = vmatprep.subr.mxu0 0.0
        %1810 = vmatpush1.msra.mxu0 0.0
        %1811 = vmatprep.subr.mxu0 0.0
        %1812 = vmatpush1.msra.mxu0 0.0
        %1813 = vmatprep.subr.mxu0 0.0
        %1814 = vmatpush1.msra.mxu0 0.0
        %1815 = vmatprep.subr.mxu0 0.0
        %1816 = vmatpush1.msra.mxu0 0.0
        %1817 = vmatprep.subr.mxu0 0.0
        %1818 = vmatpush1.msra.mxu0 0.0
        %1819 = vmatprep.subr.mxu0 0.0
        %1820 = vmatpush1.msra.mxu0 0.0
        %1821 = vmatprep.subr.mxu0 0.0
        %1822 = vmatpush1.msra.mxu0 0.0
        %1823 = vmatprep.subr.mxu0 0.0
        %1824 = vmatpush1.msra.mxu0 0.0
        %1825 = vmatprep.subr.mxu0 0.0
        %1826 = vmatpush1.msra.mxu0 0.0
        %1827 = vmatprep.subr.mxu0 0.0
        %1828 = vmatpush1.msra.mxu0 0.0
        %1829 = vmatprep.subr.mxu0 0.0
        %1830 = vmatpush1.msra.mxu0 0.0
        %1831 = vmatprep.subr.mxu0 0.0
        %1832 = vmatpush1.msra.mxu0 0.0
        %1833 = vmatprep.subr.mxu0 0.0
        %1834 = vmatpush1.msra.mxu0 0.0
        %1835 = vmatprep.subr.mxu0 0.0
        %1836 = vmatpush1.msra.mxu0 0.0
        %1837 = vmatprep.subr.mxu0 0.0
        %1838 = vmatpush1.msra.mxu0 0.0
        %1839 = vmatprep.subr.mxu0 0.0
        %1840 = vmatpush1.msra.mxu0 0.0
        %1841 = vmatprep.subr.mxu0 0.0
        %1842 = vmatpush1.msra.mxu0 0.0
        %1843 = vmatprep.subr.mxu0 0.0
        %1844 = vmatpush1.msra.mxu0 0.0
        %1845 = vmatprep.subr.mxu0 0.0
        %1846 = vmatpush1.msra.mxu0 0.0
        %1847 = vmatprep.subr.mxu0 0.0
        %1848 = vmatpush1.msra.mxu0 0.0
        %1849 = vmatprep.subr.mxu0 0.0
        %1850 = vmatpush1.msra.mxu0 0.0
        %1851 = vmatprep.subr.mxu0 0.0
        %1852 = vmatpush1.msra.mxu0 0.0
        %1853 = vmatprep.subr.mxu0 0.0
        %1854 = vmatpush1.msra.mxu0 0.0
        %1855 = vmatprep.subr.mxu0 0.0
        %1856 = vmatpush1.msra.mxu0 0.0
        %1857 = vmatprep.subr.mxu0 0.0
        %1858 = vmatpush1.msra.mxu0 0.0
        %1859 = vmatprep.subr.mxu0 0.0
        %1860 = vmatpush1.msra.mxu0 0.0
        %1861 = vmatprep.subr.mxu0 0.0
        %1862 = vmatpush1.msra.mxu0 0.0
        %1863 = vmatprep.mubr.f32.mxu0 0.0
        %1864 = vmatmul.mubr.f32.gmra.mrb[0].mxu0 %v1797
        %v1865 = vpop.f32.mrb[0].mxu0
        %v1866 = vadd.f32 0.0, %v1865
        %v1867 = vpop.f32.mrb[0].mxu0
        %1868 = vdwg.mxu0
        %v1870 = vsel %vm723, %v1777, 0
        %1872 = vmatprep.subr.mxu0 0.0
        %1873 = vmatpush1.msra.mxu0 %v1580
        %1874 = vmatprep.subr.mxu0 0.0
        %1875 = vmatpush1.msra.mxu0 0.0
        %1876 = vmatprep.subr.mxu0 0.0
        %1877 = vmatpush1.msra.mxu0 0.0
        %1878 = vmatprep.subr.mxu0 0.0
        %1879 = vmatpush1.msra.mxu0 0.0
        %1880 = vmatprep.subr.mxu0 0.0
        %1881 = vmatpush1.msra.mxu0 0.0
        %1882 = vmatprep.subr.mxu0 0.0
        %1883 = vmatpush1.msra.mxu0 0.0
        %1884 = vmatprep.subr.mxu0 0.0
        %1885 = vmatpush1.msra.mxu0 0.0
        %1886 = vmatprep.subr.mxu0 0.0
        %1887 = vmatpush1.msra.mxu0 0.0
        %1888 = vmatprep.subr.mxu0 0.0
        %1889 = vmatpush1.msra.mxu0 0.0
        %1890 = vmatprep.subr.mxu0 0.0
        %1891 = vmatpush1.msra.mxu0 0.0
        %1892 = vmatprep.subr.mxu0 0.0
        %1893 = vmatpush1.msra.mxu0 0.0
        %1894 = vmatprep.subr.mxu0 0.0
        %1895 = vmatpush1.msra.mxu0 0.0
        %1896 = vmatprep.subr.mxu0 0.0
        %1897 = vmatpush1.msra.mxu0 0.0
        %1898 = vmatprep.subr.mxu0 0.0
        %1899 = vmatpush1.msra.mxu0 0.0
        %1900 = vmatprep.subr.mxu0 0.0
        %1901 = vmatpush1.msra.mxu0 0.0
        %1902 = vmatprep.subr.mxu0 0.0
        %1903 = vmatpush1.msra.mxu0 0.0
        %1904 = vmatprep.subr.mxu0 0.0
        %1905 = vmatpush1.msra.mxu0 0.0
        %1906 = vmatprep.subr.mxu0 0.0
        %1907 = vmatpush1.msra.mxu0 0.0
        %1908 = vmatprep.subr.mxu0 0.0
        %1909 = vmatpush1.msra.mxu0 0.0
        %1910 = vmatprep.subr.mxu0 0.0
        %1911 = vmatpush1.msra.mxu0 0.0
        %1912 = vmatprep.subr.mxu0 0.0
        %1913 = vmatpush1.msra.mxu0 0.0
        %1914 = vmatprep.subr.mxu0 0.0
        %1915 = vmatpush1.msra.mxu0 0.0
        %1916 = vmatprep.subr.mxu0 0.0
        %1917 = vmatpush1.msra.mxu0 0.0
        %1918 = vmatprep.subr.mxu0 0.0
        %1919 = vmatpush1.msra.mxu0 0.0
        %1920 = vmatprep.subr.mxu0 0.0
        %1921 = vmatpush1.msra.mxu0 0.0
        %1922 = vmatprep.subr.mxu0 0.0
        %1923 = vmatpush1.msra.mxu0 0.0
        %1924 = vmatprep.subr.mxu0 0.0
        %1925 = vmatpush1.msra.mxu0 0.0
        %1926 = vmatprep.subr.mxu0 0.0
        %1927 = vmatpush1.msra.mxu0 0.0
        %1928 = vmatprep.subr.mxu0 0.0
        %1929 = vmatpush1.msra.mxu0 0.0
        %1930 = vmatprep.subr.mxu0 0.0
        %1931 = vmatpush1.msra.mxu0 0.0
        %1932 = vmatprep.subr.mxu0 0.0
        %1933 = vmatpush1.msra.mxu0 0.0
        %1934 = vmatprep.subr.mxu0 0.0
        %1935 = vmatpush1.msra.mxu0 0.0
        %1936 = vmatprep.mubr.f32.mxu0 0.0
        %1937 = vmatmul.mubr.f32.gmra.mrb[0].mxu0 %v1870
        %v1938 = vpop.f32.mrb[0].mxu0
        %v1939 = vadd.f32 0.0, %v1938
        %v1940 = vpop.f32.mrb[0].mxu0
        %1941 = vdwg.mxu0
        %v1943 = vsel %vm723, %v1778, 0
        %1945 = vmatprep.subr.mxu0 0.0
        %1946 = vmatpush1.msra.mxu0 %v1581
        %1947 = vmatprep.subr.mxu0 0.0
        %1948 = vmatpush1.msra.mxu0 0.0
        %1949 = vmatprep.subr.mxu0 0.0
        %1950 = vmatpush1.msra.mxu0 0.0
        %1951 = vmatprep.subr.mxu0 0.0
        %1952 = vmatpush1.msra.mxu0 0.0
        %1953 = vmatprep.subr.mxu0 0.0
        %1954 = vmatpush1.msra.mxu0 0.0
        %1955 = vmatprep.subr.mxu0 0.0
        %1956 = vmatpush1.msra.mxu0 0.0
        %1957 = vmatprep.subr.mxu0 0.0
        %1958 = vmatpush1.msra.mxu0 0.0
        %1959 = vmatprep.subr.mxu0 0.0
        %1960 = vmatpush1.msra.mxu0 0.0
        %1961 = vmatprep.subr.mxu0 0.0
        %1962 = vmatpush1.msra.mxu0 0.0
        %1963 = vmatprep.subr.mxu0 0.0
        %1964 = vmatpush1.msra.mxu0 0.0
        %1965 = vmatprep.subr.mxu0 0.0
        %1966 = vmatpush1.msra.mxu0 0.0
        %1967 = vmatprep.subr.mxu0 0.0
        %1968 = vmatpush1.msra.mxu0 0.0
        %1969 = vmatprep.subr.mxu0 0.0
        %1970 = vmatpush1.msra.mxu0 0.0
        %1971 = vmatprep.subr.mxu0 0.0
        %1972 = vmatpush1.msra.mxu0 0.0
        %1973 = vmatprep.subr.mxu0 0.0
        %1974 = vmatpush1.msra.mxu0 0.0
        %1975 = vmatprep.subr.mxu0 0.0
        %1976 = vmatpush1.msra.mxu0 0.0
        %1977 = vmatprep.subr.mxu0 0.0
        %1978 = vmatpush1.msra.mxu0 0.0
        %1979 = vmatprep.subr.mxu0 0.0
        %1980 = vmatpush1.msra.mxu0 0.0
        %1981 = vmatprep.subr.mxu0 0.0
        %1982 = vmatpush1.msra.mxu0 0.0
        %1983 = vmatprep.subr.mxu0 0.0
        %1984 = vmatpush1.msra.mxu0 0.0
        %1985 = vmatprep.subr.mxu0 0.0
        %1986 = vmatpush1.msra.mxu0 0.0
        %1987 = vmatprep.subr.mxu0 0.0
        %1988 = vmatpush1.msra.mxu0 0.0
        %1989 = vmatprep.subr.mxu0 0.0
        %1990 = vmatpush1.msra.mxu0 0.0
        %1991 = vmatprep.subr.mxu0 0.0
        %1992 = vmatpush1.msra.mxu0 0.0
        %1993 = vmatprep.subr.mxu0 0.0
        %1994 = vmatpush1.msra.mxu0 0.0
        %1995 = vmatprep.subr.mxu0 0.0
        %1996 = vmatpush1.msra.mxu0 0.0
        %1997 = vmatprep.subr.mxu0 0.0
        %1998 = vmatpush1.msra.mxu0 0.0
        %1999 = vmatprep.subr.mxu0 0.0
        %2000 = vmatpush1.msra.mxu0 0.0
        %2001 = vmatprep.subr.mxu0 0.0
        %2002 = vmatpush1.msra.mxu0 0.0
        %2003 = vmatprep.subr.mxu0 0.0
        %2004 = vmatpush1.msra.mxu0 0.0
        %2005 = vmatprep.subr.mxu0 0.0
        %2006 = vmatpush1.msra.mxu0 0.0
        %2007 = vmatprep.subr.mxu0 0.0
        %2008 = vmatpush1.msra.mxu0 0.0
        %2009 = vmatprep.mubr.f32.mxu0 0.0
        %2010 = vmatmul.mubr.f32.gmra.mrb[0].mxu0 %v1943
        %v2011 = vpop.f32.mrb[0].mxu0
        %v2012 = vadd.f32 0.0, %v2011
        %v2013 = vpop.f32.mrb[0].mxu0
        %2014 = vdwg.mxu0
        %v2016 = vsel %vm723, %v1779, 0
        %2018 = vmatprep.subr.mxu0 0.0
        %2019 = vmatpush1.msra.mxu0 %v1582
        %2020 = vmatprep.subr.mxu0 0.0
        %2021 = vmatpush1.msra.mxu0 0.0
        %2022 = vmatprep.subr.mxu0 0.0
        %2023 = vmatpush1.msra.mxu0 0.0
        %2024 = vmatprep.subr.mxu0 0.0
        %2025 = vmatpush1.msra.mxu0 0.0
        %2026 = vmatprep.subr.mxu0 0.0
        %2027 = vmatpush1.msra.mxu0 0.0
        %2028 = vmatprep.subr.mxu0 0.0
        %2029 = vmatpush1.msra.mxu0 0.0
        %2030 = vmatprep.subr.mxu0 0.0
        %2031 = vmatpush1.msra.mxu0 0.0
        %2032 = vmatprep.subr.mxu0 0.0
        %2033 = vmatpush1.msra.mxu0 0.0
        %2034 = vmatprep.subr.mxu0 0.0
        %2035 = vmatpush1.msra.mxu0 0.0
        %2036 = vmatprep.subr.mxu0 0.0
        %2037 = vmatpush1.msra.mxu0 0.0
        %2038 = vmatprep.subr.mxu0 0.0
        %2039 = vmatpush1.msra.mxu0 0.0
        %2040 = vmatprep.subr.mxu0 0.0
        %2041 = vmatpush1.msra.mxu0 0.0
        %2042 = vmatprep.subr.mxu0 0.0
        %2043 = vmatpush1.msra.mxu0 0.0
        %2044 = vmatprep.subr.mxu0 0.0
        %2045 = vmatpush1.msra.mxu0 0.0
        %2046 = vmatprep.subr.mxu0 0.0
        %2047 = vmatpush1.msra.mxu0 0.0
        %2048 = vmatprep.subr.mxu0 0.0
        %2049 = vmatpush1.msra.mxu0 0.0
        %2050 = vmatprep.subr.mxu0 0.0
        %2051 = vmatpush1.msra.mxu0 0.0
        %2052 = vmatprep.subr.mxu0 0.0
        %2053 = vmatpush1.msra.mxu0 0.0
        %2054 = vmatprep.subr.mxu0 0.0
        %2055 = vmatpush1.msra.mxu0 0.0
        %2056 = vmatprep.subr.mxu0 0.0
        %2057 = vmatpush1.msra.mxu0 0.0
        %2058 = vmatprep.subr.mxu0 0.0
        %2059 = vmatpush1.msra.mxu0 0.0
        %2060 = vmatprep.subr.mxu0 0.0
        %2061 = vmatpush1.msra.mxu0 0.0
        %2062 = vmatprep.subr.mxu0 0.0
        %2063 = vmatpush1.msra.mxu0 0.0
        %2064 = vmatprep.subr.mxu0 0.0
        %2065 = vmatpush1.msra.mxu0 0.0
        %2066 = vmatprep.subr.mxu0 0.0
        %2067 = vmatpush1.msra.mxu0 0.0
        %2068 = vmatprep.subr.mxu0 0.0
        %2069 = vmatpush1.msra.mxu0 0.0
        %2070 = vmatprep.subr.mxu0 0.0
        %2071 = vmatpush1.msra.mxu0 0.0
        %2072 = vmatprep.subr.mxu0 0.0
        %2073 = vmatpush1.msra.mxu0 0.0
        %2074 = vmatprep.subr.mxu0 0.0
        %2075 = vmatpush1.msra.mxu0 0.0
        %2076 = vmatprep.subr.mxu0 0.0
        %2077 = vmatpush1.msra.mxu0 0.0
        %2078 = vmatprep.subr.mxu0 0.0
        %2079 = vmatpush1.msra.mxu0 0.0
        %2080 = vmatprep.subr.mxu0 0.0
        %2081 = vmatpush1.msra.mxu0 0.0
        %2082 = vmatprep.mubr.f32.mxu0 0.0
        %2083 = vmatmul.mubr.f32.gmra.mrb[0].mxu0 %v2016
        %v2084 = vpop.f32.mrb[0].mxu0
        %v2085 = vadd.f32 0.0, %v2084
        %v2086 = vpop.f32.mrb[0].mxu0
        %2087 = vdwg.mxu0
        %vm2088 = vcmp.ge.f32.partialorder %v1866, 0.0
        %vm2089 = vcmp.ge.f32.partialorder %v1939, 0.0
        %vm2090 = vcmp.ge.f32.partialorder %v2012, 0.0
        %vm2091 = vcmp.ge.f32.partialorder %v2085, 0.0
        %v2092 = vmul.f32 %v1866, 0.2
        %v2093 = vmul.f32 %v1939, 0.2
        %v2094 = vmul.f32 %v2012, 0.2
        %v2095 = vmul.f32 %v2085, 0.2
        %v2096 = vsel %vm2088, %v1866, %v2092
        %v2097 = vsel %vm2089, %v1939, %v2093
        %v2098 = vsel %vm2090, %v2012, %v2094
        %v2099 = vsel %vm2091, %v2085, %v2095
        %v2100 = vmul.f32 %v1792, %v1579
        %v2101 = vmul.f32 %v1793, %v1580
        %v2102 = vmul.f32 %v1794, %v1581
        %v2103 = vmul.f32 %v1795, %v1582
        %v2104 = vadd.f32 %v2100, %v2096
        %v2105 = vadd.f32 %v2101, %v2097
        %v2106 = vadd.f32 %v2102, %v2098
        %v2107 = vadd.f32 %v2103, %v2099
        %v2108 = vcombine.low %v2104, %v2106
        %v2109 = vcombine.high %v2104, %v2106
        %v2111 = vunpack.c.l.s4 1983009808
        %v2112 = vunpack.c.0.s8 %v2111
        %v2113 = vlaneseq
        %v2114 = vshrl.u32 %v2113, 7
        %v2115 = vsub.s32 %v2112, %v2114
        %v2116 = vrot.slane %v2108, %v2115
        %v2118 = vunpack.c.l.s4 1983009808
        %v2119 = vunpack.c.0.s8 %v2118
        %v2120 = vlaneseq
        %v2121 = vshrl.u32 %v2120, 7
        %v2122 = vsub.s32 %v2119, %v2121
        %v2123 = vrot.slane %v2109, %v2122
        %v2124 = vcombine.low %v2105, %v2107
        %v2125 = vcombine.high %v2105, %v2107
        %v2127 = vunpack.c.l.s4 1983009808
        %v2128 = vunpack.c.0.s8 %v2127
        %v2129 = vlaneseq
        %v2130 = vshrl.u32 %v2129, 7
        %v2131 = vsub.s32 %v2128, %v2130
        %v2132 = vrot.slane %v2124, %v2131
        %v2134 = vunpack.c.l.s4 1983009808
        %v2135 = vunpack.c.0.s8 %v2134
        %v2136 = vlaneseq
        %v2137 = vshrl.u32 %v2136, 7
        %v2138 = vsub.s32 %v2135, %v2137
        %v2139 = vrot.slane %v2125, %v2138
        %v2140 = vcombine.low %v2116, %v2132
        %v2141 = vcombine.high %v2116, %v2132
        %v2143 = vunpack.c.l.s4 1934713408
        %v2144 = vunpack.c.0.s8 %v2143
        %v2145 = vlaneseq
        %v2146 = vshrl.u32 %v2145, 7
        %v2147 = vsub.s32 %v2144, %v2146
        %v2148 = vrot.slane %v2140, %v2147
        %v2150 = vunpack.c.l.s4 1934713408
        %v2151 = vunpack.c.0.s8 %v2150
        %v2152 = vlaneseq
        %v2153 = vshrl.u32 %v2152, 7
        %v2154 = vsub.s32 %v2151, %v2153
        %v2155 = vrot.slane %v2141, %v2154
        %v2156 = vcombine.low %v2123, %v2139
        %v2157 = vcombine.high %v2123, %v2139
        %v2159 = vunpack.c.l.s4 1934713408
        %v2160 = vunpack.c.0.s8 %v2159
        %v2161 = vlaneseq
        %v2162 = vshrl.u32 %v2161, 7
        %v2163 = vsub.s32 %v2160, %v2162
        %v2164 = vrot.slane %v2156, %v2163
        %v2166 = vunpack.c.l.s4 1934713408
        %v2167 = vunpack.c.0.s8 %v2166
        %v2168 = vlaneseq
        %v2169 = vshrl.u32 %v2168, 7
        %v2170 = vsub.s32 %v2167, %v2169
        %v2171 = vrot.slane %v2157, %v2170
        %v2172 = vcombine.high %v2148, 0.0
        %v2173 = vcombine.high %v2155, 0.0
        %v2174 = vcombine.high %v2164, 0.0
        %v2175 = vcombine.high %v2171, 0.0
        %v2176 = vcombine.low %v2148, %v2155
        %v2178 = vunpack.c.l.s4 1983009808
        %v2179 = vunpack.c.0.s8 %v2178
        %v2180 = vlaneseq
        %v2181 = vshrl.u32 %v2180, 7
        %v2182 = vsub.s32 %v2179, %v2181
        %v2183 = vrot.slane %v2176, %v2182
        %v2184 = vcombine.low %v2172, %v2173
        %v2186 = vunpack.c.l.s4 1983009808
        %v2187 = vunpack.c.0.s8 %v2186
        %v2188 = vlaneseq
        %v2189 = vshrl.u32 %v2188, 7
        %v2190 = vsub.s32 %v2187, %v2189
        %v2191 = vrot.slane %v2184, %v2190
        %v2192 = vcombine.low %v2164, %v2171
        %v2194 = vunpack.c.l.s4 1983009808
        %v2195 = vunpack.c.0.s8 %v2194
        %v2196 = vlaneseq
        %v2197 = vshrl.u32 %v2196, 7
        %v2198 = vsub.s32 %v2195, %v2197
        %v2199 = vrot.slane %v2192, %v2198
        %v2200 = vcombine.low %v2174, %v2175
        %v2202 = vunpack.c.l.s4 1983009808
        %v2203 = vunpack.c.0.s8 %v2202
        %v2204 = vlaneseq
        %v2205 = vshrl.u32 %v2204, 7
        %v2206 = vsub.s32 %v2203, %v2205
        %v2207 = vrot.slane %v2200, %v2206
        %v2208 = vcombine.low %v2183, %v2191
        %v2209 = vcombine.high %v2183, %v2191
        %v2211 = vunpack.c.l.s4 1934713408
        %v2212 = vunpack.c.0.s8 %v2211
        %v2213 = vlaneseq
        %v2214 = vshrl.u32 %v2213, 7
        %v2215 = vsub.s32 %v2212, %v2214
        %v2216 = vrot.slane %v2208, %v2215
        %v2218 = vunpack.c.l.s4 1934713408
        %v2219 = vunpack.c.0.s8 %v2218
        %v2220 = vlaneseq
        %v2221 = vshrl.u32 %v2220, 7
        %v2222 = vsub.s32 %v2219, %v2221
        %v2223 = vrot.slane %v2209, %v2222
        %v2224 = vcombine.low %v2199, %v2207
        %v2225 = vcombine.high %v2199, %v2207
        %v2227 = vunpack.c.l.s4 1934713408
        %v2228 = vunpack.c.0.s8 %v2227
        %v2229 = vlaneseq
        %v2230 = vshrl.u32 %v2229, 7
        %v2231 = vsub.s32 %v2228, %v2230
        %v2232 = vrot.slane %v2224, %v2231
        %v2234 = vunpack.c.l.s4 1934713408
        %v2235 = vunpack.c.0.s8 %v2234
        %v2236 = vlaneseq
        %v2237 = vshrl.u32 %v2236, 7
        %v2238 = vsub.s32 %v2235, %v2237
        %v2239 = vrot.slane %v2225, %v2238
        %v2240 = vcombine.low %v2216, %v2232
        %v2241 = vcombine.high %v2216, %v2232
        %v2242 = vcombine.low %v2223, %v2239
        %v2243 = vcombine.high %v2223, %v2239
        %2245 = vrot.lane.b32.xlu0 %v2241, 8
        %v2246 = vpop.permute.xlu0 %2245
        %2249 = vrot.lane.b32.xlu0 %v2242, 16
        %v2250 = vpop.permute.xlu0 %2249
        %2253 = vrot.lane.b32.xlu0 %v2243, 24
        %v2254 = vpop.permute.xlu0 %2253
        %v2256 = vsel %vm723, %v2240, %v2246
        %v2257 = vsel %vm1249, %v2256, %v2250
        %v2258 = vsel %vm1251, %v2257, %v2254
        %v2259 = vadd.f32 %v1283, %v2258
        %v2260 = vsel %vm280, %v2259, 0.0
        %2261 = vadd.xlane.f32.xlu0 %v2260
        %v2262 = vpop.xlane.xlu0 %2261
        %v2263 = vmul.f32 %v2262, %v1257
        %v2264 = vsub.f32 %v2259, %v2263
        %v2265 = vmul.f32 %v2264, %v2264
        %v2266 = vsel %vm280, %v2265, 0.0
        %2267 = vadd.xlane.f32.xlu0 %v2266
        %v2268 = vpop.xlane.xlu0 %2267
        %v2269 = vmul.f32 %v2268, %v1257
        %v2270 = vadd.f32 %v2269, 1e-05
        %v2271 = vrsqrt.pop %v2270
        %v2272 = vmul.f32 %v2264, %v2271
        %s2273 = scalar_lea.vmem %s4, 1
        %v2274 = vld [vmem:[%s2273] sm:$0x1]
        %v2276 = vlaneseq
        %v2277 = vshrl.u32 %v2276, 7
        %v2278 = vsub.s32 0, %v2277
        %v2279 = vrot.slane %v2274, %v2278
        %v2281 = vmul.f32 %v2272, %v2279
        %s2282 = scalar_lea.vmem %s5, 1
        %v2283 = vld [vmem:[%s2282] sm:$0x1]
        %v2285 = vlaneseq
        %v2286 = vshrl.u32 %v2285, 7
        %v2287 = vsub.s32 0, %v2286
        %v2288 = vrot.slane %v2283, %v2287
        %v2290 = vadd.f32 %v2281, %v2288
        %2291 = vst.msk [vmem:[%s255] sm:$0xff] %vm280, %v2290
        %s2292 = sand.u32 %s164, 1
        %s2293 = scalar_lea.sflag [#allocation3], %s2292
        %s2294 = sand.u32 %s164, 1
        %s2295 = smul.addr %s2294, 8
        %s2296 = scalar_lea.vmem [#allocation2], %s2295
        // Predicated region
        $region45: #{tpu_custom_call.1} parent=43 // pred_check
          %p2297 = pneg %p174
        $region46: #{tpu_custom_call.1} parent=43 // pred_check_branch
          %2299 = sbr.rel (%p2297) target = $region48
        $region47: #{tpu_custom_call.1} parent=43 // pred_region
          %s2301 = ssub.s32 128, 128
          %2302 = vsyncadd %s2293, %s2301
          %s2303 = smul.addr %s20, 128
          %s2304 = scalar_lea.hbm %s6, %s2303
          %s2306 = sshll.u32 %s2296, 4
          %s2307 = int_to_ptr.vmem [resolvable:$true] %s2306
          %2309 = dma.vmem_to_hbm [thread:$0]  %s2307, 128, %s2304, %s2293
        $region48: #{tpu_custom_call.1} parent=43 // pred_fallthru
          _
      $region44: #{tpu_custom_call.1} parent=5 // pred_fallthru
        _
      %p2310 = scmp.le.s32.totalorder 2, %s15
      // Predicated region
      $region49: #{tpu_custom_call.1} parent=5 // pred_check
        %p2311 = pneg %p2310
      $region50: #{tpu_custom_call.1} parent=5 // pred_check_branch
        %2313 = sbr.rel (%p2311) target = $region52
      $region51: #{tpu_custom_call.1} parent=5 // pred_region
        %s2314 = ssub.s32 %s15, 2
        // Predicated region
        $region53: #{tpu_custom_call.1} parent=51 // pred_check
          %p2315 = pneg %p180
        $region54: #{tpu_custom_call.1} parent=51 // pred_check_branch
          %2317 = sbr.rel (%p2315) target = $region56
        $region55: #{tpu_custom_call.1} parent=51 // pred_region
          %s2318 = sand.u32 %s165, 1
          %s2319 = scalar_lea.sflag [#allocation3], %s2318
          %s2320 = sand.u32 %s165, 1
          %s2321 = smul.addr %s2320, 8
          %s2322 = scalar_lea.vmem [#allocation2], %s2321
          %2323 = dma.done %s2319, 128
        $region56: #{tpu_custom_call.1} parent=51 // pred_fallthru
          _
      $region52: #{tpu_custom_call.1} parent=5 // pred_fallthru
        _
    $region6: #{tpu_custom_call.1} parent=1 // loop_footer
      %s19 = sadd.s32 1, %s15
    $region7: #{tpu_custom_call.1} parent=1 // loop_footer_branch
      %14 = sbr.rel target = $region3
    $region8: #{tpu_custom_call.1} parent=1 // loop_exit
      _
    %2324 = vsyncpa [#allocation3], 1
    %s2325 = scalar_lea.sflag [#allocation3], 1
    %2326 = vsyncpa %s2325, 1

// kernel: tpu_custom_call.1
$region0: #{tpu_custom_call.1}
  #allocation0 [shape = 'u32[]', space=smem, size = 0x4, offset = 0x4, fixed_abs, tag = 'smem constant byte address 0x4 - core index']
  #allocation1 [shape = 'u32[144,128]{1,0:T(1,128)}', space=vmem, size = 0x12000, scoped, tag = 'internal scratch']
  %s0 = inlined_call_operand.vmem [shape: f32[2,8,32], index: 0, kind: input, shape index: {}]
  %s1 = inlined_call_operand.vmem [shape: s8[2,8,8], index: 1, kind: input, shape index: {}]
  %s2 = inlined_call_operand.vmem [shape: f32[2,32,32], index: 2, kind: input, shape index: {}]
  %s3 = inlined_call_operand.vmem [shape: f32[2,32,8], index: 3, kind: input, shape index: {}]
  %s4 = inlined_call_operand.vmem [shape: f32[2,1,32], index: 4, kind: input, shape index: {}]
  %s5 = inlined_call_operand.vmem [shape: f32[2,1,32], index: 5, kind: input, shape index: {}]
  %s6 = inlined_call_operand.hbm [shape: f32[2,8,32], index: 6, kind: output, shape index: {}]
  %s7 = sld [smem:[#allocation0]]
  $region57: #{tpu_custom_call.1} parent=0
    _
  %s9 = ssub.s32 1, %s7
  %s10 = scalar_select 0, %s9, %s7
  $region1: #{tpu_custom_call.1} parent=0
    #allocation2 [shape = 'u8[8192]{0}', space=vmem, size = 0x2000, scoped, tag = 'output window, operand 0']
    #allocation3 [shape = 's32[2]{0}', space=sflag, size = 0x8, scoped, tag = 'scoped memory for tpu_custom_call.1']
    %11 = vsyncpa [#allocation3], 0
    %s12 = scalar_lea.sflag [#allocation3], 1
    %13 = vsyncpa %s12, 0
    loop: start=0, step=1, limit=4
    $region2: #{tpu_custom_call.1} parent=1 // loop_pre_header
      _
    $region3: #{tpu_custom_call.1} parent=1 // loop_header
      %s15 = sphi 0, %s19
      %p16 = scmp.ge.s32.totalorder %s15, 4
      %s25 = sphi 0, %s27
      %s28 = sphi 0, %s25
      %s29 = sphi 0, %s28
      %s45 = sphi 0, %s29
      %s51 = sphi 0, %s53
      %s54 = sphi 0, %s51
      %s55 = sphi 0, %s54
      %s71 = sphi 0, %s55
      %s75 = sphi 0, %s75
      %s77 = sphi 0, %s75
      %s78 = sphi 0, %s77
      %s92 = sphi 0, %s78
      %s96 = sphi 0, %s96
      %s98 = sphi 0, %s96
      %s99 = sphi 0, %s98
      %s113 = sphi 0, %s99
      %s117 = sphi 0, %s117
      %s119 = sphi 0, %s117
      %s120 = sphi 0, %s119
      %s134 = sphi 0, %s120
      %s138 = sphi 0, %s138
      %s140 = sphi 0, %s138
      %s141 = sphi 0, %s140
      %s155 = sphi 0, %s141
      %s161 = sphi 0, %s163
      %s164 = sphi 0, %s161
      %s165 = sphi 0, %s164
      %s181 = sphi 0, %s165
    $region4: #{tpu_custom_call.1} parent=1 // loop_header_branch
      %18 = sbr.rel (%p16) target = $region8
    $region5: #{tpu_custom_call.1} parent=1 // loop_body
      %s20 = ssub.s32 %s15, 1
      %s21 = ssub.s32 %s15, 2
      %s22 = sadd.s32 %s15, 1
      %s23 = ssub.s32 %s15, %s22
      %p24 = scmp.eq.s32.totalorder %s23, 0
      %s26 = sadd.s32 %s25, 1
      %s27 = scalar_select %p24, %s25, %s26
      %p30 = pneg %p24
      %p31 = scmp.eq.s32.totalorder %s15, 1
      %p32 = por %p30, %p31
      %p33 = scmp.ne.s32.totalorder %s25, %s28
      %p34 = scmp.eq.s32.totalorder %s15, 0
      %p35 = por %p33, %p34
      %p36 = scmp.ne.s32.totalorder %s25, %s28
      %p37 = scmp.eq.s32.totalorder %s20, 1
      %p38 = por %p36, %p37
      %p39 = scmp.ne.s32.totalorder %s28, %s29
      %p40 = scmp.eq.s32.totalorder %s20, 0
      %p41 = por %p39, %p40
      %p42 = scmp.ne.s32.totalorder %s28, %s29
      %p43 = scmp.eq.s32.totalorder %s21, 1
      %p44 = por %p42, %p43
      %p46 = scmp.ne.s32.totalorder %s29, %s45
      %p47 = scmp.eq.s32.totalorder %s21, 0
      %p48 = por %p46, %p47
      %s49 = ssub.s32 %s15, %s22
      %p50 = scmp.eq.s32.totalorder %s49, 0
      %s52 = sadd.s32 %s51, 1
      %s53 = scalar_select %p50, %s51, %s52
      %p56 = pneg %p50
      %p57 = scmp.eq.s32.totalorder %s15, 1
      %p58 = por %p56, %p57
      %p59 = scmp.ne.s32.totalorder %s51, %s54
      %p60 = scmp.eq.s32.totalorder %s15, 0
      %p61 = por %p59, %p60
      %p62 = scmp.ne.s32.totalorder %s51, %s54
      %p63 = scmp.eq.s32.totalorder %s20, 1
      %p64 = por %p62, %p63
      %p65 = scmp.ne.s32.totalorder %s54, %s55
      %p66 = scmp.eq.s32.totalorder %s20, 0
      %p67 = por %p65, %p66
      %p68 = scmp.ne.s32.totalorder %s54, %s55
      %p69 = scmp.eq.s32.totalorder %s21, 1
      %p70 = por %p68, %p69
      %p72 = scmp.ne.s32.totalorder %s55, %s71
      %p73 = scmp.eq.s32.totalorder %s21, 0
      %p74 = por %p72, %p73
      %s76 = sadd.s32 %s75, 1
      %p79 = scmp.eq.s32.totalorder %s15, 1
      %p80 = scmp.ne.s32.totalorder %s75, %s77
      %p81 = scmp.eq.s32.totalorder %s15, 0
      %p82 = por %p80, %p81
      %p83 = scmp.ne.s32.totalorder %s75, %s77
      %p84 = scmp.eq.s32.totalorder %s20, 1
      %p85 = por %p83, %p84
      %p86 = scmp.ne.s32.totalorder %s77, %s78
      %p87 = scmp.eq.s32.totalorder %s20, 0
      %p88 = por %p86, %p87
      %p89 = scmp.ne.s32.totalorder %s77, %s78
      %p90 = scmp.eq.s32.totalorder %s21, 1
      %p91 = por %p89, %p90
      %p93 = scmp.ne.s32.totalorder %s78, %s92
      %p94 = scmp.eq.s32.totalorder %s21, 0
      %p95 = por %p93, %p94
      %s97 = sadd.s32 %s96, 1
      %p100 = scmp.eq.s32.totalorder %s15, 1
      %p101 = scmp.ne.s32.totalorder %s96, %s98
      %p102 = scmp.eq.s32.totalorder %s15, 0
      %p103 = por %p101, %p102
      %p104 = scmp.ne.s32.totalorder %s96, %s98
      %p105 = scmp.eq.s32.totalorder %s20, 1
      %p106 = por %p104, %p105
      %p107 = scmp.ne.s32.totalorder %s98, %s99
      %p108 = scmp.eq.s32.totalorder %s20, 0
      %p109 = por %p107, %p108
      %p110 = scmp.ne.s32.totalorder %s98, %s99
      %p111 = scmp.eq.s32.totalorder %s21, 1
      %p112 = por %p110, %p111
      %p114 = scmp.ne.s32.totalorder %s99, %s113
      %p115 = scmp.eq.s32.totalorder %s21, 0
      %p116 = por %p114, %p115
      %s118 = sadd.s32 %s117, 1
      %p121 = scmp.eq.s32.totalorder %s15, 1
      %p122 = scmp.ne.s32.totalorder %s117, %s119
      %p123 = scmp.eq.s32.totalorder %s15, 0
      %p124 = por %p122, %p123
      %p125 = scmp.ne.s32.totalorder %s117, %s119
      %p126 = scmp.eq.s32.totalorder %s20, 1
      %p127 = por %p125, %p126
      %p128 = scmp.ne.s32.totalorder %s119, %s120
      %p129 = scmp.eq.s32.totalorder %s20, 0
      %p130 = por %p128, %p129
      %p131 = scmp.ne.s32.totalorder %s119, %s120
      %p132 = scmp.eq.s32.totalorder %s21, 1
      %p133 = por %p131, %p132
      %p135 = scmp.ne.s32.totalorder %s120, %s134
      %p136 = scmp.eq.s32.totalorder %s21, 0
      %p137 = por %p135, %p136
      %s139 = sadd.s32 %s138, 1
      %p142 = scmp.eq.s32.totalorder %s15, 1
      %p143 = scmp.ne.s32.totalorder %s138, %s140
      %p144 = scmp.eq.s32.totalorder %s15, 0
      %p145 = por %p143, %p144
      %p146 = scmp.ne.s32.totalorder %s138, %s140
      %p147 = scmp.eq.s32.totalorder %s20, 1
      %p148 = por %p146, %p147
      %p149 = scmp.ne.s32.totalorder %s140, %s141
      %p150 = scmp.eq.s32.totalorder %s20, 0
      %p151 = por %p149, %p150
      %p152 = scmp.ne.s32.totalorder %s140, %s141
      %p153 = scmp.eq.s32.totalorder %s21, 1
      %p154 = por %p152, %p153
      %p156 = scmp.ne.s32.totalorder %s141, %s155
      %p157 = scmp.eq.s32.totalorder %s21, 0
      %p158 = por %p156, %p157
      %s159 = ssub.s32 %s15, %s22
      %p160 = scmp.eq.s32.totalorder %s159, 0
      %s162 = sadd.s32 %s161, 1
      %s163 = scalar_select %p160, %s161, %s162
      %p166 = pneg %p160
      %p167 = scmp.eq.s32.totalorder %s15, 1
      %p168 = por %p166, %p167
      %p169 = scmp.ne.s32.totalorder %s161, %s164
      %p170 = scmp.eq.s32.totalorder %s15, 0
      %p171 = por %p169, %p170
      %p172 = scmp.ne.s32.totalorder %s161, %s164
      %p173 = scmp.eq.s32.totalorder %s20, 1
      %p174 = por %p172, %p173
      %p175 = scmp.ne.s32.totalorder %s164, %s165
      %p176 = scmp.eq.s32.totalorder %s20, 0
      %p177 = por %p175, %p176
      %p178 = scmp.ne.s32.totalorder %s164, %s165
      %p179 = scmp.eq.s32.totalorder %s21, 1
      %p180 = por %p178, %p179
      %p182 = scmp.ne.s32.totalorder %s165, %s181
      %p183 = scmp.eq.s32.totalorder %s21, 0
      %p184 = por %p182, %p183
      %p185 = scmp.le.s32.totalorder 1, %s15
      %p186 = scmp.lt.s32.totalorder %s15, 3
      %p187 = pnand %p185, %p186
      %p188 = pneg %p187
      // Predicated region
      $region9: #{tpu_custom_call.1} parent=5 // pred_check
        _
      $region10: #{tpu_custom_call.1} parent=5 // pred_check_branch
        %190 = sbr.rel (%p187) target = $region12
      $region11: #{tpu_custom_call.1} parent=5 // pred_region
        %s191 = ssub.s32 %s15, 1
        // Predicated region
        $region13: #{tpu_custom_call.1} parent=11 // pred_check
          %p192 = pneg %p88
        $region14: #{tpu_custom_call.1} parent=11 // pred_check_branch
          %194 = sbr.rel (%p192) target = $region16
        $region15: #{tpu_custom_call.1} parent=11 // pred_region
          _
        $region16: #{tpu_custom_call.1} parent=11 // pred_fallthru
          _
        // Predicated region
        $region17: #{tpu_custom_call.1} parent=11 // pred_check
          %p195 = pneg %p109
        $region18: #{tpu_custom_call.1} parent=11 // pred_check_branch
          %197 = sbr.rel (%p195) target = $region20
        $region19: #{tpu_custom_call.1} parent=11 // pred_region
          _
        $region20: #{tpu_custom_call.1} parent=11 // pred_fallthru
          _
        // Predicated region
        $region21: #{tpu_custom_call.1} parent=11 // pred_check
          %p198 = pneg %p130
        $region22: #{tpu_custom_call.1} parent=11 // pred_check_branch
          %200 = sbr.rel (%p198) target = $region24
        $region23: #{tpu_custom_call.1} parent=11 // pred_region
          _
        $region24: #{tpu_custom_call.1} parent=11 // pred_fallthru
          _
        // Predicated region
        $region25: #{tpu_custom_call.1} parent=11 // pred_check
          %p201 = pneg %p151
        $region26: #{tpu_custom_call.1} parent=11 // pred_check_branch
          %203 = sbr.rel (%p201) target = $region28
        $region27: #{tpu_custom_call.1} parent=11 // pred_region
          _
        $region28: #{tpu_custom_call.1} parent=11 // pred_fallthru
          _
      $region12: #{tpu_custom_call.1} parent=5 // pred_fallthru
        _
      %p204 = scmp.lt.s32.totalorder %s15, 2
      // Predicated region
      $region29: #{tpu_custom_call.1} parent=5 // pred_check
        %p205 = pneg %p204
      $region30: #{tpu_custom_call.1} parent=5 // pred_check_branch
        %207 = sbr.rel (%p205) target = $region32
      $region31: #{tpu_custom_call.1} parent=5 // pred_region
        // Predicated region
        $region33: #{tpu_custom_call.1} parent=31 // pred_check
          %p208 = pneg %p35
        $region34: #{tpu_custom_call.1} parent=31 // pred_check_branch
          %210 = sbr.rel (%p208) target = $region36
        $region35: #{tpu_custom_call.1} parent=31 // pred_region
          %p211 = scmp.lt.s32.totalorder %s15, 1
          %s212 = scalar_select %p211, %s15, 1
          %s213 = smul.addr %s212, 8
          %s214 = scalar_lea.vmem %s0, %s213
        $region36: #{tpu_custom_call.1} parent=31 // pred_fallthru
          _
        // Predicated region
        $region37: #{tpu_custom_call.1} parent=31 // pred_check
          %p215 = pneg %p61
        $region38: #{tpu_custom_call.1} parent=31 // pred_check_branch
          %217 = sbr.rel (%p215) target = $region40
        $region39: #{tpu_custom_call.1} parent=31 // pred_region
          %p218 = scmp.lt.s32.totalorder %s15, 1
          %s219 = scalar_select %p218, %s15, 1
          %s220 = smul.addr %s219, 2
          %s221 = scalar_lea.vmem %s1, %s220
        $region40: #{tpu_custom_call.1} parent=31 // pred_fallthru
          _
      $region32: #{tpu_custom_call.1} parent=5 // pred_fallthru
        _
      %p222 = scmp.le.s32.totalorder 1, %s15
      %p223 = scmp.lt.s32.totalorder %s15, 3
      %p224 = pnand %p222, %p223
      %p225 = pneg %p224
      // Predicated region
      $region41: #{tpu_custom_call.1} parent=5 // pred_check
        _
      $region42: #{tpu_custom_call.1} parent=5 // pred_check_branch
        %227 = sbr.rel (%p224) target = $region44
      $region43: #{tpu_custom_call.1} parent=5 // pred_region
        %s228 = ssub.s32 %s15, 1
        %p229 = scmp.lt.s32.totalorder %s20, 1
        %s230 = scalar_select %p229, %s20, 1
        %s231 = smul.addr %s230, 8
        %s232 = scalar_lea.vmem %s0, %s231
        %p233 = pneg %p41
        %p234 = pneg %p38
        %p235 = scmp.lt.s32.totalorder %s20, 1
        %s236 = scalar_select %p235, %s20, 1
        %s237 = smul.addr %s236, 2
        %s238 = scalar_lea.vmem %s1, %s237
        %p239 = pneg %p67
        %p240 = pneg %p64
        %p241 = pneg %p88
        %p242 = pneg %p85
        %p243 = pneg %p109
        %p244 = pneg %p106
        %p245 = pneg %p130
        %p246 = pneg %p127
        %p247 = pneg %p151
        %p248 = pneg %p148
        %p249 = pneg %p177
        %p250 = pneg %p174
        %s251 = sand.u32 %s164, 1
        %s252 = scalar_lea.sflag [#allocation3], %s251
        %s253 = sand.u32 %s164, 1
        %s254 = smul.addr %s253, 8
        %s255 = scalar_lea.vmem [#allocation2], %s254
        %p256 = scmp.lt.s32.totalorder %s20, 1
        %s257 = scalar_select %p256, %s20, 1
        %s258 = smul.addr %s257, 8
        %s259 = scalar_lea.vmem %s0, %s258
        %p260 = scmp.lt.s32.totalorder %s20, 1
        %s261 = scalar_select %p260, %s20, 1
        %s262 = smul.addr %s261, 2
        %s263 = scalar_lea.vmem %s1, %s262
        %v264 = vld [vmem:[%s263] sm:$0x3]
        %v265 = vunpack.c.0.s8 %v264
        %v266 = vcvt.s32.f32 %v265
        %v267 = vmul.f32 %v266, -1e+30
        %v268 = vlaneseq
        %v269 = vshrl.u32 %v268, 7
        %v270 = vlaneseq
        %v271 = vand.u32 %v270, 127
        %vm272 = vcmp.ne.s32.totalorder %v269, %v271
        %v273 = vsel %vm272, 1, 0
        %v274 = vcvt.s32.f32 %v273
        %v275 = vld [vmem:[%s259] sm:$0xff]
        %v276 = vld [vmem:[%s2] sm:$0xff]
        %v277 = vld [vmem:[%s2 + $0x8] sm:$0xff]
        %v278 = vld [vmem:[%s2 + $0x10] sm:$0xff]
        %v279 = vld [vmem:[%s2 + $0x18] sm:$0xff]
        %vm280 = vcmask 261120
        %v282 = vsel %vm280, %v275, 0
        %284 = vmatprep.subr.mxu0 0.0
        %285 = vmatpush1.msra.mxu0 %v276
        %286 = vmatprep.subr.mxu0 0.0
        %287 = vmatpush1.msra.mxu0 %v277
        %288 = vmatprep.subr.mxu0 0.0
        %289 = vmatpush1.msra.mxu0 %v278
        %290 = vmatprep.subr.mxu0 0.0
        %291 = vmatpush1.msra.mxu0 %v279
        %292 = vmatprep.subr.mxu0 0.0
        %293 = vmatpush1.msra.mxu0 0.0
        %294 = vmatprep.subr.mxu0 0.0
        %295 = vmatpush1.msra.mxu0 0.0
        %296 = vmatprep.subr.mxu0 0.0
        %297 = vmatpush1.msra.mxu0 0.0
        %298 = vmatprep.subr.mxu0 0.0
        %299 = vmatpush1.msra.mxu0 0.0
        %300 = vmatprep.subr.mxu0 0.0
        %301 = vmatpush1.msra.mxu0 0.0
        %302 = vmatprep.subr.mxu0 0.0
        %303 = vmatpush1.msra.mxu0 0.0
        %304 = vmatprep.subr.mxu0 0.0
        %305 = vmatpush1.msra.mxu0 0.0
        %306 = vmatprep.subr.mxu0 0.0
        %307 = vmatpush1.msra.mxu0 0.0
        %308 = vmatprep.subr.mxu0 0.0
        %309 = vmatpush1.msra.mxu0 0.0
        %310 = vmatprep.subr.mxu0 0.0
        %311 = vmatpush1.msra.mxu0 0.0
        %312 = vmatprep.subr.mxu0 0.0
        %313 = vmatpush1.msra.mxu0 0.0
        %314 = vmatprep.subr.mxu0 0.0
        %315 = vmatpush1.msra.mxu0 0.0
        %316 = vmatprep.subr.mxu0 0.0
        %317 = vmatpush1.msra.mxu0 0.0
        %318 = vmatprep.subr.mxu0 0.0
        %319 = vmatpush1.msra.mxu0 0.0
        %320 = vmatprep.subr.mxu0 0.0
        %321 = vmatpush1.msra.mxu0 0.0
        %322 = vmatprep.subr.mxu0 0.0
        %323 = vmatpush1.msra.mxu0 0.0
        %324 = vmatprep.subr.mxu0 0.0
        %325 = vmatpush1.msra.mxu0 0.0
        %326 = vmatprep.subr.mxu0 0.0
        %327 = vmatpush1.msra.mxu0 0.0
        %328 = vmatprep.subr.mxu0 0.0
        %329 = vmatpush1.msra.mxu0 0.0
        %330 = vmatprep.subr.mxu0 0.0
        %331 = vmatpush1.msra.mxu0 0.0
        %332 = vmatprep.subr.mxu0 0.0
        %333 = vmatpush1.msra.mxu0 0.0
        %334 = vmatprep.subr.mxu0 0.0
        %335 = vmatpush1.msra.mxu0 0.0
        %336 = vmatprep.subr.mxu0 0.0
        %337 = vmatpush1.msra.mxu0 0.0
        %338 = vmatprep.subr.mxu0 0.0
        %339 = vmatpush1.msra.mxu0 0.0
        %340 = vmatprep.subr.mxu0 0.0
        %341 = vmatpush1.msra.mxu0 0.0
        %342 = vmatprep.subr.mxu0 0.0
        %343 = vmatpush1.msra.mxu0 0.0
        %344 = vmatprep.subr.mxu0 0.0
        %345 = vmatpush1.msra.mxu0 0.0
        %346 = vmatprep.subr.mxu0 0.0
        %347 = vmatpush1.msra.mxu0 0.0
        %348 = vmatprep.mubr.f32.mxu0 0.0
        %349 = vmatmul.mubr.f32.gmra.mrb[0].mxu0 %v282
        %v350 = vpop.f32.mrb[0].mxu0
        %v351 = vadd.f32 0.0, %v350
        %v352 = vpop.f32.mrb[0].mxu0
        %353 = vdwg.mxu0
        %v354 = vld [vmem:[%s3] sm:$0xff]
        %v355 = vld [vmem:[%s3 + $0x8] sm:$0xff]
        %v356 = vld [vmem:[%s3 + $0x10] sm:$0xff]
        %v357 = vld [vmem:[%s3 + $0x18] sm:$0xff]
        %358 = vmatprep.subr.mxu0 0.0
        %359 = vmatpush1.msra.mxu0 %v354
        %360 = vmatprep.subr.mxu0 0.0
        %361 = vmatpush1.msra.mxu0 %v355
        %362 = vmatprep.subr.mxu0 0.0
        %363 = vmatpush1.msra.mxu0 %v356
        %364 = vmatprep.subr.mxu0 0.0
        %365 = vmatpush1.msra.mxu0 %v357
        %366 = vmatprep.subr.mxu0 0.0
        %367 = vmatpush1.msra.mxu0 0.0
        %368 = vmatprep.subr.mxu0 0.0
        %369 = vmatpush1.msra.mxu0 0.0
        %370 = vmatprep.subr.mxu0 0.0
        %371 = vmatpush1.msra.mxu0 0.0
        %372 = vmatprep.subr.mxu0 0.0
        %373 = vmatpush1.msra.mxu0 0.0
        %374 = vmatprep.subr.mxu0 0.0
        %375 = vmatpush1.msra.mxu0 0.0
        %376 = vmatprep.subr.mxu0 0.0
        %377 = vmatpush1.msra.mxu0 0.0
        %378 = vmatprep.subr.mxu0 0.0
        %379 = vmatpush1.msra.mxu0 0.0
        %380 = vmatprep.subr.mxu0 0.0
        %381 = vmatpush1.msra.mxu0 0.0
        %382 = vmatprep.subr.mxu0 0.0
        %383 = vmatpush1.msra.mxu0 0.0
        %384 = vmatprep.subr.mxu0 0.0
        %385 = vmatpush1.msra.mxu0 0.0
        %386 = vmatprep.subr.mxu0 0.0
        %387 = vmatpush1.msra.mxu0 0.0
        %388 = vmatprep.subr.mxu0 0.0
        %389 = vmatpush1.msra.mxu0 0.0
        %390 = vmatprep.subr.mxu0 0.0
        %391 = vmatpush1.msra.mxu0 0.0
        %392 = vmatprep.subr.mxu0 0.0
        %393 = vmatpush1.msra.mxu0 0.0
        %394 = vmatprep.subr.mxu0 0.0
        %395 = vmatpush1.msra.mxu0 0.0
        %396 = vmatprep.subr.mxu0 0.0
        %397 = vmatpush1.msra.mxu0 0.0
        %398 = vmatprep.subr.mxu0 0.0
        %399 = vmatpush1.msra.mxu0 0.0
        %400 = vmatprep.subr.mxu0 0.0
        %401 = vmatpush1.msra.mxu0 0.0
        %402 = vmatprep.subr.mxu0 0.0
        %403 = vmatpush1.msra.mxu0 0.0
        %404 = vmatprep.subr.mxu0 0.0
        %405 = vmatpush1.msra.mxu0 0.0
        %406 = vmatprep.subr.mxu0 0.0
        %407 = vmatpush1.msra.mxu0 0.0
        %408 = vmatprep.subr.mxu0 0.0
        %409 = vmatpush1.msra.mxu0 0.0
        %410 = vmatprep.subr.mxu0 0.0
        %411 = vmatpush1.msra.mxu0 0.0
        %412 = vmatprep.subr.mxu0 0.0
        %413 = vmatpush1.msra.mxu0 0.0
        %414 = vmatprep.subr.mxu0 0.0
        %415 = vmatpush1.msra.mxu0 0.0
        %416 = vmatprep.subr.mxu0 0.0
        %417 = vmatpush1.msra.mxu0 0.0
        %418 = vmatprep.subr.mxu0 0.0
        %419 = vmatpush1.msra.mxu0 0.0
        %420 = vmatprep.subr.mxu0 0.0
        %421 = vmatpush1.msra.mxu0 0.0
        %422 = vmatprep.mubr.f32.mxu0 0.0
        %423 = vmatmul.mubr.f32.gmra.mrb[0].mxu0 %v282
        %v424 = vpop.f32.mrb[0].mxu0
        %v425 = vadd.f32 0.0, %v424
        %v426 = vpop.f32.mrb[0].mxu0
        %427 = vdwg.mxu0
        %429 = vrot.lane.b32.xlu0 %v351, 120
        %v430 = vpop.permute.xlu0 %429
        %432 = vrot.lane.b32.xlu0 %v351, 112
        %v433 = vpop.permute.xlu0 %432
        %435 = vrot.lane.b32.xlu0 %v351, 104
        %v436 = vpop.permute.xlu0 %435
        %v438 = vcombine.low %v351, %v433
        %v439 = vcombine.high %v351, %v433
        %v441 = vunpack.c.l.s4 1983009808
        %v442 = vunpack.c.0.s8 %v441
        %v443 = vlaneseq
        %v444 = vshrl.u32 %v443, 7
        %v445 = vsub.s32 %v442, %v444
        %v446 = vrot.slane %v438, %v445
        %v448 = vunpack.c.l.s4 1983009808
        %v449 = vunpack.c.0.s8 %v448
        %v450 = vlaneseq
        %v451 = vshrl.u32 %v450, 7
        %v452 = vsub.s32 %v449, %v451
        %v453 = vrot.slane %v439, %v452
        %v454 = vcombine.low %v430, %v436
        %v455 = vcombine.high %v430, %v436
        %v457 = vunpack.c.l.s4 1983009808
        %v458 = vunpack.c.0.s8 %v457
        %v459 = vlaneseq
        %v460 = vshrl.u32 %v459, 7
        %v461 = vsub.s32 %v458, %v460
        %v462 = vrot.slane %v454, %v461
        %v464 = vunpack.c.l.s4 1983009808
        %v465 = vunpack.c.0.s8 %v464
        %v466 = vlaneseq
        %v467 = vshrl.u32 %v466, 7
        %v468 = vsub.s32 %v465, %v467
        %v469 = vrot.slane %v455, %v468
        %v470 = vcombine.low %v446, %v462
        %v471 = vcombine.high %v446, %v462
        %v473 = vunpack.c.l.s4 1934713408
        %v474 = vunpack.c.0.s8 %v473
        %v475 = vlaneseq
        %v476 = vshrl.u32 %v475, 7
        %v477 = vsub.s32 %v474, %v476
        %v478 = vrot.slane %v470, %v477
        %v480 = vunpack.c.l.s4 1934713408
        %v481 = vunpack.c.0.s8 %v480
        %v482 = vlaneseq
        %v483 = vshrl.u32 %v482, 7
        %v484 = vsub.s32 %v481, %v483
        %v485 = vrot.slane %v471, %v484
        %v486 = vcombine.low %v453, %v469
        %v487 = vcombine.high %v453, %v469
        %v489 = vunpack.c.l.s4 1934713408
        %v490 = vunpack.c.0.s8 %v489
        %v491 = vlaneseq
        %v492 = vshrl.u32 %v491, 7
        %v493 = vsub.s32 %v490, %v492
        %v494 = vrot.slane %v486, %v493
        %v496 = vunpack.c.l.s4 1934713408
        %v497 = vunpack.c.0.s8 %v496
        %v498 = vlaneseq
        %v499 = vshrl.u32 %v498, 7
        %v500 = vsub.s32 %v497, %v499
        %v501 = vrot.slane %v487, %v500
        %v502 = vcombine.high %v478, 0.0
        %v503 = vcombine.high %v485, 0.0
        %v504 = vcombine.high %v494, 0.0
        %v505 = vcombine.high %v501, 0.0
        %v506 = vcombine.low %v478, %v485
        %v508 = vunpack.c.l.s4 1983009808
        %v509 = vunpack.c.0.s8 %v508
        %v510 = vlaneseq
        %v511 = vshrl.u32 %v510, 7
        %v512 = vsub.s32 %v509, %v511
        %v513 = vrot.slane %v506, %v512
        %v514 = vcombine.low %v502, %v503
        %v516 = vunpack.c.l.s4 1983009808
        %v517 = vunpack.c.0.s8 %v516
        %v518 = vlaneseq
        %v519 = vshrl.u32 %v518, 7
        %v520 = vsub.s32 %v517, %v519
        %v521 = vrot.slane %v514, %v520
        %v522 = vcombine.low %v494, %v501
        %v524 = vunpack.c.l.s4 1983009808
        %v525 = vunpack.c.0.s8 %v524
        %v526 = vlaneseq
        %v527 = vshrl.u32 %v526, 7
        %v528 = vsub.s32 %v525, %v527
        %v529 = vrot.slane %v522, %v528
        %v530 = vcombine.low %v504, %v505
        %v532 = vunpack.c.l.s4 1983009808
        %v533 = vunpack.c.0.s8 %v532
        %v534 = vlaneseq
        %v535 = vshrl.u32 %v534, 7
        %v536 = vsub.s32 %v533, %v535
        %v537 = vrot.slane %v530, %v536
        %v538 = vcombine.low %v513, %v521
        %v539 = vcombine.high %v513, %v521
        %v541 = vunpack.c.l.s4 1934713408
        %v542 = vunpack.c.0.s8 %v541
        %v543 = vlaneseq
        %v544 = vshrl.u32 %v543, 7
        %v545 = vsub.s32 %v542, %v544
        %v546 = vrot.slane %v538, %v545
        %v548 = vunpack.c.l.s4 1934713408
        %v549 = vunpack.c.0.s8 %v548
        %v550 = vlaneseq
        %v551 = vshrl.u32 %v550, 7
        %v552 = vsub.s32 %v549, %v551
        %v553 = vrot.slane %v539, %v552
        %v554 = vcombine.low %v529, %v537
        %v555 = vcombine.high %v529, %v537
        %v557 = vunpack.c.l.s4 1934713408
        %v558 = vunpack.c.0.s8 %v557
        %v559 = vlaneseq
        %v560 = vshrl.u32 %v559, 7
        %v561 = vsub.s32 %v558, %v560
        %v562 = vrot.slane %v554, %v561
        %v564 = vunpack.c.l.s4 1934713408
        %v565 = vunpack.c.0.s8 %v564
        %v566 = vlaneseq
        %v567 = vshrl.u32 %v566, 7
        %v568 = vsub.s32 %v565, %v567
        %v569 = vrot.slane %v555, %v568
        %v570 = vcombine.low %v546, %v562
        %v571 = vcombine.high %v546, %v562
        %v572 = vcombine.low %v553, %v569
        %v573 = vcombine.high %v553, %v569
        %574 = vxpose.xlu0.b32.start [1/16] %v425, 128
        %575 = vxpose.xlu0.b32.cont [2/16] 0.0, 128
        %576 = vxpose.xlu0.b32.cont [3/16] 0.0, 128
        %577 = vxpose.xlu0.b32.cont [4/16] 0.0, 128
        %578 = vxpose.xlu0.b32.cont [5/16] 0.0, 128
        %579 = vxpose.xlu0.b32.cont [6/16] 0.0, 128
        %580 = vxpose.xlu0.b32.cont [7/16] 0.0, 128
        %581 = vxpose.xlu0.b32.cont [8/16] 0.0, 128
        %582 = vxpose.xlu0.b32.cont [9/16] 0.0, 128
        %583 = vxpose.xlu0.b32.cont [10/16] 0.0, 128
        %584 = vxpose.xlu0.b32.cont [11/16] 0.0, 128
        %585 = vxpose.xlu0.b32.cont [12/16] 0.0, 128
        %586 = vxpose.xlu0.b32.cont [13/16] 0.0, 128
        %587 = vxpose.xlu0.b32.cont [14/16] 0.0, 128
        %588 = vxpose.xlu0.b32.cont [15/16] 0.0, 128
        %589 = vxpose.xlu0.b32.end [16/16] 0.0, 128
        %v590 = vpop.trf.xlu0
        %v591 = vpop.trf.xlu0
        %v592 = vpop.trf.xlu0
        %v593 = vpop.trf.xlu0
        %v594 = vpop.trf.xlu0
        %v595 = vpop.trf.xlu0
        %v596 = vpop.trf.xlu0
        %v597 = vpop.trf.xlu0
        %v598 = vpop.trf.xlu0
        %v599 = vpop.trf.xlu0
        %v600 = vpop.trf.xlu0
        %v601 = vpop.trf.xlu0
        %v602 = vpop.trf.xlu0
        %v603 = vpop.trf.xlu0
        %v604 = vpop.trf.xlu0
        %v605 = vpop.trf.xlu0
        %v606 = vlaneseq
        %v607 = vshrl.u32 %v606, 7
        %v608 = vsub.s32 0, %v607
        %v609 = vrot.slane %v590, %v608
        %611 = vbcast.lane.b32.xlu0 %v609, 256
        %v612 = vpop.permute.xlu0 %611
        %v613 = vlaneseq
        %v614 = vshrl.u32 %v613, 7
        %v615 = vsub.s32 1, %v614
        %v616 = vrot.slane %v590, %v615
        %618 = vbcast.lane.b32.xlu0 %v616, 256
        %v619 = vpop.permute.xlu0 %618
        %v620 = vlaneseq
        %v621 = vshrl.u32 %v620, 7
        %v622 = vsub.s32 2, %v621
        %v623 = vrot.slane %v590, %v622
        %625 = vbcast.lane.b32.xlu0 %v623, 256
        %v626 = vpop.permute.xlu0 %625
        %v627 = vlaneseq
        %v628 = vshrl.u32 %v627, 7
        %v629 = vsub.s32 3, %v628
        %v630 = vrot.slane %v590, %v629
        %632 = vbcast.lane.b32.xlu0 %v630, 256
        %v633 = vpop.permute.xlu0 %632
        %635 = vrot.lane.b32.xlu0 %v425, 124
        %v636 = vpop.permute.xlu0 %635
        %638 = vxpose.xlu0.b32.start [1/16] %v636, 128
        %639 = vxpose.xlu0.b32.cont [2/16] 0.0, 128
        %640 = vxpose.xlu0.b32.cont [3/16] 0.0, 128
        %641 = vxpose.xlu0.b32.cont [4/16] 0.0, 128
        %642 = vxpose.xlu0.b32.cont [5/16] 0.0, 128
        %643 = vxpose.xlu0.b32.cont [6/16] 0.0, 128
        %644 = vxpose.xlu0.b32.cont [7/16] 0.0, 128
        %645 = vxpose.xlu0.b32.cont [8/16] 0.0, 128
        %646 = vxpose.xlu0.b32.cont [9/16] 0.0, 128
        %647 = vxpose.xlu0.b32.cont [10/16] 0.0, 128
        %648 = vxpose.xlu0.b32.cont [11/16] 0.0, 128
        %649 = vxpose.xlu0.b32.cont [12/16] 0.0, 128
        %650 = vxpose.xlu0.b32.cont [13/16] 0.0, 128
        %651 = vxpose.xlu0.b32.cont [14/16] 0.0, 128
        %652 = vxpose.xlu0.b32.cont [15/16] 0.0, 128
        %653 = vxpose.xlu0.b32.end [16/16] 0.0, 128
        %v654 = vpop.trf.xlu0
        %v655 = vpop.trf.xlu0
        %v656 = vpop.trf.xlu0
        %v657 = vpop.trf.xlu0
        %v658 = vpop.trf.xlu0
        %v659 = vpop.trf.xlu0
        %v660 = vpop.trf.xlu0
        %v661 = vpop.trf.xlu0
        %v662 = vpop.trf.xlu0
        %v663 = vpop.trf.xlu0
        %v664 = vpop.trf.xlu0
        %v665 = vpop.trf.xlu0
        %v666 = vpop.trf.xlu0
        %v667 = vpop.trf.xlu0
        %v668 = vpop.trf.xlu0
        %v669 = vpop.trf.xlu0
        %v672 = vunpack.c.l.s4 1966171168
        %v673 = vunpack.c.0.s8 %v672
        %v674 = vlaneseq
        %v675 = vshrl.u32 %v674, 7
        %v676 = vsub.s32 %v673, %v675
        %v677 = vrot.slane %v654, %v676
        %v678 = vcombine.high %v677, %v677
        %v680 = vunpack.c.l.s4 1966171168
        %v681 = vunpack.c.0.s8 %v680
        %v682 = vlaneseq
        %v683 = vshrl.u32 %v682, 7
        %v684 = vsub.s32 %v681, %v683
        %v685 = vrot.slane %v677, %v684
        %v687 = vunpack.c.l.s4 1966171168
        %v688 = vunpack.c.0.s8 %v687
        %v689 = vlaneseq
        %v690 = vshrl.u32 %v689, 7
        %v691 = vsub.s32 %v688, %v690
        %v692 = vrot.slane %v678, %v691
        %v693 = vcombine.high %v685, %v685
        %v694 = vcombine.high %v692, %v692
        %v695 = vlaneseq
        %v696 = vshrl.u32 %v695, 7
        %v697 = vsub.s32 0, %v696
        %v698 = vrot.slane %v685, %v697
        %v699 = vlaneseq
        %v700 = vshrl.u32 %v699, 7
        %v701 = vsub.s32 0, %v700
        %v702 = vrot.slane %v692, %v701
        %v703 = vlaneseq
        %v704 = vshrl.u32 %v703, 7
        %v705 = vsub.s32 0, %v704
        %v706 = vrot.slane %v693, %v705
        %v707 = vlaneseq
        %v708 = vshrl.u32 %v707, 7
        %v709 = vsub.s32 0, %v708
        %v710 = vrot.slane %v694, %v709
        %v715 = vadd.f32 %v612, %v698
        %v716 = vadd.f32 %v619, %v702
        %v717 = vadd.f32 %v626, %v706
        %v718 = vadd.f32 %v633, %v710
        %v719 = vadd.f32 %v715, %v267
        %v720 = vadd.f32 %v716, %v267
        %v721 = vadd.f32 %v717, %v267
        %v722 = vadd.f32 %v718, %v267
        %vm723 = vcmask 64512
        %v724 = vsel %vm723, %v719, -inf
        %725 = vmax.xlane.f32.xlu0 %v724
        %v726 = vpop.xlane.xlu0 %725
        %v727 = vsel %vm723, %v720, -inf
        %728 = vmax.xlane.f32.xlu0 %v727
        %v729 = vpop.xlane.xlu0 %728
        %v730 = vsel %vm723, %v721, -inf
        %731 = vmax.xlane.f32.xlu0 %v730
        %v732 = vpop.xlane.xlu0 %731
        %v733 = vsel %vm723, %v722, -inf
        %734 = vmax.xlane.f32.xlu0 %v733
        %v735 = vpop.xlane.xlu0 %734
        %v736 = vsub.f32 %v719, %v726
        %v737 = vsub.f32 %v720, %v729
        %v738 = vsub.f32 %v721, %v732
        %v739 = vsub.f32 %v722, %v735
        %v740 = vmul.f32 %v736, 1.442695
        %v741 = vpow.pop %v740
        %v742 = vmul.f32 %v737, 1.442695
        %v743 = vpow.pop %v742
        %v744 = vmul.f32 %v738, 1.442695
        %v745 = vpow.pop %v744
        %v746 = vmul.f32 %v739, 1.442695
        %v747 = vpow.pop %v746
        %v748 = vsel %vm723, %v741, 0.0
        %749 = vadd.xlane.f32.xlu0 %v748
        %v750 = vpop.xlane.xlu0 %749
        %v751 = vsel %vm723, %v743, 0.0
        %752 = vadd.xlane.f32.xlu0 %v751
        %v753 = vpop.xlane.xlu0 %752
        %v754 = vsel %vm723, %v745, 0.0
        %755 = vadd.xlane.f32.xlu0 %v754
        %v756 = vpop.xlane.xlu0 %755
        %v757 = vsel %vm723, %v747, 0.0
        %758 = vadd.xlane.f32.xlu0 %v757
        %v759 = vpop.xlane.xlu0 %758
        %v760 = vrcp.pop %v750
        %v761 = vrcp.pop %v753
        %v762 = vrcp.pop %v756
        %v763 = vrcp.pop %v759
        %v764 = vmul.f32 %v741, %v760
        %v765 = vmul.f32 %v743, %v761
        %v766 = vmul.f32 %v745, %v762
        %v767 = vmul.f32 %v747, %v763
        %v768 = vmul.f32 %v764, %v274
        %v769 = vmul.f32 %v765, %v274
        %v770 = vmul.f32 %v766, %v274
        %v771 = vmul.f32 %v767, %v274
        %v772 = vsel %vm723, %v768, 0.0
        %773 = vadd.xlane.f32.xlu0 %v772
        %v774 = vpop.xlane.xlu0 %773
        %v775 = vsel %vm723, %v769, 0.0
        %776 = vadd.xlane.f32.xlu0 %v775
        %v777 = vpop.xlane.xlu0 %776
        %v778 = vsel %vm723, %v770, 0.0
        %779 = vadd.xlane.f32.xlu0 %v778
        %v780 = vpop.xlane.xlu0 %779
        %v781 = vsel %vm723, %v771, 0.0
        %782 = vadd.xlane.f32.xlu0 %v781
        %v783 = vpop.xlane.xlu0 %782
        %v784 = vsub.f32 1.0, %v774
        %v785 = vsub.f32 1.0, %v777
        %v786 = vsub.f32 1.0, %v780
        %v787 = vsub.f32 1.0, %v783
        %v789 = vsel %vm723, %v768, 0
        %791 = vmatprep.subr.mxu0 0.0
        %792 = vmatpush1.msra.mxu0 %v570
        %793 = vmatprep.subr.mxu0 0.0
        %794 = vmatpush1.msra.mxu0 0.0
        %795 = vmatprep.subr.mxu0 0.0
        %796 = vmatpush1.msra.mxu0 0.0
        %797 = vmatprep.subr.mxu0 0.0
        %798 = vmatpush1.msra.mxu0 0.0
        %799 = vmatprep.subr.mxu0 0.0
        %800 = vmatpush1.msra.mxu0 0.0
        %801 = vmatprep.subr.mxu0 0.0
        %802 = vmatpush1.msra.mxu0 0.0
        %803 = vmatprep.subr.mxu0 0.0
        %804 = vmatpush1.msra.mxu0 0.0
        %805 = vmatprep.subr.mxu0 0.0
        %806 = vmatpush1.msra.mxu0 0.0
        %807 = vmatprep.subr.mxu0 0.0
        %808 = vmatpush1.msra.mxu0 0.0
        %809 = vmatprep.subr.mxu0 0.0
        %810 = vmatpush1.msra.mxu0 0.0
        %811 = vmatprep.subr.mxu0 0.0
        %812 = vmatpush1.msra.mxu0 0.0
        %813 = vmatprep.subr.mxu0 0.0
        %814 = vmatpush1.msra.mxu0 0.0
        %815 = vmatprep.subr.mxu0 0.0
        %816 = vmatpush1.msra.mxu0 0.0
        %817 = vmatprep.subr.mxu0 0.0
        %818 = vmatpush1.msra.mxu0 0.0
        %819 = vmatprep.subr.mxu0 0.0
        %820 = vmatpush1.msra.mxu0 0.0
        %821 = vmatprep.subr.mxu0 0.0
        %822 = vmatpush1.msra.mxu0 0.0
        %823 = vmatprep.subr.mxu0 0.0
        %824 = vmatpush1.msra.mxu0 0.0
        %825 = vmatprep.subr.mxu0 0.0
        %826 = vmatpush1.msra.mxu0 0.0
        %827 = vmatprep.subr.mxu0 0.0
        %828 = vmatpush1.msra.mxu0 0.0
        %829 = vmatprep.subr.mxu0 0.0
        %830 = vmatpush1.msra.mxu0 0.0
        %831 = vmatprep.subr.mxu0 0.0
        %832 = vmatpush1.msra.mxu0 0.0
        %833 = vmatprep.subr.mxu0 0.0
        %834 = vmatpush1.msra.mxu0 0.0
        %835 = vmatprep.subr.mxu0 0.0
        %836 = vmatpush1.msra.mxu0 0.0
        %837 = vmatprep.subr.mxu0 0.0
        %838 = vmatpush1.msra.mxu0 0.0
        %839 = vmatprep.subr.mxu0 0.0
        %840 = vmatpush1.msra.mxu0 0.0
        %841 = vmatprep.subr.mxu0 0.0
        %842 = vmatpush1.msra.mxu0 0.0
        %843 = vmatprep.subr.mxu0 0.0
        %844 = vmatpush1.msra.mxu0 0.0
        %845 = vmatprep.subr.mxu0 0.0
        %846 = vmatpush1.msra.mxu0 0.0
        %847 = vmatprep.subr.mxu0 0.0
        %848 = vmatpush1.msra.mxu0 0.0
        %849 = vmatprep.subr.mxu0 0.0
        %850 = vmatpush1.msra.mxu0 0.0
        %851 = vmatprep.subr.mxu0 0.0
        %852 = vmatpush1.msra.mxu0 0.0
        %853 = vmatprep.subr.mxu0 0.0
        %854 = vmatpush1.msra.mxu0 0.0
        %855 = vmatprep.mubr.f32.mxu0 0.0
        %856 = vmatmul.mubr.f32.gmra.mrb[0].mxu0 %v789
        %v857 = vpop.f32.mrb[0].mxu0
        %v858 = vadd.f32 0.0, %v857
        %v859 = vpop.f32.mrb[0].mxu0
        %860 = vdwg.mxu0
        %v862 = vsel %vm723, %v769, 0
        %864 = vmatprep.subr.mxu0 0.0
        %865 = vmatpush1.msra.mxu0 %v571
        %866 = vmatprep.subr.mxu0 0.0
        %867 = vmatpush1.msra.mxu0 0.0
        %868 = vmatprep.subr.mxu0 0.0
        %869 = vmatpush1.msra.mxu0 0.0
        %870 = vmatprep.subr.mxu0 0.0
        %871 = vmatpush1.msra.mxu0 0.0
        %872 = vmatprep.subr.mxu0 0.0
        %873 = vmatpush1.msra.mxu0 0.0
        %874 = vmatprep.subr.mxu0 0.0
        %875 = vmatpush1.msra.mxu0 0.0
        %876 = vmatprep.subr.mxu0 0.0
        %877 = vmatpush1.msra.mxu0 0.0
        %878 = vmatprep.subr.mxu0 0.0
        %879 = vmatpush1.msra.mxu0 0.0
        %880 = vmatprep.subr.mxu0 0.0
        %881 = vmatpush1.msra.mxu0 0.0
        %882 = vmatprep.subr.mxu0 0.0
        %883 = vmatpush1.msra.mxu0 0.0
        %884 = vmatprep.subr.mxu0 0.0
        %885 = vmatpush1.msra.mxu0 0.0
        %886 = vmatprep.subr.mxu0 0.0
        %887 = vmatpush1.msra.mxu0 0.0
        %888 = vmatprep.subr.mxu0 0.0
        %889 = vmatpush1.msra.mxu0 0.0
        %890 = vmatprep.subr.mxu0 0.0
        %891 = vmatpush1.msra.mxu0 0.0
        %892 = vmatprep.subr.mxu0 0.0
        %893 = vmatpush1.msra.mxu0 0.0
        %894 = vmatprep.subr.mxu0 0.0
        %895 = vmatpush1.msra.mxu0 0.0
        %896 = vmatprep.subr.mxu0 0.0
        %897 = vmatpush1.msra.mxu0 0.0
        %898 = vmatprep.subr.mxu0 0.0
        %899 = vmatpush1.msra.mxu0 0.0
        %900 = vmatprep.subr.mxu0 0.0
        %901 = vmatpush1.msra.mxu0 0.0
        %902 = vmatprep.subr.mxu0 0.0
        %903 = vmatpush1.msra.mxu0 0.0
        %904 = vmatprep.subr.mxu0 0.0
        %905 = vmatpush1.msra.mxu0 0.0
        %906 = vmatprep.subr.mxu0 0.0
        %907 = vmatpush1.msra.mxu0 0.0
        %908 = vmatprep.subr.mxu0 0.0
        %909 = vmatpush1.msra.mxu0 0.0
        %910 = vmatprep.subr.mxu0 0.0
        %911 = vmatpush1.msra.mxu0 0.0
        %912 = vmatprep.subr.mxu0 0.0
        %913 = vmatpush1.msra.mxu0 0.0
        %914 = vmatprep.subr.mxu0 0.0
        %915 = vmatpush1.msra.mxu0 0.0
        %916 = vmatprep.subr.mxu0 0.0
        %917 = vmatpush1.msra.mxu0 0.0
        %918 = vmatprep.subr.mxu0 0.0
        %919 = vmatpush1.msra.mxu0 0.0
        %920 = vmatprep.subr.mxu0 0.0
        %921 = vmatpush1.msra.mxu0 0.0
        %922 = vmatprep.subr.mxu0 0.0
        %923 = vmatpush1.msra.mxu0 0.0
        %924 = vmatprep.subr.mxu0 0.0
        %925 = vmatpush1.msra.mxu0 0.0
        %926 = vmatprep.subr.mxu0 0.0
        %927 = vmatpush1.msra.mxu0 0.0
        %928 = vmatprep.mubr.f32.mxu0 0.0
        %929 = vmatmul.mubr.f32.gmra.mrb[0].mxu0 %v862
        %v930 = vpop.f32.mrb[0].mxu0
        %v931 = vadd.f32 0.0, %v930
        %v932 = vpop.f32.mrb[0].mxu0
        %933 = vdwg.mxu0
        %v935 = vsel %vm723, %v770, 0
        %937 = vmatprep.subr.mxu0 0.0
        %938 = vmatpush1.msra.mxu0 %v572
        %939 = vmatprep.subr.mxu0 0.0
        %940 = vmatpush1.msra.mxu0 0.0
        %941 = vmatprep.subr.mxu0 0.0
        %942 = vmatpush1.msra.mxu0 0.0
        %943 = vmatprep.subr.mxu0 0.0
        %944 = vmatpush1.msra.mxu0 0.0
        %945 = vmatprep.subr.mxu0 0.0
        %946 = vmatpush1.msra.mxu0 0.0
        %947 = vmatprep.subr.mxu0 0.0
        %948 = vmatpush1.msra.mxu0 0.0
        %949 = vmatprep.subr.mxu0 0.0
        %950 = vmatpush1.msra.mxu0 0.0
        %951 = vmatprep.subr.mxu0 0.0
        %952 = vmatpush1.msra.mxu0 0.0
        %953 = vmatprep.subr.mxu0 0.0
        %954 = vmatpush1.msra.mxu0 0.0
        %955 = vmatprep.subr.mxu0 0.0
        %956 = vmatpush1.msra.mxu0 0.0
        %957 = vmatprep.subr.mxu0 0.0
        %958 = vmatpush1.msra.mxu0 0.0
        %959 = vmatprep.subr.mxu0 0.0
        %960 = vmatpush1.msra.mxu0 0.0
        %961 = vmatprep.subr.mxu0 0.0
        %962 = vmatpush1.msra.mxu0 0.0
        %963 = vmatprep.subr.mxu0 0.0
        %964 = vmatpush1.msra.mxu0 0.0
        %965 = vmatprep.subr.mxu0 0.0
        %966 = vmatpush1.msra.mxu0 0.0
        %967 = vmatprep.subr.mxu0 0.0
        %968 = vmatpush1.msra.mxu0 0.0
        %969 = vmatprep.subr.mxu0 0.0
        %970 = vmatpush1.msra.mxu0 0.0
        %971 = vmatprep.subr.mxu0 0.0
        %972 = vmatpush1.msra.mxu0 0.0
        %973 = vmatprep.subr.mxu0 0.0
        %974 = vmatpush1.msra.mxu0 0.0
        %975 = vmatprep.subr.mxu0 0.0
        %976 = vmatpush1.msra.mxu0 0.0
        %977 = vmatprep.subr.mxu0 0.0
        %978 = vmatpush1.msra.mxu0 0.0
        %979 = vmatprep.subr.mxu0 0.0
        %980 = vmatpush1.msra.mxu0 0.0
        %981 = vmatprep.subr.mxu0 0.0
        %982 = vmatpush1.msra.mxu0 0.0
        %983 = vmatprep.subr.mxu0 0.0
        %984 = vmatpush1.msra.mxu0 0.0
        %985 = vmatprep.subr.mxu0 0.0
        %986 = vmatpush1.msra.mxu0 0.0
        %987 = vmatprep.subr.mxu0 0.0
        %988 = vmatpush1.msra.mxu0 0.0
        %989 = vmatprep.subr.mxu0 0.0
        %990 = vmatpush1.msra.mxu0 0.0
        %991 = vmatprep.subr.mxu0 0.0
        %992 = vmatpush1.msra.mxu0 0.0
        %993 = vmatprep.subr.mxu0 0.0
        %994 = vmatpush1.msra.mxu0 0.0
        %995 = vmatprep.subr.mxu0 0.0
        %996 = vmatpush1.msra.mxu0 0.0
        %997 = vmatprep.subr.mxu0 0.0
        %998 = vmatpush1.msra.mxu0 0.0
        %999 = vmatprep.subr.mxu0 0.0
        %1000 = vmatpush1.msra.mxu0 0.0
        %1001 = vmatprep.mubr.f32.mxu0 0.0
        %1002 = vmatmul.mubr.f32.gmra.mrb[0].mxu0 %v935
        %v1003 = vpop.f32.mrb[0].mxu0
        %v1004 = vadd.f32 0.0, %v1003
        %v1005 = vpop.f32.mrb[0].mxu0
        %1006 = vdwg.mxu0
        %v1008 = vsel %vm723, %v771, 0
        %1010 = vmatprep.subr.mxu0 0.0
        %1011 = vmatpush1.msra.mxu0 %v573
        %1012 = vmatprep.subr.mxu0 0.0
        %1013 = vmatpush1.msra.mxu0 0.0
        %1014 = vmatprep.subr.mxu0 0.0
        %1015 = vmatpush1.msra.mxu0 0.0
        %1016 = vmatprep.subr.mxu0 0.0
        %1017 = vmatpush1.msra.mxu0 0.0
        %1018 = vmatprep.subr.mxu0 0.0
        %1019 = vmatpush1.msra.mxu0 0.0
        %1020 = vmatprep.subr.mxu0 0.0
        %1021 = vmatpush1.msra.mxu0 0.0
        %1022 = vmatprep.subr.mxu0 0.0
        %1023 = vmatpush1.msra.mxu0 0.0
        %1024 = vmatprep.subr.mxu0 0.0
        %1025 = vmatpush1.msra.mxu0 0.0
        %1026 = vmatprep.subr.mxu0 0.0
        %1027 = vmatpush1.msra.mxu0 0.0
        %1028 = vmatprep.subr.mxu0 0.0
        %1029 = vmatpush1.msra.mxu0 0.0
        %1030 = vmatprep.subr.mxu0 0.0
        %1031 = vmatpush1.msra.mxu0 0.0
        %1032 = vmatprep.subr.mxu0 0.0
        %1033 = vmatpush1.msra.mxu0 0.0
        %1034 = vmatprep.subr.mxu0 0.0
        %1035 = vmatpush1.msra.mxu0 0.0
        %1036 = vmatprep.subr.mxu0 0.0
        %1037 = vmatpush1.msra.mxu0 0.0
        %1038 = vmatprep.subr.mxu0 0.0
        %1039 = vmatpush1.msra.mxu0 0.0
        %1040 = vmatprep.subr.mxu0 0.0
        %1041 = vmatpush1.msra.mxu0 0.0
        %1042 = vmatprep.subr.mxu0 0.0
        %1043 = vmatpush1.msra.mxu0 0.0
        %1044 = vmatprep.subr.mxu0 0.0
        %1045 = vmatpush1.msra.mxu0 0.0
        %1046 = vmatprep.subr.mxu0 0.0
        %1047 = vmatpush1.msra.mxu0 0.0
        %1048 = vmatprep.subr.mxu0 0.0
        %1049 = vmatpush1.msra.mxu0 0.0
        %1050 = vmatprep.subr.mxu0 0.0
        %1051 = vmatpush1.msra.mxu0 0.0
        %1052 = vmatprep.subr.mxu0 0.0
        %1053 = vmatpush1.msra.mxu0 0.0
        %1054 = vmatprep.subr.mxu0 0.0
        %1055 = vmatpush1.msra.mxu0 0.0
        %1056 = vmatprep.subr.mxu0 0.0
        %1057 = vmatpush1.msra.mxu0 0.0
        %1058 = vmatprep.subr.mxu0 0.0
        %1059 = vmatpush1.msra.mxu0 0.0
        %1060 = vmatprep.subr.mxu0 0.0
        %1061 = vmatpush1.msra.mxu0 0.0
        %1062 = vmatprep.subr.mxu0 0.0
        %1063 = vmatpush1.msra.mxu0 0.0
        %1064 = vmatprep.subr.mxu0 0.0
        %1065 = vmatpush1.msra.mxu0 0.0
        %1066 = vmatprep.subr.mxu0 0.0
        %1067 = vmatpush1.msra.mxu0 0.0
        %1068 = vmatprep.subr.mxu0 0.0
        %1069 = vmatpush1.msra.mxu0 0.0
        %1070 = vmatprep.subr.mxu0 0.0
        %1071 = vmatpush1.msra.mxu0 0.0
        %1072 = vmatprep.subr.mxu0 0.0
        %1073 = vmatpush1.msra.mxu0 0.0
        %1074 = vmatprep.mubr.f32.mxu0 0.0
        %1075 = vmatmul.mubr.f32.gmra.mrb[0].mxu0 %v1008
        %v1076 = vpop.f32.mrb[0].mxu0
        %v1077 = vadd.f32 0.0, %v1076
        %v1078 = vpop.f32.mrb[0].mxu0
        %1079 = vdwg.mxu0
        %vm1080 = vcmp.ge.f32.partialorder %v858, 0.0
        %vm1081 = vcmp.ge.f32.partialorder %v931, 0.0
        %vm1082 = vcmp.ge.f32.partialorder %v1004, 0.0
        %vm1083 = vcmp.ge.f32.partialorder %v1077, 0.0
        %v1084 = vmul.f32 %v858, 0.2
        %v1085 = vmul.f32 %v931, 0.2
        %v1086 = vmul.f32 %v1004, 0.2
        %v1087 = vmul.f32 %v1077, 0.2
        %v1088 = vsel %vm1080, %v858, %v1084
        %v1089 = vsel %vm1081, %v931, %v1085
        %v1090 = vsel %vm1082, %v1004, %v1086
        %v1091 = vsel %vm1083, %v1077, %v1087
        %v1092 = vmul.f32 %v784, %v570
        %v1093 = vmul.f32 %v785, %v571
        %v1094 = vmul.f32 %v786, %v572
        %v1095 = vmul.f32 %v787, %v573
        %v1096 = vadd.f32 %v1092, %v1088
        %v1097 = vadd.f32 %v1093, %v1089
        %v1098 = vadd.f32 %v1094, %v1090
        %v1099 = vadd.f32 %v1095, %v1091
        %v1100 = vcombine.low %v1096, %v1098
        %v1101 = vcombine.high %v1096, %v1098
        %v1103 = vunpack.c.l.s4 1983009808
        %v1104 = vunpack.c.0.s8 %v1103
        %v1105 = vlaneseq
        %v1106 = vshrl.u32 %v1105, 7
        %v1107 = vsub.s32 %v1104, %v1106
        %v1108 = vrot.slane %v1100, %v1107
        %v1110 = vunpack.c.l.s4 1983009808
        %v1111 = vunpack.c.0.s8 %v1110
        %v1112 = vlaneseq
        %v1113 = vshrl.u32 %v1112, 7
        %v1114 = vsub.s32 %v1111, %v1113
        %v1115 = vrot.slane %v1101, %v1114
        %v1116 = vcombine.low %v1097, %v1099
        %v1117 = vcombine.high %v1097, %v1099
        %v1119 = vunpack.c.l.s4 1983009808
        %v1120 = vunpack.c.0.s8 %v1119
        %v1121 = vlaneseq
        %v1122 = vshrl.u32 %v1121, 7
        %v1123 = vsub.s32 %v1120, %v1122
        %v1124 = vrot.slane %v1116, %v1123
        %v1126 = vunpack.c.l.s4 1983009808
        %v1127 = vunpack.c.0.s8 %v1126
        %v1128 = vlaneseq
        %v1129 = vshrl.u32 %v1128, 7
        %v1130 = vsub.s32 %v1127, %v1129
        %v1131 = vrot.slane %v1117, %v1130
        %v1132 = vcombine.low %v1108, %v1124
        %v1133 = vcombine.high %v1108, %v1124
        %v1135 = vunpack.c.l.s4 1934713408
        %v1136 = vunpack.c.0.s8 %v1135
        %v1137 = vlaneseq
        %v1138 = vshrl.u32 %v1137, 7
        %v1139 = vsub.s32 %v1136, %v1138
        %v1140 = vrot.slane %v1132, %v1139
        %v1142 = vunpack.c.l.s4 1934713408
        %v1143 = vunpack.c.0.s8 %v1142
        %v1144 = vlaneseq
        %v1145 = vshrl.u32 %v1144, 7
        %v1146 = vsub.s32 %v1143, %v1145
        %v1147 = vrot.slane %v1133, %v1146
        %v1148 = vcombine.low %v1115, %v1131
        %v1149 = vcombine.high %v1115, %v1131
        %v1151 = vunpack.c.l.s4 1934713408
        %v1152 = vunpack.c.0.s8 %v1151
        %v1153 = vlaneseq
        %v1154 = vshrl.u32 %v1153, 7
        %v1155 = vsub.s32 %v1152, %v1154
        %v1156 = vrot.slane %v1148, %v1155
        %v1158 = vunpack.c.l.s4 1934713408
        %v1159 = vunpack.c.0.s8 %v1158
        %v1160 = vlaneseq
        %v1161 = vshrl.u32 %v1160, 7
        %v1162 = vsub.s32 %v1159, %v1161
        %v1163 = vrot.slane %v1149, %v1162
        %v1164 = vcombine.high %v1140, 0.0
        %v1165 = vcombine.high %v1147, 0.0
        %v1166 = vcombine.high %v1156, 0.0
        %v1167 = vcombine.high %v1163, 0.0
        %v1168 = vcombine.low %v1140, %v1147
        %v1170 = vunpack.c.l.s4 1983009808
        %v1171 = vunpack.c.0.s8 %v1170
        %v1172 = vlaneseq
        %v1173 = vshrl.u32 %v1172, 7
        %v1174 = vsub.s32 %v1171, %v1173
        %v1175 = vrot.slane %v1168, %v1174
        %v1176 = vcombine.low %v1164, %v1165
        %v1178 = vunpack.c.l.s4 1983009808
        %v1179 = vunpack.c.0.s8 %v1178
        %v1180 = vlaneseq
        %v1181 = vshrl.u32 %v1180, 7
        %v1182 = vsub.s32 %v1179, %v1181
        %v1183 = vrot.slane %v1176, %v1182
        %v1184 = vcombine.low %v1156, %v1163
        %v1186 = vunpack.c.l.s4 1983009808
        %v1187 = vunpack.c.0.s8 %v1186
        %v1188 = vlaneseq
        %v1189 = vshrl.u32 %v1188, 7
        %v1190 = vsub.s32 %v1187, %v1189
        %v1191 = vrot.slane %v1184, %v1190
        %v1192 = vcombine.low %v1166, %v1167
        %v1194 = vunpack.c.l.s4 1983009808
        %v1195 = vunpack.c.0.s8 %v1194
        %v1196 = vlaneseq
        %v1197 = vshrl.u32 %v1196, 7
        %v1198 = vsub.s32 %v1195, %v1197
        %v1199 = vrot.slane %v1192, %v1198
        %v1200 = vcombine.low %v1175, %v1183
        %v1201 = vcombine.high %v1175, %v1183
        %v1203 = vunpack.c.l.s4 1934713408
        %v1204 = vunpack.c.0.s8 %v1203
        %v1205 = vlaneseq
        %v1206 = vshrl.u32 %v1205, 7
        %v1207 = vsub.s32 %v1204, %v1206
        %v1208 = vrot.slane %v1200, %v1207
        %v1210 = vunpack.c.l.s4 1934713408
        %v1211 = vunpack.c.0.s8 %v1210
        %v1212 = vlaneseq
        %v1213 = vshrl.u32 %v1212, 7
        %v1214 = vsub.s32 %v1211, %v1213
        %v1215 = vrot.slane %v1201, %v1214
        %v1216 = vcombine.low %v1191, %v1199
        %v1217 = vcombine.high %v1191, %v1199
        %v1219 = vunpack.c.l.s4 1934713408
        %v1220 = vunpack.c.0.s8 %v1219
        %v1221 = vlaneseq
        %v1222 = vshrl.u32 %v1221, 7
        %v1223 = vsub.s32 %v1220, %v1222
        %v1224 = vrot.slane %v1216, %v1223
        %v1226 = vunpack.c.l.s4 1934713408
        %v1227 = vunpack.c.0.s8 %v1226
        %v1228 = vlaneseq
        %v1229 = vshrl.u32 %v1228, 7
        %v1230 = vsub.s32 %v1227, %v1229
        %v1231 = vrot.slane %v1217, %v1230
        %v1232 = vcombine.low %v1208, %v1224
        %v1233 = vcombine.high %v1208, %v1224
        %v1234 = vcombine.low %v1215, %v1231
        %v1235 = vcombine.high %v1215, %v1231
        %1237 = vrot.lane.b32.xlu0 %v1233, 8
        %v1238 = vpop.permute.xlu0 %1237
        %1241 = vrot.lane.b32.xlu0 %v1234, 16
        %v1242 = vpop.permute.xlu0 %1241
        %1245 = vrot.lane.b32.xlu0 %v1235, 24
        %v1246 = vpop.permute.xlu0 %1245
        %v1248 = vsel %vm723, %v1232, %v1238
        %vm1249 = vcmask 130048
        %v1250 = vsel %vm1249, %v1248, %v1242
        %vm1251 = vcmask 195584
        %v1252 = vsel %vm1251, %v1250, %v1246
        %v1253 = vadd.f32 %v275, %v1252
        %v1254 = vsel %vm280, %v1253, 0.0
        %1255 = vadd.xlane.f32.xlu0 %v1254
        %v1256 = vpop.xlane.xlu0 %1255
        %v1257 = vrcp.pop 32.0
        %v1258 = vmul.f32 %v1256, %v1257
        %v1259 = vsub.f32 %v1253, %v1258
        %v1260 = vmul.f32 %v1259, %v1259
        %v1261 = vsel %vm280, %v1260, 0.0
        %1262 = vadd.xlane.f32.xlu0 %v1261
        %v1263 = vpop.xlane.xlu0 %1262
        %v1264 = vmul.f32 %v1263, %v1257
        %v1265 = vadd.f32 %v1264, 1e-05
        %v1266 = vrsqrt.pop %v1265
        %v1267 = vmul.f32 %v1259, %v1266
        %v1268 = vld [vmem:[%s4] sm:$0x1]
        %v1270 = vlaneseq
        %v1271 = vshrl.u32 %v1270, 7
        %v1272 = vsub.s32 0, %v1271
        %v1273 = vrot.slane %v1268, %v1272
        %v1275 = vmul.f32 %v1267, %v1273
        %v1276 = vld [vmem:[%s5] sm:$0x1]
        %v1278 = vlaneseq
        %v1279 = vshrl.u32 %v1278, 7
        %v1280 = vsub.s32 0, %v1279
        %v1281 = vrot.slane %v1276, %v1280
        %v1283 = vadd.f32 %v1275, %v1281
        %s1284 = scalar_lea.vmem %s2, 32
        %v1285 = vld [vmem:[%s1284] sm:$0xff]
        %v1286 = vld [vmem:[%s1284 + $0x8] sm:$0xff]
        %v1287 = vld [vmem:[%s1284 + $0x10] sm:$0xff]
        %v1288 = vld [vmem:[%s1284 + $0x18] sm:$0xff]
        %v1290 = vsel %vm280, %v1283, 0
        %1292 = vmatprep.subr.mxu0 0.0
        %1293 = vmatpush1.msra.mxu0 %v1285
        %1294 = vmatprep.subr.mxu0 0.0
        %1295 = vmatpush1.msra.mxu0 %v1286
        %1296 = vmatprep.subr.mxu0 0.0
        %1297 = vmatpush1.msra.mxu0 %v1287
        %1298 = vmatprep.subr.mxu0 0.0
        %1299 = vmatpush1.msra.mxu0 %v1288
        %1300 = vmatprep.subr.mxu0 0.0
        %1301 = vmatpush1.msra.mxu0 0.0
        %1302 = vmatprep.subr.mxu0 0.0
        %1303 = vmatpush1.msra.mxu0 0.0
        %1304 = vmatprep.subr.mxu0 0.0
        %1305 = vmatpush1.msra.mxu0 0.0
        %1306 = vmatprep.subr.mxu0 0.0
        %1307 = vmatpush1.msra.mxu0 0.0
        %1308 = vmatprep.subr.mxu0 0.0
        %1309 = vmatpush1.msra.mxu0 0.0
        %1310 = vmatprep.subr.mxu0 0.0
        %1311 = vmatpush1.msra.mxu0 0.0
        %1312 = vmatprep.subr.mxu0 0.0
        %1313 = vmatpush1.msra.mxu0 0.0
        %1314 = vmatprep.subr.mxu0 0.0
        %1315 = vmatpush1.msra.mxu0 0.0
        %1316 = vmatprep.subr.mxu0 0.0
        %1317 = vmatpush1.msra.mxu0 0.0
        %1318 = vmatprep.subr.mxu0 0.0
        %1319 = vmatpush1.msra.mxu0 0.0
        %1320 = vmatprep.subr.mxu0 0.0
        %1321 = vmatpush1.msra.mxu0 0.0
        %1322 = vmatprep.subr.mxu0 0.0
        %1323 = vmatpush1.msra.mxu0 0.0
        %1324 = vmatprep.subr.mxu0 0.0
        %1325 = vmatpush1.msra.mxu0 0.0
        %1326 = vmatprep.subr.mxu0 0.0
        %1327 = vmatpush1.msra.mxu0 0.0
        %1328 = vmatprep.subr.mxu0 0.0
        %1329 = vmatpush1.msra.mxu0 0.0
        %1330 = vmatprep.subr.mxu0 0.0
        %1331 = vmatpush1.msra.mxu0 0.0
        %1332 = vmatprep.subr.mxu0 0.0
        %1333 = vmatpush1.msra.mxu0 0.0
        %1334 = vmatprep.subr.mxu0 0.0
        %1335 = vmatpush1.msra.mxu0 0.0
        %1336 = vmatprep.subr.mxu0 0.0
        %1337 = vmatpush1.msra.mxu0 0.0
        %1338 = vmatprep.subr.mxu0 0.0
        %1339 = vmatpush1.msra.mxu0 0.0
        %1340 = vmatprep.subr.mxu0 0.0
        %1341 = vmatpush1.msra.mxu0 0.0
        %1342 = vmatprep.subr.mxu0 0.0
        %1343 = vmatpush1.msra.mxu0 0.0
        %1344 = vmatprep.subr.mxu0 0.0
        %1345 = vmatpush1.msra.mxu0 0.0
        %1346 = vmatprep.subr.mxu0 0.0
        %1347 = vmatpush1.msra.mxu0 0.0
        %1348 = vmatprep.subr.mxu0 0.0
        %1349 = vmatpush1.msra.mxu0 0.0
        %1350 = vmatprep.subr.mxu0 0.0
        %1351 = vmatpush1.msra.mxu0 0.0
        %1352 = vmatprep.subr.mxu0 0.0
        %1353 = vmatpush1.msra.mxu0 0.0
        %1354 = vmatprep.subr.mxu0 0.0
        %1355 = vmatpush1.msra.mxu0 0.0
        %1356 = vmatprep.mubr.f32.mxu0 0.0
        %1357 = vmatmul.mubr.f32.gmra.mrb[0].mxu0 %v1290
        %v1358 = vpop.f32.mrb[0].mxu0
        %v1359 = vadd.f32 0.0, %v1358
        %v1360 = vpop.f32.mrb[0].mxu0
        %1361 = vdwg.mxu0
        %s1362 = scalar_lea.vmem %s3, 32
        %v1363 = vld [vmem:[%s1362] sm:$0xff]
        %v1364 = vld [vmem:[%s1362 + $0x8] sm:$0xff]
        %v1365 = vld [vmem:[%s1362 + $0x10] sm:$0xff]
        %v1366 = vld [vmem:[%s1362 + $0x18] sm:$0xff]
        %1367 = vmatprep.subr.mxu0 0.0
        %1368 = vmatpush1.msra.mxu0 %v1363
        %1369 = vmatprep.subr.mxu0 0.0
        %1370 = vmatpush1.msra.mxu0 %v1364
        %1371 = vmatprep.subr.mxu0 0.0
        %1372 = vmatpush1.msra.mxu0 %v1365
        %1373 = vmatprep.subr.mxu0 0.0
        %1374 = vmatpush1.msra.mxu0 %v1366
        %1375 = vmatprep.subr.mxu0 0.0
        %1376 = vmatpush1.msra.mxu0 0.0
        %1377 = vmatprep.subr.mxu0 0.0
        %1378 = vmatpush1.msra.mxu0 0.0
        %1379 = vmatprep.subr.mxu0 0.0
        %1380 = vmatpush1.msra.mxu0 0.0
        %1381 = vmatprep.subr.mxu0 0.0
        %1382 = vmatpush1.msra.mxu0 0.0
        %1383 = vmatprep.subr.mxu0 0.0
        %1384 = vmatpush1.msra.mxu0 0.0
        %1385 = vmatprep.subr.mxu0 0.0
        %1386 = vmatpush1.msra.mxu0 0.0
        %1387 = vmatprep.subr.mxu0 0.0
        %1388 = vmatpush1.msra.mxu0 0.0
        %1389 = vmatprep.subr.mxu0 0.0
        %1390 = vmatpush1.msra.mxu0 0.0
        %1391 = vmatprep.subr.mxu0 0.0
        %1392 = vmatpush1.msra.mxu0 0.0
        %1393 = vmatprep.subr.mxu0 0.0
        %1394 = vmatpush1.msra.mxu0 0.0
        %1395 = vmatprep.subr.mxu0 0.0
        %1396 = vmatpush1.msra.mxu0 0.0
        %1397 = vmatprep.subr.mxu0 0.0
        %1398 = vmatpush1.msra.mxu0 0.0
        %1399 = vmatprep.subr.mxu0 0.0
        %1400 = vmatpush1.msra.mxu0 0.0
        %1401 = vmatprep.subr.mxu0 0.0
        %1402 = vmatpush1.msra.mxu0 0.0
        %1403 = vmatprep.subr.mxu0 0.0
        %1404 = vmatpush1.msra.mxu0 0.0
        %1405 = vmatprep.subr.mxu0 0.0
        %1406 = vmatpush1.msra.mxu0 0.0
        %1407 = vmatprep.subr.mxu0 0.0
        %1408 = vmatpush1.msra.mxu0 0.0
        %1409 = vmatprep.subr.mxu0 0.0
        %1410 = vmatpush1.msra.mxu0 0.0
        %1411 = vmatprep.subr.mxu0 0.0
        %1412 = vmatpush1.msra.mxu0 0.0
        %1413 = vmatprep.subr.mxu0 0.0
        %1414 = vmatpush1.msra.mxu0 0.0
        %1415 = vmatprep.subr.mxu0 0.0
        %1416 = vmatpush1.msra.mxu0 0.0
        %1417 = vmatprep.subr.mxu0 0.0
        %1418 = vmatpush1.msra.mxu0 0.0
        %1419 = vmatprep.subr.mxu0 0.0
        %1420 = vmatpush1.msra.mxu0 0.0
        %1421 = vmatprep.subr.mxu0 0.0
        %1422 = vmatpush1.msra.mxu0 0.0
        %1423 = vmatprep.subr.mxu0 0.0
        %1424 = vmatpush1.msra.mxu0 0.0
        %1425 = vmatprep.subr.mxu0 0.0
        %1426 = vmatpush1.msra.mxu0 0.0
        %1427 = vmatprep.subr.mxu0 0.0
        %1428 = vmatpush1.msra.mxu0 0.0
        %1429 = vmatprep.subr.mxu0 0.0
        %1430 = vmatpush1.msra.mxu0 0.0
        %1431 = vmatprep.mubr.f32.mxu0 0.0
        %1432 = vmatmul.mubr.f32.gmra.mrb[0].mxu0 %v1290
        %v1433 = vpop.f32.mrb[0].mxu0
        %v1434 = vadd.f32 0.0, %v1433
        %v1435 = vpop.f32.mrb[0].mxu0
        %1436 = vdwg.mxu0
        %1438 = vrot.lane.b32.xlu0 %v1359, 120
        %v1439 = vpop.permute.xlu0 %1438
        %1441 = vrot.lane.b32.xlu0 %v1359, 112
        %v1442 = vpop.permute.xlu0 %1441
        %1444 = vrot.lane.b32.xlu0 %v1359, 104
        %v1445 = vpop.permute.xlu0 %1444
        %v1447 = vcombine.low %v1359, %v1442
        %v1448 = vcombine.high %v1359, %v1442
        %v1450 = vunpack.c.l.s4 1983009808
        %v1451 = vunpack.c.0.s8 %v1450
        %v1452 = vlaneseq
        %v1453 = vshrl.u32 %v1452, 7
        %v1454 = vsub.s32 %v1451, %v1453
        %v1455 = vrot.slane %v1447, %v1454
        %v1457 = vunpack.c.l.s4 1983009808
        %v1458 = vunpack.c.0.s8 %v1457
        %v1459 = vlaneseq
        %v1460 = vshrl.u32 %v1459, 7
        %v1461 = vsub.s32 %v1458, %v1460
        %v1462 = vrot.slane %v1448, %v1461
        %v1463 = vcombine.low %v1439, %v1445
        %v1464 = vcombine.high %v1439, %v1445
        %v1466 = vunpack.c.l.s4 1983009808
        %v1467 = vunpack.c.0.s8 %v1466
        %v1468 = vlaneseq
        %v1469 = vshrl.u32 %v1468, 7
        %v1470 = vsub.s32 %v1467, %v1469
        %v1471 = vrot.slane %v1463, %v1470
        %v1473 = vunpack.c.l.s4 1983009808
        %v1474 = vunpack.c.0.s8 %v1473
        %v1475 = vlaneseq
        %v1476 = vshrl.u32 %v1475, 7
        %v1477 = vsub.s32 %v1474, %v1476
        %v1478 = vrot.slane %v1464, %v1477
        %v1479 = vcombine.low %v1455, %v1471
        %v1480 = vcombine.high %v1455, %v1471
        %v1482 = vunpack.c.l.s4 1934713408
        %v1483 = vunpack.c.0.s8 %v1482
        %v1484 = vlaneseq
        %v1485 = vshrl.u32 %v1484, 7
        %v1486 = vsub.s32 %v1483, %v1485
        %v1487 = vrot.slane %v1479, %v1486
        %v1489 = vunpack.c.l.s4 1934713408
        %v1490 = vunpack.c.0.s8 %v1489
        %v1491 = vlaneseq
        %v1492 = vshrl.u32 %v1491, 7
        %v1493 = vsub.s32 %v1490, %v1492
        %v1494 = vrot.slane %v1480, %v1493
        %v1495 = vcombine.low %v1462, %v1478
        %v1496 = vcombine.high %v1462, %v1478
        %v1498 = vunpack.c.l.s4 1934713408
        %v1499 = vunpack.c.0.s8 %v1498
        %v1500 = vlaneseq
        %v1501 = vshrl.u32 %v1500, 7
        %v1502 = vsub.s32 %v1499, %v1501
        %v1503 = vrot.slane %v1495, %v1502
        %v1505 = vunpack.c.l.s4 1934713408
        %v1506 = vunpack.c.0.s8 %v1505
        %v1507 = vlaneseq
        %v1508 = vshrl.u32 %v1507, 7
        %v1509 = vsub.s32 %v1506, %v1508
        %v1510 = vrot.slane %v1496, %v1509
        %v1511 = vcombine.high %v1487, 0.0
        %v1512 = vcombine.high %v1494, 0.0
        %v1513 = vcombine.high %v1503, 0.0
        %v1514 = vcombine.high %v1510, 0.0
        %v1515 = vcombine.low %v1487, %v1494
        %v1517 = vunpack.c.l.s4 1983009808
        %v1518 = vunpack.c.0.s8 %v1517
        %v1519 = vlaneseq
        %v1520 = vshrl.u32 %v1519, 7
        %v1521 = vsub.s32 %v1518, %v1520
        %v1522 = vrot.slane %v1515, %v1521
        %v1523 = vcombine.low %v1511, %v1512
        %v1525 = vunpack.c.l.s4 1983009808
        %v1526 = vunpack.c.0.s8 %v1525
        %v1527 = vlaneseq
        %v1528 = vshrl.u32 %v1527, 7
        %v1529 = vsub.s32 %v1526, %v1528
        %v1530 = vrot.slane %v1523, %v1529
        %v1531 = vcombine.low %v1503, %v1510
        %v1533 = vunpack.c.l.s4 1983009808
        %v1534 = vunpack.c.0.s8 %v1533
        %v1535 = vlaneseq
        %v1536 = vshrl.u32 %v1535, 7
        %v1537 = vsub.s32 %v1534, %v1536
        %v1538 = vrot.slane %v1531, %v1537
        %v1539 = vcombine.low %v1513, %v1514
        %v1541 = vunpack.c.l.s4 1983009808
        %v1542 = vunpack.c.0.s8 %v1541
        %v1543 = vlaneseq
        %v1544 = vshrl.u32 %v1543, 7
        %v1545 = vsub.s32 %v1542, %v1544
        %v1546 = vrot.slane %v1539, %v1545
        %v1547 = vcombine.low %v1522, %v1530
        %v1548 = vcombine.high %v1522, %v1530
        %v1550 = vunpack.c.l.s4 1934713408
        %v1551 = vunpack.c.0.s8 %v1550
        %v1552 = vlaneseq
        %v1553 = vshrl.u32 %v1552, 7
        %v1554 = vsub.s32 %v1551, %v1553
        %v1555 = vrot.slane %v1547, %v1554
        %v1557 = vunpack.c.l.s4 1934713408
        %v1558 = vunpack.c.0.s8 %v1557
        %v1559 = vlaneseq
        %v1560 = vshrl.u32 %v1559, 7
        %v1561 = vsub.s32 %v1558, %v1560
        %v1562 = vrot.slane %v1548, %v1561
        %v1563 = vcombine.low %v1538, %v1546
        %v1564 = vcombine.high %v1538, %v1546
        %v1566 = vunpack.c.l.s4 1934713408
        %v1567 = vunpack.c.0.s8 %v1566
        %v1568 = vlaneseq
        %v1569 = vshrl.u32 %v1568, 7
        %v1570 = vsub.s32 %v1567, %v1569
        %v1571 = vrot.slane %v1563, %v1570
        %v1573 = vunpack.c.l.s4 1934713408
        %v1574 = vunpack.c.0.s8 %v1573
        %v1575 = vlaneseq
        %v1576 = vshrl.u32 %v1575, 7
        %v1577 = vsub.s32 %v1574, %v1576
        %v1578 = vrot.slane %v1564, %v1577
        %v1579 = vcombine.low %v1555, %v1571
        %v1580 = vcombine.high %v1555, %v1571
        %v1581 = vcombine.low %v1562, %v1578
        %v1582 = vcombine.high %v1562, %v1578
        %1583 = vxpose.xlu0.b32.start [1/16] %v1434, 128
        %1584 = vxpose.xlu0.b32.cont [2/16] 0.0, 128
        %1585 = vxpose.xlu0.b32.cont [3/16] 0.0, 128
        %1586 = vxpose.xlu0.b32.cont [4/16] 0.0, 128
        %1587 = vxpose.xlu0.b32.cont [5/16] 0.0, 128
        %1588 = vxpose.xlu0.b32.cont [6/16] 0.0, 128
        %1589 = vxpose.xlu0.b32.cont [7/16] 0.0, 128
        %1590 = vxpose.xlu0.b32.cont [8/16] 0.0, 128
        %1591 = vxpose.xlu0.b32.cont [9/16] 0.0, 128
        %1592 = vxpose.xlu0.b32.cont [10/16] 0.0, 128
        %1593 = vxpose.xlu0.b32.cont [11/16] 0.0, 128
        %1594 = vxpose.xlu0.b32.cont [12/16] 0.0, 128
        %1595 = vxpose.xlu0.b32.cont [13/16] 0.0, 128
        %1596 = vxpose.xlu0.b32.cont [14/16] 0.0, 128
        %1597 = vxpose.xlu0.b32.cont [15/16] 0.0, 128
        %1598 = vxpose.xlu0.b32.end [16/16] 0.0, 128
        %v1599 = vpop.trf.xlu0
        %v1600 = vpop.trf.xlu0
        %v1601 = vpop.trf.xlu0
        %v1602 = vpop.trf.xlu0
        %v1603 = vpop.trf.xlu0
        %v1604 = vpop.trf.xlu0
        %v1605 = vpop.trf.xlu0
        %v1606 = vpop.trf.xlu0
        %v1607 = vpop.trf.xlu0
        %v1608 = vpop.trf.xlu0
        %v1609 = vpop.trf.xlu0
        %v1610 = vpop.trf.xlu0
        %v1611 = vpop.trf.xlu0
        %v1612 = vpop.trf.xlu0
        %v1613 = vpop.trf.xlu0
        %v1614 = vpop.trf.xlu0
        %v1615 = vlaneseq
        %v1616 = vshrl.u32 %v1615, 7
        %v1617 = vsub.s32 0, %v1616
        %v1618 = vrot.slane %v1599, %v1617
        %1620 = vbcast.lane.b32.xlu0 %v1618, 256
        %v1621 = vpop.permute.xlu0 %1620
        %v1622 = vlaneseq
        %v1623 = vshrl.u32 %v1622, 7
        %v1624 = vsub.s32 1, %v1623
        %v1625 = vrot.slane %v1599, %v1624
        %1627 = vbcast.lane.b32.xlu0 %v1625, 256
        %v1628 = vpop.permute.xlu0 %1627
        %v1629 = vlaneseq
        %v1630 = vshrl.u32 %v1629, 7
        %v1631 = vsub.s32 2, %v1630
        %v1632 = vrot.slane %v1599, %v1631
        %1634 = vbcast.lane.b32.xlu0 %v1632, 256
        %v1635 = vpop.permute.xlu0 %1634
        %v1636 = vlaneseq
        %v1637 = vshrl.u32 %v1636, 7
        %v1638 = vsub.s32 3, %v1637
        %v1639 = vrot.slane %v1599, %v1638
        %1641 = vbcast.lane.b32.xlu0 %v1639, 256
        %v1642 = vpop.permute.xlu0 %1641
        %1644 = vrot.lane.b32.xlu0 %v1434, 124
        %v1645 = vpop.permute.xlu0 %1644
        %1647 = vxpose.xlu0.b32.start [1/16] %v1645, 128
        %1648 = vxpose.xlu0.b32.cont [2/16] 0.0, 128
        %1649 = vxpose.xlu0.b32.cont [3/16] 0.0, 128
        %1650 = vxpose.xlu0.b32.cont [4/16] 0.0, 128
        %1651 = vxpose.xlu0.b32.cont [5/16] 0.0, 128
        %1652 = vxpose.xlu0.b32.cont [6/16] 0.0, 128
        %1653 = vxpose.xlu0.b32.cont [7/16] 0.0, 128
        %1654 = vxpose.xlu0.b32.cont [8/16] 0.0, 128
        %1655 = vxpose.xlu0.b32.cont [9/16] 0.0, 128
        %1656 = vxpose.xlu0.b32.cont [10/16] 0.0, 128
        %1657 = vxpose.xlu0.b32.cont [11/16] 0.0, 128
        %1658 = vxpose.xlu0.b32.cont [12/16] 0.0, 128
        %1659 = vxpose.xlu0.b32.cont [13/16] 0.0, 128
        %1660 = vxpose.xlu0.b32.cont [14/16] 0.0, 128
        %1661 = vxpose.xlu0.b32.cont [15/16] 0.0, 128
        %1662 = vxpose.xlu0.b32.end [16/16] 0.0, 128
        %v1663 = vpop.trf.xlu0
        %v1664 = vpop.trf.xlu0
        %v1665 = vpop.trf.xlu0
        %v1666 = vpop.trf.xlu0
        %v1667 = vpop.trf.xlu0
        %v1668 = vpop.trf.xlu0
        %v1669 = vpop.trf.xlu0
        %v1670 = vpop.trf.xlu0
        %v1671 = vpop.trf.xlu0
        %v1672 = vpop.trf.xlu0
        %v1673 = vpop.trf.xlu0
        %v1674 = vpop.trf.xlu0
        %v1675 = vpop.trf.xlu0
        %v1676 = vpop.trf.xlu0
        %v1677 = vpop.trf.xlu0
        %v1678 = vpop.trf.xlu0
        %v1681 = vunpack.c.l.s4 1966171168
        %v1682 = vunpack.c.0.s8 %v1681
        %v1683 = vlaneseq
        %v1684 = vshrl.u32 %v1683, 7
        %v1685 = vsub.s32 %v1682, %v1684
        %v1686 = vrot.slane %v1663, %v1685
        %v1687 = vcombine.high %v1686, %v1686
        %v1689 = vunpack.c.l.s4 1966171168
        %v1690 = vunpack.c.0.s8 %v1689
        %v1691 = vlaneseq
        %v1692 = vshrl.u32 %v1691, 7
        %v1693 = vsub.s32 %v1690, %v1692
        %v1694 = vrot.slane %v1686, %v1693
        %v1696 = vunpack.c.l.s4 1966171168
        %v1697 = vunpack.c.0.s8 %v1696
        %v1698 = vlaneseq
        %v1699 = vshrl.u32 %v1698, 7
        %v1700 = vsub.s32 %v1697, %v1699
        %v1701 = vrot.slane %v1687, %v1700
        %v1702 = vcombine.high %v1694, %v1694
        %v1703 = vcombine.high %v1701, %v1701
        %v1704 = vlaneseq
        %v1705 = vshrl.u32 %v1704, 7
        %v1706 = vsub.s32 0, %v1705
        %v1707 = vrot.slane %v1694, %v1706
        %v1708 = vlaneseq
        %v1709 = vshrl.u32 %v1708, 7
        %v1710 = vsub.s32 0, %v1709
        %v1711 = vrot.slane %v1701, %v1710
        %v1712 = vlaneseq
        %v1713 = vshrl.u32 %v1712, 7
        %v1714 = vsub.s32 0, %v1713
        %v1715 = vrot.slane %v1702, %v1714
        %v1716 = vlaneseq
        %v1717 = vshrl.u32 %v1716, 7
        %v1718 = vsub.s32 0, %v1717
        %v1719 = vrot.slane %v1703, %v1718
        %v1724 = vadd.f32 %v1621, %v1707
        %v1725 = vadd.f32 %v1628, %v1711
        %v1726 = vadd.f32 %v1635, %v1715
        %v1727 = vadd.f32 %v1642, %v1719
        %v1728 = vadd.f32 %v1724, %v267
        %v1729 = vadd.f32 %v1725, %v267
        %v1730 = vadd.f32 %v1726, %v267
        %v1731 = vadd.f32 %v1727, %v267
        %v1732 = vsel %vm723, %v1728, -inf
        %1733 = vmax.xlane.f32.xlu0 %v1732
        %v1734 = vpop.xlane.xlu0 %1733
        %v1735 = vsel %vm723, %v1729, -inf
        %1736 = vmax.xlane.f32.xlu0 %v1735
        %v1737 = vpop.xlane.xlu0 %1736
        %v1738 = vsel %vm723, %v1730, -inf
        %1739 = vmax.xlane.f32.xlu0 %v1738
        %v1740 = vpop.xlane.xlu0 %1739
        %v1741 = vsel %vm723, %v1731, -inf
        %1742 = vmax.xlane.f32.xlu0 %v1741
        %v1743 = vpop.xlane.xlu0 %1742
        %v1744 = vsub.f32 %v1728, %v1734
        %v1745 = vsub.f32 %v1729, %v1737
        %v1746 = vsub.f32 %v1730, %v1740
        %v1747 = vsub.f32 %v1731, %v1743
        %v1748 = vmul.f32 %v1744, 1.442695
        %v1749 = vpow.pop %v1748
        %v1750 = vmul.f32 %v1745, 1.442695
        %v1751 = vpow.pop %v1750
        %v1752 = vmul.f32 %v1746, 1.442695
        %v1753 = vpow.pop %v1752
        %v1754 = vmul.f32 %v1747, 1.442695
        %v1755 = vpow.pop %v1754
        %v1756 = vsel %vm723, %v1749, 0.0
        %1757 = vadd.xlane.f32.xlu0 %v1756
        %v1758 = vpop.xlane.xlu0 %1757
        %v1759 = vsel %vm723, %v1751, 0.0
        %1760 = vadd.xlane.f32.xlu0 %v1759
        %v1761 = vpop.xlane.xlu0 %1760
        %v1762 = vsel %vm723, %v1753, 0.0
        %1763 = vadd.xlane.f32.xlu0 %v1762
        %v1764 = vpop.xlane.xlu0 %1763
        %v1765 = vsel %vm723, %v1755, 0.0
        %1766 = vadd.xlane.f32.xlu0 %v1765
        %v1767 = vpop.xlane.xlu0 %1766
        %v1768 = vrcp.pop %v1758
        %v1769 = vrcp.pop %v1761
        %v1770 = vrcp.pop %v1764
        %v1771 = vrcp.pop %v1767
        %v1772 = vmul.f32 %v1749, %v1768
        %v1773 = vmul.f32 %v1751, %v1769
        %v1774 = vmul.f32 %v1753, %v1770
        %v1775 = vmul.f32 %v1755, %v1771
        %v1776 = vmul.f32 %v1772, %v274
        %v1777 = vmul.f32 %v1773, %v274
        %v1778 = vmul.f32 %v1774, %v274
        %v1779 = vmul.f32 %v1775, %v274
        %v1780 = vsel %vm723, %v1776, 0.0
        %1781 = vadd.xlane.f32.xlu0 %v1780
        %v1782 = vpop.xlane.xlu0 %1781
        %v1783 = vsel %vm723, %v1777, 0.0
        %1784 = vadd.xlane.f32.xlu0 %v1783
        %v1785 = vpop.xlane.xlu0 %1784
        %v1786 = vsel %vm723, %v1778, 0.0
        %1787 = vadd.xlane.f32.xlu0 %v1786
        %v1788 = vpop.xlane.xlu0 %1787
        %v1789 = vsel %vm723, %v1779, 0.0
        %1790 = vadd.xlane.f32.xlu0 %v1789
        %v1791 = vpop.xlane.xlu0 %1790
        %v1792 = vsub.f32 1.0, %v1782
        %v1793 = vsub.f32 1.0, %v1785
        %v1794 = vsub.f32 1.0, %v1788
        %v1795 = vsub.f32 1.0, %v1791
        %v1797 = vsel %vm723, %v1776, 0
        %1799 = vmatprep.subr.mxu0 0.0
        %1800 = vmatpush1.msra.mxu0 %v1579
        %1801 = vmatprep.subr.mxu0 0.0
        %1802 = vmatpush1.msra.mxu0 0.0
        %1803 = vmatprep.subr.mxu0 0.0
        %1804 = vmatpush1.msra.mxu0 0.0
        %1805 = vmatprep.subr.mxu0 0.0
        %1806 = vmatpush1.msra.mxu0 0.0
        %1807 = vmatprep.subr.mxu0 0.0
        %1808 = vmatpush1.msra.mxu0 0.0
        %1809 = vmatprep.subr.mxu0 0.0
        %1810 = vmatpush1.msra.mxu0 0.0
        %1811 = vmatprep.subr.mxu0 0.0
        %1812 = vmatpush1.msra.mxu0 0.0
        %1813 = vmatprep.subr.mxu0 0.0
        %1814 = vmatpush1.msra.mxu0 0.0
        %1815 = vmatprep.subr.mxu0 0.0
        %1816 = vmatpush1.msra.mxu0 0.0
        %1817 = vmatprep.subr.mxu0 0.0
        %1818 = vmatpush1.msra.mxu0 0.0
        %1819 = vmatprep.subr.mxu0 0.0
        %1820 = vmatpush1.msra.mxu0 0.0
        %1821 = vmatprep.subr.mxu0 0.0
        %1822 = vmatpush1.msra.mxu0 0.0
        %1823 = vmatprep.subr.mxu0 0.0
        %1824 = vmatpush1.msra.mxu0 0.0
        %1825 = vmatprep.subr.mxu0 0.0
        %1826 = vmatpush1.msra.mxu0 0.0
        %1827 = vmatprep.subr.mxu0 0.0
        %1828 = vmatpush1.msra.mxu0 0.0
        %1829 = vmatprep.subr.mxu0 0.0
        %1830 = vmatpush1.msra.mxu0 0.0
        %1831 = vmatprep.subr.mxu0 0.0
        %1832 = vmatpush1.msra.mxu0 0.0
        %1833 = vmatprep.subr.mxu0 0.0
        %1834 = vmatpush1.msra.mxu0 0.0
        %1835 = vmatprep.subr.mxu0 0.0
        %1836 = vmatpush1.msra.mxu0 0.0
        %1837 = vmatprep.subr.mxu0 0.0
        %1838 = vmatpush1.msra.mxu0 0.0
        %1839 = vmatprep.subr.mxu0 0.0
        %1840 = vmatpush1.msra.mxu0 0.0
        %1841 = vmatprep.subr.mxu0 0.0
        %1842 = vmatpush1.msra.mxu0 0.0
        %1843 = vmatprep.subr.mxu0 0.0
        %1844 = vmatpush1.msra.mxu0 0.0
        %1845 = vmatprep.subr.mxu0 0.0
        %1846 = vmatpush1.msra.mxu0 0.0
        %1847 = vmatprep.subr.mxu0 0.0
        %1848 = vmatpush1.msra.mxu0 0.0
        %1849 = vmatprep.subr.mxu0 0.0
        %1850 = vmatpush1.msra.mxu0 0.0
        %1851 = vmatprep.subr.mxu0 0.0
        %1852 = vmatpush1.msra.mxu0 0.0
        %1853 = vmatprep.subr.mxu0 0.0
        %1854 = vmatpush1.msra.mxu0 0.0
        %1855 = vmatprep.subr.mxu0 0.0
        %1856 = vmatpush1.msra.mxu0 0.0
        %1857 = vmatprep.subr.mxu0 0.0
        %1858 = vmatpush1.msra.mxu0 0.0
        %1859 = vmatprep.subr.mxu0 0.0
        %1860 = vmatpush1.msra.mxu0 0.0
        %1861 = vmatprep.subr.mxu0 0.0
        %1862 = vmatpush1.msra.mxu0 0.0
        %1863 = vmatprep.mubr.f32.mxu0 0.0
        %1864 = vmatmul.mubr.f32.gmra.mrb[0].mxu0 %v1797
        %v1865 = vpop.f32.mrb[0].mxu0
        %v1866 = vadd.f32 0.0, %v1865
        %v1867 = vpop.f32.mrb[0].mxu0
        %1868 = vdwg.mxu0
        %v1870 = vsel %vm723, %v1777, 0
        %1872 = vmatprep.subr.mxu0 0.0
        %1873 = vmatpush1.msra.mxu0 %v1580
        %1874 = vmatprep.subr.mxu0 0.0
        %1875 = vmatpush1.msra.mxu0 0.0
        %1876 = vmatprep.subr.mxu0 0.0
        %1877 = vmatpush1.msra.mxu0 0.0
        %1878 = vmatprep.subr.mxu0 0.0
        %1879 = vmatpush1.msra.mxu0 0.0
        %1880 = vmatprep.subr.mxu0 0.0
        %1881 = vmatpush1.msra.mxu0 0.0
        %1882 = vmatprep.subr.mxu0 0.0
        %1883 = vmatpush1.msra.mxu0 0.0
        %1884 = vmatprep.subr.mxu0 0.0
        %1885 = vmatpush1.msra.mxu0 0.0
        %1886 = vmatprep.subr.mxu0 0.0
        %1887 = vmatpush1.msra.mxu0 0.0
        %1888 = vmatprep.subr.mxu0 0.0
        %1889 = vmatpush1.msra.mxu0 0.0
        %1890 = vmatprep.subr.mxu0 0.0
        %1891 = vmatpush1.msra.mxu0 0.0
        %1892 = vmatprep.subr.mxu0 0.0
        %1893 = vmatpush1.msra.mxu0 0.0
        %1894 = vmatprep.subr.mxu0 0.0
        %1895 = vmatpush1.msra.mxu0 0.0
        %1896 = vmatprep.subr.mxu0 0.0
        %1897 = vmatpush1.msra.mxu0 0.0
        %1898 = vmatprep.subr.mxu0 0.0
        %1899 = vmatpush1.msra.mxu0 0.0
        %1900 = vmatprep.subr.mxu0 0.0
        %1901 = vmatpush1.msra.mxu0 0.0
        %1902 = vmatprep.subr.mxu0 0.0
        %1903 = vmatpush1.msra.mxu0 0.0
        %1904 = vmatprep.subr.mxu0 0.0
        %1905 = vmatpush1.msra.mxu0 0.0
        %1906 = vmatprep.subr.mxu0 0.0
        %1907 = vmatpush1.msra.mxu0 0.0
        %1908 = vmatprep.subr.mxu0 0.0
        %1909 = vmatpush1.msra.mxu0 0.0
        %1910 = vmatprep.subr.mxu0 0.0
        %1911 = vmatpush1.msra.mxu0 0.0
        %1912 = vmatprep.subr.mxu0 0.0
        %1913 = vmatpush1.msra.mxu0 0.0
        %1914 = vmatprep.subr.mxu0 0.0
        %1915 = vmatpush1.msra.mxu0 0.0
        %1916 = vmatprep.subr.mxu0 0.0
        %1917 = vmatpush1.msra.mxu0 0.0
        %1918 = vmatprep.subr.mxu0 0.0
        %1919 = vmatpush1.msra.mxu0 0.0
        %1920 = vmatprep.subr.mxu0 0.0
        %1921 = vmatpush1.msra.mxu0 0.0
        %1922 = vmatprep.subr.mxu0 0.0
        %1923 = vmatpush1.msra.mxu0 0.0
        %1924 = vmatprep.subr.mxu0 0.0
        %1925 = vmatpush1.msra.mxu0 0.0
        %1926 = vmatprep.subr.mxu0 0.0
        %1927 = vmatpush1.msra.mxu0 0.0
        %1928 = vmatprep.subr.mxu0 0.0
        %1929 = vmatpush1.msra.mxu0 0.0
        %1930 = vmatprep.subr.mxu0 0.0
        %1931 = vmatpush1.msra.mxu0 0.0
        %1932 = vmatprep.subr.mxu0 0.0
        %1933 = vmatpush1.msra.mxu0 0.0
        %1934 = vmatprep.subr.mxu0 0.0
        %1935 = vmatpush1.msra.mxu0 0.0
        %1936 = vmatprep.mubr.f32.mxu0 0.0
        %1937 = vmatmul.mubr.f32.gmra.mrb[0].mxu0 %v1870
        %v1938 = vpop.f32.mrb[0].mxu0
        %v1939 = vadd.f32 0.0, %v1938
        %v1940 = vpop.f32.mrb[0].mxu0
        %1941 = vdwg.mxu0
        %v1943 = vsel %vm723, %v1778, 0
        %1945 = vmatprep.subr.mxu0 0.0
        %1946 = vmatpush1.msra.mxu0 %v1581
        %1947 = vmatprep.subr.mxu0 0.0
        %1948 = vmatpush1.msra.mxu0 0.0
        %1949 = vmatprep.subr.mxu0 0.0
        %1950 = vmatpush1.msra.mxu0 0.0
        %1951 = vmatprep.subr.mxu0 0.0
        %1952 = vmatpush1.msra.mxu0 0.0
        %1953 = vmatprep.subr.mxu0 0.0
        %1954 = vmatpush1.msra.mxu0 0.0
        %1955 = vmatprep.subr.mxu0 0.0
        %1956 = vmatpush1.msra.mxu0 0.0
        %1957 = vmatprep.subr.mxu0 0.0
        %1958 = vmatpush1.msra.mxu0 0.0
        %1959 = vmatprep.subr.mxu0 0.0
        %1960 = vmatpush1.msra.mxu0 0.0
        %1961 = vmatprep.subr.mxu0 0.0
        %1962 = vmatpush1.msra.mxu0 0.0
        %1963 = vmatprep.subr.mxu0 0.0
        %1964 = vmatpush1.msra.mxu0 0.0
        %1965 = vmatprep.subr.mxu0 0.0
        %1966 = vmatpush1.msra.mxu0 0.0
        %1967 = vmatprep.subr.mxu0 0.0
        %1968 = vmatpush1.msra.mxu0 0.0
        %1969 = vmatprep.subr.mxu0 0.0
        %1970 = vmatpush1.msra.mxu0 0.0
        %1971 = vmatprep.subr.mxu0 0.0
        %1972 = vmatpush1.msra.mxu0 0.0
        %1973 = vmatprep.subr.mxu0 0.0
        %1974 = vmatpush1.msra.mxu0 0.0
        %1975 = vmatprep.subr.mxu0 0.0
        %1976 = vmatpush1.msra.mxu0 0.0
        %1977 = vmatprep.subr.mxu0 0.0
        %1978 = vmatpush1.msra.mxu0 0.0
        %1979 = vmatprep.subr.mxu0 0.0
        %1980 = vmatpush1.msra.mxu0 0.0
        %1981 = vmatprep.subr.mxu0 0.0
        %1982 = vmatpush1.msra.mxu0 0.0
        %1983 = vmatprep.subr.mxu0 0.0
        %1984 = vmatpush1.msra.mxu0 0.0
        %1985 = vmatprep.subr.mxu0 0.0
        %1986 = vmatpush1.msra.mxu0 0.0
        %1987 = vmatprep.subr.mxu0 0.0
        %1988 = vmatpush1.msra.mxu0 0.0
        %1989 = vmatprep.subr.mxu0 0.0
        %1990 = vmatpush1.msra.mxu0 0.0
        %1991 = vmatprep.subr.mxu0 0.0
        %1992 = vmatpush1.msra.mxu0 0.0
        %1993 = vmatprep.subr.mxu0 0.0
        %1994 = vmatpush1.msra.mxu0 0.0
        %1995 = vmatprep.subr.mxu0 0.0
        %1996 = vmatpush1.msra.mxu0 0.0
        %1997 = vmatprep.subr.mxu0 0.0
        %1998 = vmatpush1.msra.mxu0 0.0
        %1999 = vmatprep.subr.mxu0 0.0
        %2000 = vmatpush1.msra.mxu0 0.0
        %2001 = vmatprep.subr.mxu0 0.0
        %2002 = vmatpush1.msra.mxu0 0.0
        %2003 = vmatprep.subr.mxu0 0.0
        %2004 = vmatpush1.msra.mxu0 0.0
        %2005 = vmatprep.subr.mxu0 0.0
        %2006 = vmatpush1.msra.mxu0 0.0
        %2007 = vmatprep.subr.mxu0 0.0
        %2008 = vmatpush1.msra.mxu0 0.0
        %2009 = vmatprep.mubr.f32.mxu0 0.0
        %2010 = vmatmul.mubr.f32.gmra.mrb[0].mxu0 %v1943
        %v2011 = vpop.f32.mrb[0].mxu0
        %v2012 = vadd.f32 0.0, %v2011
        %v2013 = vpop.f32.mrb[0].mxu0
        %2014 = vdwg.mxu0
        %v2016 = vsel %vm723, %v1779, 0
        %2018 = vmatprep.subr.mxu0 0.0
        %2019 = vmatpush1.msra.mxu0 %v1582
        %2020 = vmatprep.subr.mxu0 0.0
        %2021 = vmatpush1.msra.mxu0 0.0
        %2022 = vmatprep.subr.mxu0 0.0
        %2023 = vmatpush1.msra.mxu0 0.0
        %2024 = vmatprep.subr.mxu0 0.0
        %2025 = vmatpush1.msra.mxu0 0.0
        %2026 = vmatprep.subr.mxu0 0.0
        %2027 = vmatpush1.msra.mxu0 0.0
        %2028 = vmatprep.subr.mxu0 0.0
        %2029 = vmatpush1.msra.mxu0 0.0
        %2030 = vmatprep.subr.mxu0 0.0
        %2031 = vmatpush1.msra.mxu0 0.0
        %2032 = vmatprep.subr.mxu0 0.0
        %2033 = vmatpush1.msra.mxu0 0.0
        %2034 = vmatprep.subr.mxu0 0.0
        %2035 = vmatpush1.msra.mxu0 0.0
        %2036 = vmatprep.subr.mxu0 0.0
        %2037 = vmatpush1.msra.mxu0 0.0
        %2038 = vmatprep.subr.mxu0 0.0
        %2039 = vmatpush1.msra.mxu0 0.0
        %2040 = vmatprep.subr.mxu0 0.0
        %2041 = vmatpush1.msra.mxu0 0.0
        %2042 = vmatprep.subr.mxu0 0.0
        %2043 = vmatpush1.msra.mxu0 0.0
        %2044 = vmatprep.subr.mxu0 0.0
        %2045 = vmatpush1.msra.mxu0 0.0
        %2046 = vmatprep.subr.mxu0 0.0
        %2047 = vmatpush1.msra.mxu0 0.0
        %2048 = vmatprep.subr.mxu0 0.0
        %2049 = vmatpush1.msra.mxu0 0.0
        %2050 = vmatprep.subr.mxu0 0.0
        %2051 = vmatpush1.msra.mxu0 0.0
        %2052 = vmatprep.subr.mxu0 0.0
        %2053 = vmatpush1.msra.mxu0 0.0
        %2054 = vmatprep.subr.mxu0 0.0
        %2055 = vmatpush1.msra.mxu0 0.0
        %2056 = vmatprep.subr.mxu0 0.0
        %2057 = vmatpush1.msra.mxu0 0.0
        %2058 = vmatprep.subr.mxu0 0.0
        %2059 = vmatpush1.msra.mxu0 0.0
        %2060 = vmatprep.subr.mxu0 0.0
        %2061 = vmatpush1.msra.mxu0 0.0
        %2062 = vmatprep.subr.mxu0 0.0
        %2063 = vmatpush1.msra.mxu0 0.0
        %2064 = vmatprep.subr.mxu0 0.0
        %2065 = vmatpush1.msra.mxu0 0.0
        %2066 = vmatprep.subr.mxu0 0.0
        %2067 = vmatpush1.msra.mxu0 0.0
        %2068 = vmatprep.subr.mxu0 0.0
        %2069 = vmatpush1.msra.mxu0 0.0
        %2070 = vmatprep.subr.mxu0 0.0
        %2071 = vmatpush1.msra.mxu0 0.0
        %2072 = vmatprep.subr.mxu0 0.0
        %2073 = vmatpush1.msra.mxu0 0.0
        %2074 = vmatprep.subr.mxu0 0.0
        %2075 = vmatpush1.msra.mxu0 0.0
        %2076 = vmatprep.subr.mxu0 0.0
        %2077 = vmatpush1.msra.mxu0 0.0
        %2078 = vmatprep.subr.mxu0 0.0
        %2079 = vmatpush1.msra.mxu0 0.0
        %2080 = vmatprep.subr.mxu0 0.0
        %2081 = vmatpush1.msra.mxu0 0.0
        %2082 = vmatprep.mubr.f32.mxu0 0.0
        %2083 = vmatmul.mubr.f32.gmra.mrb[0].mxu0 %v2016
        %v2084 = vpop.f32.mrb[0].mxu0
        %v2085 = vadd.f32 0.0, %v2084
        %v2086 = vpop.f32.mrb[0].mxu0
        %2087 = vdwg.mxu0
        %vm2088 = vcmp.ge.f32.partialorder %v1866, 0.0
        %vm2089 = vcmp.ge.f32.partialorder %v1939, 0.0
        %vm2090 = vcmp.ge.f32.partialorder %v2012, 0.0
        %vm2091 = vcmp.ge.f32.partialorder %v2085, 0.0
        %v2092 = vmul.f32 %v1866, 0.2
        %v2093 = vmul.f32 %v1939, 0.2
        %v2094 = vmul.f32 %v2012, 0.2
        %v2095 = vmul.f32 %v2085, 0.2
        %v2096 = vsel %vm2088, %v1866, %v2092
        %v2097 = vsel %vm2089, %v1939, %v2093
        %v2098 = vsel %vm2090, %v2012, %v2094
        %v2099 = vsel %vm2091, %v2085, %v2095
        %v2100 = vmul.f32 %v1792, %v1579
        %v2101 = vmul.f32 %v1793, %v1580
        %v2102 = vmul.f32 %v1794, %v1581
        %v2103 = vmul.f32 %v1795, %v1582
        %v2104 = vadd.f32 %v2100, %v2096
        %v2105 = vadd.f32 %v2101, %v2097
        %v2106 = vadd.f32 %v2102, %v2098
        %v2107 = vadd.f32 %v2103, %v2099
        %v2108 = vcombine.low %v2104, %v2106
        %v2109 = vcombine.high %v2104, %v2106
        %v2111 = vunpack.c.l.s4 1983009808
        %v2112 = vunpack.c.0.s8 %v2111
        %v2113 = vlaneseq
        %v2114 = vshrl.u32 %v2113, 7
        %v2115 = vsub.s32 %v2112, %v2114
        %v2116 = vrot.slane %v2108, %v2115
        %v2118 = vunpack.c.l.s4 1983009808
        %v2119 = vunpack.c.0.s8 %v2118
        %v2120 = vlaneseq
        %v2121 = vshrl.u32 %v2120, 7
        %v2122 = vsub.s32 %v2119, %v2121
        %v2123 = vrot.slane %v2109, %v2122
        %v2124 = vcombine.low %v2105, %v2107
        %v2125 = vcombine.high %v2105, %v2107
        %v2127 = vunpack.c.l.s4 1983009808
        %v2128 = vunpack.c.0.s8 %v2127
        %v2129 = vlaneseq
        %v2130 = vshrl.u32 %v2129, 7
        %v2131 = vsub.s32 %v2128, %v2130
        %v2132 = vrot.slane %v2124, %v2131
        %v2134 = vunpack.c.l.s4 1983009808
        %v2135 = vunpack.c.0.s8 %v2134
        %v2136 = vlaneseq
        %v2137 = vshrl.u32 %v2136, 7
        %v2138 = vsub.s32 %v2135, %v2137
        %v2139 = vrot.slane %v2125, %v2138
        %v2140 = vcombine.low %v2116, %v2132
        %v2141 = vcombine.high %v2116, %v2132
        %v2143 = vunpack.c.l.s4 1934713408
        %v2144 = vunpack.c.0.s8 %v2143
        %v2145 = vlaneseq
        %v2146 = vshrl.u32 %v2145, 7
        %v2147 = vsub.s32 %v2144, %v2146
        %v2148 = vrot.slane %v2140, %v2147
        %v2150 = vunpack.c.l.s4 1934713408
        %v2151 = vunpack.c.0.s8 %v2150
        %v2152 = vlaneseq
        %v2153 = vshrl.u32 %v2152, 7
        %v2154 = vsub.s32 %v2151, %v2153
        %v2155 = vrot.slane %v2141, %v2154
        %v2156 = vcombine.low %v2123, %v2139
        %v2157 = vcombine.high %v2123, %v2139
        %v2159 = vunpack.c.l.s4 1934713408
        %v2160 = vunpack.c.0.s8 %v2159
        %v2161 = vlaneseq
        %v2162 = vshrl.u32 %v2161, 7
        %v2163 = vsub.s32 %v2160, %v2162
        %v2164 = vrot.slane %v2156, %v2163
        %v2166 = vunpack.c.l.s4 1934713408
        %v2167 = vunpack.c.0.s8 %v2166
        %v2168 = vlaneseq
        %v2169 = vshrl.u32 %v2168, 7
        %v2170 = vsub.s32 %v2167, %v2169
        %v2171 = vrot.slane %v2157, %v2170
        %v2172 = vcombine.high %v2148, 0.0
        %v2173 = vcombine.high %v2155, 0.0
        %v2174 = vcombine.high %v2164, 0.0
        %v2175 = vcombine.high %v2171, 0.0
        %v2176 = vcombine.low %v2148, %v2155
        %v2178 = vunpack.c.l.s4 1983009808
        %v2179 = vunpack.c.0.s8 %v2178
        %v2180 = vlaneseq
        %v2181 = vshrl.u32 %v2180, 7
        %v2182 = vsub.s32 %v2179, %v2181
        %v2183 = vrot.slane %v2176, %v2182
        %v2184 = vcombine.low %v2172, %v2173
        %v2186 = vunpack.c.l.s4 1983009808
        %v2187 = vunpack.c.0.s8 %v2186
        %v2188 = vlaneseq
        %v2189 = vshrl.u32 %v2188, 7
        %v2190 = vsub.s32 %v2187, %v2189
        %v2191 = vrot.slane %v2184, %v2190
        %v2192 = vcombine.low %v2164, %v2171
        %v2194 = vunpack.c.l.s4 1983009808
        %v2195 = vunpack.c.0.s8 %v2194
        %v2196 = vlaneseq
        %v2197 = vshrl.u32 %v2196, 7
        %v2198 = vsub.s32 %v2195, %v2197
        %v2199 = vrot.slane %v2192, %v2198
        %v2200 = vcombine.low %v2174, %v2175
        %v2202 = vunpack.c.l.s4 1983009808
        %v2203 = vunpack.c.0.s8 %v2202
        %v2204 = vlaneseq
        %v2205 = vshrl.u32 %v2204, 7
        %v2206 = vsub.s32 %v2203, %v2205
        %v2207 = vrot.slane %v2200, %v2206
        %v2208 = vcombine.low %v2183, %v2191
        %v2209 = vcombine.high %v2183, %v2191
        %v2211 = vunpack.c.l.s4 1934713408
        %v2212 = vunpack.c.0.s8 %v2211
        %v2213 = vlaneseq
        %v2214 = vshrl.u32 %v2213, 7
        %v2215 = vsub.s32 %v2212, %v2214
        %v2216 = vrot.slane %v2208, %v2215
        %v2218 = vunpack.c.l.s4 1934713408
        %v2219 = vunpack.c.0.s8 %v2218
        %v2220 = vlaneseq
        %v2221 = vshrl.u32 %v2220, 7
        %v2222 = vsub.s32 %v2219, %v2221
        %v2223 = vrot.slane %v2209, %v2222
        %v2224 = vcombine.low %v2199, %v2207
        %v2225 = vcombine.high %v2199, %v2207
        %v2227 = vunpack.c.l.s4 1934713408
        %v2228 = vunpack.c.0.s8 %v2227
        %v2229 = vlaneseq
        %v2230 = vshrl.u32 %v2229, 7
        %v2231 = vsub.s32 %v2228, %v2230
        %v2232 = vrot.slane %v2224, %v2231
        %v2234 = vunpack.c.l.s4 1934713408
        %v2235 = vunpack.c.0.s8 %v2234
        %v2236 = vlaneseq
        %v2237 = vshrl.u32 %v2236, 7
        %v2238 = vsub.s32 %v2235, %v2237
        %v2239 = vrot.slane %v2225, %v2238
        %v2240 = vcombine.low %v2216, %v2232
        %v2241 = vcombine.high %v2216, %v2232
        %v2242 = vcombine.low %v2223, %v2239
        %v2243 = vcombine.high %v2223, %v2239
        %2245 = vrot.lane.b32.xlu0 %v2241, 8
        %v2246 = vpop.permute.xlu0 %2245
        %2249 = vrot.lane.b32.xlu0 %v2242, 16
        %v2250 = vpop.permute.xlu0 %2249
        %2253 = vrot.lane.b32.xlu0 %v2243, 24
        %v2254 = vpop.permute.xlu0 %2253
        %v2256 = vsel %vm723, %v2240, %v2246
        %v2257 = vsel %vm1249, %v2256, %v2250
        %v2258 = vsel %vm1251, %v2257, %v2254
        %v2259 = vadd.f32 %v1283, %v2258
        %v2260 = vsel %vm280, %v2259, 0.0
        %2261 = vadd.xlane.f32.xlu0 %v2260
        %v2262 = vpop.xlane.xlu0 %2261
        %v2263 = vmul.f32 %v2262, %v1257
        %v2264 = vsub.f32 %v2259, %v2263
        %v2265 = vmul.f32 %v2264, %v2264
        %v2266 = vsel %vm280, %v2265, 0.0
        %2267 = vadd.xlane.f32.xlu0 %v2266
        %v2268 = vpop.xlane.xlu0 %2267
        %v2269 = vmul.f32 %v2268, %v1257
        %v2270 = vadd.f32 %v2269, 1e-05
        %v2271 = vrsqrt.pop %v2270
        %v2272 = vmul.f32 %v2264, %v2271
        %s2273 = scalar_lea.vmem %s4, 1
        %v2274 = vld [vmem:[%s2273] sm:$0x1]
        %v2276 = vlaneseq
        %v2277 = vshrl.u32 %v2276, 7
        %v2278 = vsub.s32 0, %v2277
        %v2279 = vrot.slane %v2274, %v2278
        %v2281 = vmul.f32 %v2272, %v2279
        %s2282 = scalar_lea.vmem %s5, 1
        %v2283 = vld [vmem:[%s2282] sm:$0x1]
        %v2285 = vlaneseq
        %v2286 = vshrl.u32 %v2285, 7
        %v2287 = vsub.s32 0, %v2286
        %v2288 = vrot.slane %v2283, %v2287
        %v2290 = vadd.f32 %v2281, %v2288
        %2291 = vst.msk [vmem:[%s255] sm:$0xff] %vm280, %v2290
        %s2292 = sand.u32 %s164, 1
        %s2293 = scalar_lea.sflag [#allocation3], %s2292
        %s2294 = sand.u32 %s164, 1
        %s2295 = smul.addr %s2294, 8
        %s2296 = scalar_lea.vmem [#allocation2], %s2295
        // Predicated region
        $region45: #{tpu_custom_call.1} parent=43 // pred_check
          %p2297 = pneg %p174
        $region46: #{tpu_custom_call.1} parent=43 // pred_check_branch
          %2299 = sbr.rel (%p2297) target = $region48
        $region47: #{tpu_custom_call.1} parent=43 // pred_region
          %s2301 = ssub.s32 128, 128
          %2302 = vsyncadd %s2293, %s2301
          %s2303 = smul.addr %s20, 128
          %s2304 = scalar_lea.hbm %s6, %s2303
          %s2306 = sshll.u32 %s2296, 4
          %s2307 = int_to_ptr.vmem [resolvable:$true] %s2306
          %2309 = dma.vmem_to_hbm [thread:$0]  %s2307, 128, %s2304, %s2293
        $region48: #{tpu_custom_call.1} parent=43 // pred_fallthru
          _
      $region44: #{tpu_custom_call.1} parent=5 // pred_fallthru
        _
      %p2310 = scmp.le.s32.totalorder 2, %s15
      // Predicated region
      $region49: #{tpu_custom_call.1} parent=5 // pred_check
        %p2311 = pneg %p2310
      $region50: #{tpu_custom_call.1} parent=5 // pred_check_branch
        %2313 = sbr.rel (%p2311) target = $region52
      $region51: #{tpu_custom_call.1} parent=5 // pred_region
        %s2314 = ssub.s32 %s15, 2
        // Predicated region
        $region53: #{tpu_custom_call.1} parent=51 // pred_check
          %p2315 = pneg %p180
        $region54: #{tpu_custom_call.1} parent=51 // pred_check_branch
          %2317 = sbr.rel (%p2315) target = $region56
        $region55: #{tpu_custom_call.1} parent=51 // pred_region
          %s2318 = sand.u32 %s165, 1
          %s2319 = scalar_lea.sflag [#allocation3], %s2318
          %s2320 = sand.u32 %s165, 1
          %s2321 = smul.addr %s2320, 8
          %s2322 = scalar_lea.vmem [#allocation2], %s2321
          %2323 = dma.done %s2319, 128
        $region56: #{tpu_custom_call.1} parent=51 // pred_fallthru
          _
      $region52: #{tpu_custom_call.1} parent=5 // pred_fallthru
        _
    $region6: #{tpu_custom_call.1} parent=1 // loop_footer
      %s19 = sadd.s32 1, %s15
    $region7: #{tpu_custom_call.1} parent=1 // loop_footer_branch
      %14 = sbr.rel target = $region3
    $region8: #{tpu_custom_call.1} parent=1 // loop_exit
      _
    %2324 = vsyncpa [#allocation3], 1
    %s2325 = scalar_lea.sflag [#allocation3], 1
    %2326 = vsyncpa %s2325, 1

</llo_original>
